<compile_context>
chip_gen: v7x
topology: tpu7x:2x2x1
jax: 0.10.0
libtpu: 0.0.40
codegen_flags: <defaults>
</compile_context>

<pallas_src>
import functools
import math

import jax
import jax.numpy as jnp
from jax import lax
from jax.experimental import pallas as pl
from jax.experimental.pallas import tpu as pltpu

N_EMB = 384
HIDDEN = 4 * N_EMB
DROPOUT = 0.2      # unused at inference
H_CHUNK = 512      # hidden-dim slice processed per inner-loop step


def _round_up(x, m):
    return ((x + m - 1) // m) * m


def _ffn_kernel(x_ref, w1_ref, b1_ref, w2_ref, b2_ref, o_ref, acc_ref, *, h_chunk):
    """One (tm, D) token tile: relu(x @ W1 + b1) @ W2 + b2, hidden dim chunked."""
    # x_ref: (tm, D), w1_ref: (D, H) bf16, b1_ref: (1, H) f32,
    # w2_ref: (H, D) bf16, b2_ref: (1, D) f32, o_ref: (tm, D), acc_ref: (tm, D) f32
    x = x_ref[...].astype(jnp.bfloat16)          # no-op if x already bf16
    n_chunks = w1_ref.shape[1] // h_chunk        # static
    acc_ref[...] = jnp.zeros_like(acc_ref)

    def chunk_step(k, carry):
        off = pl.multiple_of(k * h_chunk, h_chunk)
        w1c = w1_ref[:, pl.ds(off, h_chunk)]                 # (D, hc) bf16
        b1c = b1_ref[:, pl.ds(off, h_chunk)]                 # (1, hc) f32
        w2c = w2_ref[pl.ds(off, h_chunk), :]                 # (hc, D) bf16
        h = jnp.dot(x, w1c, preferred_element_type=jnp.float32)
        h = jnp.maximum(h + b1c, 0.0)                        # bias + ReLU in f32
        acc_ref[...] += jnp.dot(h.astype(jnp.bfloat16), w2c,
                                preferred_element_type=jnp.float32)
        return carry

    lax.fori_loop(0, n_chunks, chunk_step, 0, unroll=True)
    o_ref[...] = (acc_ref[...] + b2_ref[...]).astype(o_ref.dtype)


def _choose_tm(M, tm_max):
    """Token tile: big for large M, sublane-granular for tiny M, >=2 tiles when possible."""
    if M < 256:
        return _round_up(max(M, 8), 8)           # decode-style: avoid 16->256 padding
    tm = min(tm_max, _round_up(M, 256))
    # v7x has 2 TensorCores; make sure the "parallel" axis has >= 2 steps to shard.
    while tm > 256 and _round_up(M, tm) // tm < 2:
        tm //= 2
    return tm


def feed_forward(x, w1, b1, w2, b2, *, tm_max=2048):
    """x: (B, T, n_emb) -> (B, T, n_emb). Inference-mode (dropout = identity).

    Weights are expected pre-converted to bf16 (store params as bf16); f32
    weights are accepted but cast per-call (extra HBM traffic).
    """
    B, T, D = x.shape
    H = w1.shape[1]
    M = B * T

    tm = _choose_tm(M, tm_max)
    Mp = _round_up(M, tm)
    x2 = x.reshape(M, D)
    if Mp != M:
        x2 = jnp.pad(x2, ((0, Mp - M), (0, 0)))
    grid = (Mp // tm,)

    # bf16 weights: MXU-native rate on v5e/v6e/v7x + half the resident VMEM.
    # The cast is hoisted to param init; this is only a fallback.
    w1b = w1 if w1.dtype == jnp.bfloat16 else w1.astype(jnp.bfloat16)
    w2b = w2 if w2.dtype == jnp.bfloat16 else w2.astype(jnp.bfloat16)
    b1f = b1.astype(jnp.float32).reshape(1, H)
    b2f = b2.astype(jnp.float32).reshape(1, D)

    hc = H_CHUNK if H % H_CHUNK == 0 else H      # chunk must divide H

    flops = 4 * Mp * D * H                       # two matmuls, 2 FLOP / MAC
    itemsize = jnp.dtype(x.dtype).itemsize
    bytes_accessed = (x2.size * itemsize + w1b.size * 2 + w2b.size * 2
                      + b1f.size * 4 + b2f.size * 4 + Mp * D * itemsize)

    const = pl.Buffered(1)                       # grid-invariant blocks: single buffer
    kernel = functools.partial(_ffn_kernel, h_chunk=hc)

    out = pl.pallas_call(
        kernel,
        out_shape=jax.ShapeDtypeStruct((Mp, D), x.dtype),
        grid_spec=pltpu.PrefetchScalarGridSpec(
            num_scalar_prefetch=0,
            grid=grid,
            in_specs=[
                pl.BlockSpec((tm, D), lambda i: (i, 0)),                        # x tile
                pl.BlockSpec((D, H), lambda i: (0, 0), pipeline_mode=const),    # W1 bf16
                pl.BlockSpec((1, H), lambda i: (0, 0), pipeline_mode=const),    # b1 f32
                pl.BlockSpec((H, D), lambda i: (0, 0), pipeline_mode=const),    # W2 bf16
                pl.BlockSpec((1, D), lambda i: (0, 0), pipeline_mode=const),    # b2 f32
            ],
            out_specs=pl.BlockSpec((tm, D), lambda i: (i, 0)),
            scratch_shapes=[pltpu.VMEM((tm, D), jnp.float32)],                  # f32 accumulator
        ),
        compiler_params=pltpu.CompilerParams(
            dimension_semantics=("parallel",),       # megacore-shardable on v7x
            vmem_limit_bytes=48 * 1024 * 1024,       # tm=2048 fits; < v7x 64 MiB physical
        ),
        cost_estimate=pl.CostEstimate(
            flops=flops, transcendentals=0, bytes_accessed=bytes_accessed),
    )(x2, w1b, b1f, w2b, b2f)

    return out[:M].reshape(B, T, D)


def init_params(key, n_emb=N_EMB):
    """f32 master params mirroring torch.nn.Linear's U(-1/sqrt(in), 1/sqrt(in))."""
    h = 4 * n_emb
    k1, k2, k3, k4 = jax.random.split(key, 4)
    bound1 = 1.0 / math.sqrt(n_emb)
    bound2 = 1.0 / math.sqrt(h)
    # stored as (in, out) = transpose of PyTorch Linear.weight
    w1 = jax.random.uniform(k1, (n_emb, h), jnp.float32, -bound1, bound1)
    b1 = jax.random.uniform(k2, (1, h), jnp.float32, -bound1, bound1)
    w2 = jax.random.uniform(k3, (h, n_emb), jnp.float32, -bound2, bound2)
    b2 = jax.random.uniform(k4, (1, n_emb), jnp.float32, -bound2, bound2)
    return w1, b1, w2, b2


def _bf16_ref(x, w1b, b1, w2b, b2):
    """Pure-JAX reference with the same bf16-matmul / f32-accumulate recipe."""
    M = x.shape[0] * x.shape[1]
    xb = x.reshape(M, -1).astype(jnp.bfloat16)
    h = jnp.dot(xb, w1b, preferred_element_type=jnp.float32) + b1
    h = jnp.maximum(h, 0.0)
    y = jnp.dot(h.astype(jnp.bfloat16), w2b, preferred_element_type=jnp.float32) + b2
    return y.reshape(x.shape)


if __name__ == "__main__":
    key = jax.random.PRNGKey(0)
    kp, kx1, kx2 = jax.random.split(key, 3)
    w1_f32, b1, w2_f32, b2 = init_params(kp)

    # Param conversion hoisted out of the per-call path: weights live in bf16.
    w1 = w1_f32.astype(jnp.bfloat16)
    w2 = w2_f32.astype(jnp.bfloat16)

    # --- small decode-style shape (single tiny tile, tm = round_up(16, 8)) ---
    B, T = 2, 8
    x = jax.random.normal(kx1, (B, T, N_EMB), jnp.float32)
    y = jax.block_until_ready(feed_forward(x, w1, b1, w2, b2))
    assert y.shape == (B, T, N_EMB)

    ref = _bf16_ref(x, w1, b1, w2, b2)
    assert jnp.allclose(y, ref, atol=2e-2, rtol=2e-2)

    ref32 = jnp.maximum(x.reshape(-1, N_EMB) @ w1_f32 + b1, 0.0) @ w2_f32 + b2
    assert jnp.allclose(y, ref32.reshape(B, T, N_EMB), atol=5e-2, rtol=5e-2)

    # --- modest shape exercising padding + multi-tile parallel grid ---
    B2, T2 = 4, 160                       # M = 640 -> tm = 384, Mp = 768, grid = (2,)
    x2 = jax.random.normal(kx2, (B2, T2, N_EMB), jnp.float32)
    y2 = jax.block_until_ready(feed_forward(x2, w1, b1, w2, b2))
    assert y2.shape == (B2, T2, N_EMB)
    ref2 = _bf16_ref(x2, w1, b1, w2, b2)
    assert jnp.allclose(y2, ref2, atol=2e-2, rtol=2e-2)

    print("KERNEL_OK")
</pallas_src>

<mosaic_0001>
module attributes {stable_mosaic.version = 11 : i64} {
  func.func @_ffn_kernel(%arg0: i32, %arg1: memref<16x384xf32, #tpu.memory_space<vmem>>, %arg2: memref<384x1536xbf16, #tpu.memory_space<vmem>>, %arg3: memref<1x1536xf32, #tpu.memory_space<vmem>>, %arg4: memref<1536x384xbf16, #tpu.memory_space<vmem>>, %arg5: memref<1x384xf32, #tpu.memory_space<vmem>>, %arg6: memref<16x384xf32, #tpu.memory_space<vmem>>, %arg7: memref<16x384xf32, #tpu.memory_space<vmem>>) attributes {dimension_semantics = [#tpu.dimension_semantics<parallel>], iteration_bounds = array<i64: 1>, scalar_prefetch = 0 : i64, scratch_operands = 1 : i64, tpu.core_type = #tpu.core_type<tc>, window_params = [{transform_indices = @transform_0, window_bounds = array<i64: 16, 384>}, {pipeline_mode = #tpu.pipeline_mode<synchronous>, transform_indices = @transform_1, window_bounds = array<i64: 384, 1536>}, {pipeline_mode = #tpu.pipeline_mode<synchronous>, transform_indices = @transform_2, window_bounds = array<i64: 1, 1536>}, {pipeline_mode = #tpu.pipeline_mode<synchronous>, transform_indices = @transform_3, window_bounds = array<i64: 1536, 384>}, {pipeline_mode = #tpu.pipeline_mode<synchronous>, transform_indices = @transform_4, window_bounds = array<i64: 1, 384>}, {transform_indices = @transform_5, window_bounds = array<i64: 16, 384>}]} {
    %c0 = arith.constant 0 : index
    %c0_0 = arith.constant 0 : index
    %0 = vector.load %arg1[%c0, %c0_0] : memref<16x384xf32, #tpu.memory_space<vmem>>, vector<16x384xf32>
    %1 = arith.truncf %0 : vector<16x384xf32> to vector<16x384xbf16>
    %cst = arith.constant 0.000000e+00 : f32
    %2 = vector.broadcast %cst : f32 to vector<16x384xf32>
    %c0_1 = arith.constant 0 : index
    %c0_2 = arith.constant 0 : index
    %3 = vector.load %arg7[%c0_1, %c0_2] : memref<16x384xf32, #tpu.memory_space<vmem>>, vector<16x384xf32>
    tpu.vector_store %arg7[%c0_1, %c0_2], %2 {strides = array<i32>} : memref<16x384xf32, #tpu.memory_space<vmem>>, vector<16x384xf32>,
    %c0_i32 = arith.constant 0 : i32
    %c512_i32 = arith.constant 512 : i32
    %4 = arith.muli %c0_i32, %c512_i32 : i32
    %5 = tpu.assume_multiple %4, 512 : i32
    %c0_3 = arith.constant 0 : index
    %6 = arith.index_cast %5 : i32 to index
    %7 = vector.load %arg2[%c0_3, %6] : memref<384x1536xbf16, #tpu.memory_space<vmem>>, vector<384x512xbf16>
    %c0_4 = arith.constant 0 : index
    %8 = arith.index_cast %5 : i32 to index
    %9 = vector.load %arg3[%c0_4, %8] : memref<1x1536xf32, #tpu.memory_space<vmem>>, vector<1x512xf32>
    %10 = arith.index_cast %5 : i32 to index
    %c0_5 = arith.constant 0 : index
    %11 = vector.load %arg4[%10, %c0_5] : memref<1536x384xbf16, #tpu.memory_space<vmem>>, vector<512x384xbf16>
    %cst_6 = arith.constant dense<0.000000e+00> : vector<16x512xf32>
    %12 = tpu.matmul %1, %7, %cst_6 {dimension_numbers = #tpu.dot_dimension_numbers<[1], [0], [0], [1], [0, 0, 1, 1], [], []>} : vector<16x384xbf16>, vector<384x512xbf16>, vector<16x512xf32> -> vector<16x512xf32>
    %13 = vector.broadcast %9 : vector<1x512xf32> to vector<16x512xf32>
    %14 = arith.addf %12, %13 : vector<16x512xf32>
    %cst_7 = arith.constant 0.000000e+00 : f32
    %15 = vector.broadcast %cst_7 : f32 to vector<16x512xf32>
    %16 = arith.maximumf %14, %15 : vector<16x512xf32>
    %c0_8 = arith.constant 0 : index
    %c0_9 = arith.constant 0 : index
    %17 = vector.load %arg7[%c0_8, %c0_9] : memref<16x384xf32, #tpu.memory_space<vmem>>, vector<16x384xf32>
    %18 = arith.truncf %16 : vector<16x512xf32> to vector<16x512xbf16>
    %cst_10 = arith.constant dense<0.000000e+00> : vector<16x384xf32>
    %19 = tpu.matmul %18, %11, %cst_10 {dimension_numbers = #tpu.dot_dimension_numbers<[1], [0], [0], [1], [0, 0, 1, 1], [], []>} : vector<16x512xbf16>, vector<512x384xbf16>, vector<16x384xf32> -> vector<16x384xf32>
    %20 = arith.addf %17, %19 : vector<16x384xf32>
    %c0_11 = arith.constant 0 : index
    %c0_12 = arith.constant 0 : index
    %21 = vector.load %arg7[%c0_11, %c0_12] : memref<16x384xf32, #tpu.memory_space<vmem>>, vector<16x384xf32>
    tpu.vector_store %arg7[%c0_11, %c0_12], %20 {strides = array<i32>} : memref<16x384xf32, #tpu.memory_space<vmem>>, vector<16x384xf32>,
    %c1_i32 = arith.constant 1 : i32
    %c512_i32_13 = arith.constant 512 : i32
    %22 = arith.muli %c1_i32, %c512_i32_13 : i32
    %23 = tpu.assume_multiple %22, 512 : i32
    %c0_14 = arith.constant 0 : index
    %24 = arith.index_cast %23 : i32 to index
    %25 = vector.load %arg2[%c0_14, %24] : memref<384x1536xbf16, #tpu.memory_space<vmem>>, vector<384x512xbf16>
    %c0_15 = arith.constant 0 : index
    %26 = arith.index_cast %23 : i32 to index
    %27 = vector.load %arg3[%c0_15, %26] : memref<1x1536xf32, #tpu.memory_space<vmem>>, vector<1x512xf32>
    %28 = arith.index_cast %23 : i32 to index
    %c0_16 = arith.constant 0 : index
    %29 = vector.load %arg4[%28, %c0_16] : memref<1536x384xbf16, #tpu.memory_space<vmem>>, vector<512x384xbf16>
    %cst_17 = arith.constant dense<0.000000e+00> : vector<16x512xf32>
    %30 = tpu.matmul %1, %25, %cst_17 {dimension_numbers = #tpu.dot_dimension_numbers<[1], [0], [0], [1], [0, 0, 1, 1], [], []>} : vector<16x384xbf16>, vector<384x512xbf16>, vector<16x512xf32> -> vector<16x512xf32>
    %31 = vector.broadcast %27 : vector<1x512xf32> to vector<16x512xf32>
    %32 = arith.addf %30, %31 : vector<16x512xf32>
    %cst_18 = arith.constant 0.000000e+00 : f32
    %33 = vector.broadcast %cst_18 : f32 to vector<16x512xf32>
    %34 = arith.maximumf %32, %33 : vector<16x512xf32>
    %c0_19 = arith.constant 0 : index
    %c0_20 = arith.constant 0 : index
    %35 = vector.load %arg7[%c0_19, %c0_20] : memref<16x384xf32, #tpu.memory_space<vmem>>, vector<16x384xf32>
    %36 = arith.truncf %34 : vector<16x512xf32> to vector<16x512xbf16>
    %cst_21 = arith.constant dense<0.000000e+00> : vector<16x384xf32>
    %37 = tpu.matmul %36, %29, %cst_21 {dimension_numbers = #tpu.dot_dimension_numbers<[1], [0], [0], [1], [0, 0, 1, 1], [], []>} : vector<16x512xbf16>, vector<512x384xbf16>, vector<16x384xf32> -> vector<16x384xf32>
    %38 = arith.addf %35, %37 : vector<16x384xf32>
    %c0_22 = arith.constant 0 : index
    %c0_23 = arith.constant 0 : index
    %39 = vector.load %arg7[%c0_22, %c0_23] : memref<16x384xf32, #tpu.memory_space<vmem>>, vector<16x384xf32>
    tpu.vector_store %arg7[%c0_22, %c0_23], %38 {strides = array<i32>} : memref<16x384xf32, #tpu.memory_space<vmem>>, vector<16x384xf32>,
    %c2_i32 = arith.constant 2 : i32
    %c512_i32_24 = arith.constant 512 : i32
    %40 = arith.muli %c2_i32, %c512_i32_24 : i32
    %41 = tpu.assume_multiple %40, 512 : i32
    %c0_25 = arith.constant 0 : index
    %42 = arith.index_cast %41 : i32 to index
    %43 = vector.load %arg2[%c0_25, %42] : memref<384x1536xbf16, #tpu.memory_space<vmem>>, vector<384x512xbf16>
    %c0_26 = arith.constant 0 : index
    %44 = arith.index_cast %41 : i32 to index
    %45 = vector.load %arg3[%c0_26, %44] : memref<1x1536xf32, #tpu.memory_space<vmem>>, vector<1x512xf32>
    %46 = arith.index_cast %41 : i32 to index
    %c0_27 = arith.constant 0 : index
    %47 = vector.load %arg4[%46, %c0_27] : memref<1536x384xbf16, #tpu.memory_space<vmem>>, vector<512x384xbf16>
    %cst_28 = arith.constant dense<0.000000e+00> : vector<16x512xf32>
    %48 = tpu.matmul %1, %43, %cst_28 {dimension_numbers = #tpu.dot_dimension_numbers<[1], [0], [0], [1], [0, 0, 1, 1], [], []>} : vector<16x384xbf16>, vector<384x512xbf16>, vector<16x512xf32> -> vector<16x512xf32>
    %49 = vector.broadcast %45 : vector<1x512xf32> to vector<16x512xf32>
    %50 = arith.addf %48, %49 : vector<16x512xf32>
    %cst_29 = arith.constant 0.000000e+00 : f32
    %51 = vector.broadcast %cst_29 : f32 to vector<16x512xf32>
    %52 = arith.maximumf %50, %51 : vector<16x512xf32>
    %c0_30 = arith.constant 0 : index
    %c0_31 = arith.constant 0 : index
    %53 = vector.load %arg7[%c0_30, %c0_31] : memref<16x384xf32, #tpu.memory_space<vmem>>, vector<16x384xf32>
    %54 = arith.truncf %52 : vector<16x512xf32> to vector<16x512xbf16>
    %cst_32 = arith.constant dense<0.000000e+00> : vector<16x384xf32>
    %55 = tpu.matmul %54, %47, %cst_32 {dimension_numbers = #tpu.dot_dimension_numbers<[1], [0], [0], [1], [0, 0, 1, 1], [], []>} : vector<16x512xbf16>, vector<512x384xbf16>, vector<16x384xf32> -> vector<16x384xf32>
    %56 = arith.addf %53, %55 : vector<16x384xf32>
    %c0_33 = arith.constant 0 : index
    %c0_34 = arith.constant 0 : index
    %57 = vector.load %arg7[%c0_33, %c0_34] : memref<16x384xf32, #tpu.memory_space<vmem>>, vector<16x384xf32>
    tpu.vector_store %arg7[%c0_33, %c0_34], %56 {strides = array<i32>} : memref<16x384xf32, #tpu.memory_space<vmem>>, vector<16x384xf32>,
    %c3_i32 = arith.constant 3 : i32
    %c0_35 = arith.constant 0 : index
    %c0_36 = arith.constant 0 : index
    %58 = vector.load %arg7[%c0_35, %c0_36] : memref<16x384xf32, #tpu.memory_space<vmem>>, vector<16x384xf32>
    %c0_37 = arith.constant 0 : index
    %c0_38 = arith.constant 0 : index
    %59 = vector.load %arg5[%c0_37, %c0_38] : memref<1x384xf32, #tpu.memory_space<vmem>>, vector<1x384xf32>
    %60 = vector.broadcast %59 : vector<1x384xf32> to vector<16x384xf32>
    %61 = arith.addf %58, %60 : vector<16x384xf32>
    %c0_39 = arith.constant 0 : index
    %c0_40 = arith.constant 0 : index
    %62 = vector.load %arg6[%c0_39, %c0_40] : memref<16x384xf32, #tpu.memory_space<vmem>>, vector<16x384xf32>
    tpu.vector_store %arg6[%c0_39, %c0_40], %61 {strides = array<i32>} : memref<16x384xf32, #tpu.memory_space<vmem>>, vector<16x384xf32>,
    return
  }
  func.func @transform_0(%arg0: i32) -> (i32, i32) {
    %c0_i32 = arith.constant 0 : i32
    %c0_i32_0 = arith.constant 0 : i32
    return %arg0, %c0_i32 : i32, i32
  }
  func.func @transform_1(%arg0: i32) -> (i32, i32) {
    %c0_i32 = arith.constant 0 : i32
    %c0_i32_0 = arith.constant 0 : i32
    %c0_i32_1 = arith.constant 0 : i32
    return %c0_i32, %c0_i32_0 : i32, i32
  }
  func.func @transform_2(%arg0: i32) -> (i32, i32) {
    %c0_i32 = arith.constant 0 : i32
    %c0_i32_0 = arith.constant 0 : i32
    %c0_i32_1 = arith.constant 0 : i32
    return %c0_i32, %c0_i32_0 : i32, i32
  }
  func.func @transform_3(%arg0: i32) -> (i32, i32) {
    %c0_i32 = arith.constant 0 : i32
    %c0_i32_0 = arith.constant 0 : i32
    %c0_i32_1 = arith.constant 0 : i32
    return %c0_i32, %c0_i32_0 : i32, i32
  }
  func.func @transform_4(%arg0: i32) -> (i32, i32) {
    %c0_i32 = arith.constant 0 : i32
    %c0_i32_0 = arith.constant 0 : i32
    %c0_i32_1 = arith.constant 0 : i32
    return %c0_i32, %c0_i32_0 : i32, i32
  }
  func.func @transform_5(%arg0: i32) -> (i32, i32) {
    %c0_i32 = arith.constant 0 : i32
    %c0_i32_0 = arith.constant 0 : i32
    return %arg0, %c0_i32 : i32, i32
  }
}

</mosaic_0001>

<llo_original>
// kernel: tpu_custom_call.1
$region0: #{tpu_custom_call.1}
  #allocation0 [shape = 'u32[]', space=smem, size = 0x4, offset = 0x4, fixed_abs, tag = 'smem constant byte address 0x4 - core index']
  #allocation1 [shape = 'u32[144,128]{1,0:T(1,128)}', space=vmem, size = 0x12000, scoped, tag = 'internal scratch']
  #allocation2 [shape = 'f32[16,384]{1,0:T(8,128)}', space=vmem, size = 0x6000, scoped, tag = 'scratch operand']
  %s0 = inlined_call_operand.hbm [shape: f32[16,384], index: 0, kind: input, shape index: {}]
  %s1 = inlined_call_operand.hbm [shape: bf16[384,1536], index: 1, kind: input, shape index: {}]
  %s2 = inlined_call_operand.hbm [shape: f32[1,1536], index: 2, kind: input, shape index: {}]
  %s3 = inlined_call_operand.hbm [shape: bf16[1536,384], index: 3, kind: input, shape index: {}]
  %s4 = inlined_call_operand.hbm [shape: f32[1,384], index: 4, kind: input, shape index: {}]
  %s5 = inlined_call_operand.hbm [shape: f32[16,384], index: 5, kind: output, shape index: {}]
  %s6 = sld [smem:[#allocation0]]
  $region50: #{tpu_custom_call.1} parent=0
    _
  %s8 = ssub.s32 1, %s6
  %s9 = scalar_select 0, %s8, %s6
  $region1: #{tpu_custom_call.1} parent=0
    #allocation3 [shape = 'u8[24576]{0}', space=vmem, size = 0x6000, scoped, tag = 'input window, operand 0, single buffered']
    #allocation4 [shape = 's32[1]{0}', space=sflag, size = 0x4, scoped, tag = 'scoped memory for tpu_custom_call.1']
    #allocation5 [shape = 's32[1]{0}', space=sflag, size = 0x4, scoped, tag = 'scoped memory for tpu_custom_call.1']
    #allocation6 [shape = 'u8[1179648]{0}', space=vmem, size = 0x120000, scoped, tag = 'input window, operand 1, single buffered']
    #allocation7 [shape = 's32[1]{0}', space=sflag, size = 0x4, scoped, tag = 'scoped memory for tpu_custom_call.1']
    #allocation8 [shape = 'u8[6144]{0}', space=vmem, size = 0x1800, scoped, tag = 'input window, operand 2, single buffered']
    #allocation9 [shape = 'u8[1179648]{0}', space=vmem, size = 0x120000, scoped, tag = 'input window, operand 3, single buffered']
    #allocation10 [shape = 's32[1]{0}', space=sflag, size = 0x4, scoped, tag = 'scoped memory for tpu_custom_call.1']
    #allocation11 [shape = 'u8[1536]{0}', space=vmem, size = 0x800, scoped, tag = 'input window, operand 4, single buffered']
    #allocation12 [shape = 'u8[24576]{0}', space=vmem, size = 0x6000, scoped, tag = 'output window, operand 0, single buffered']
    %10 = vsyncpa [#allocation4], 0
    %11 = vsyncpa [#allocation7], 0
    %12 = vsyncpa [#allocation10], 0
    %13 = vsyncpa [#allocation5], 0
    // Predicated region
    $region2: #{tpu_custom_call.1} parent=1 // pred_check
      _
    $region3: #{tpu_custom_call.1} parent=1 // pred_check_branch
      %15 = sbr.rel (0) target = $region5
    $region4: #{tpu_custom_call.1} parent=1 // pred_region
      %s17 = ssub.s32 768, 768
      %18 = vsyncadd [#allocation4], %s17
      %s19 = sshll.u32 [#allocation3], 4
      %s20 = int_to_ptr.vmem [resolvable:$true] %s19
      %25 = dma.hbm_to_vmem [thread:$0]  %s0, 768, %s20, [#allocation4], 384, 384, 24
    $region5: #{tpu_custom_call.1} parent=1 // pred_fallthru
      _
    // Predicated region
    $region6: #{tpu_custom_call.1} parent=1 // pred_check
      _
    $region7: #{tpu_custom_call.1} parent=1 // pred_check_branch
      %27 = sbr.rel (0) target = $region9
    $region8: #{tpu_custom_call.1} parent=1 // pred_region
      %s29 = ssub.s32 36864, 36864
      %30 = vsyncadd [#allocation7], %s29
      %s31 = sshll.u32 [#allocation6], 4
      %s32 = int_to_ptr.vmem [resolvable:$true] %s31
      %37 = dma.hbm_to_vmem [thread:$0]  %s1, 36864, %s32, [#allocation7], 768, 768, 48
    $region9: #{tpu_custom_call.1} parent=1 // pred_fallthru
      _
    // Predicated region
    $region10: #{tpu_custom_call.1} parent=1 // pred_check
      _
    $region11: #{tpu_custom_call.1} parent=1 // pred_check_branch
      %39 = sbr.rel (0) target = $region13
    $region12: #{tpu_custom_call.1} parent=1 // pred_region
      %s41 = ssub.s32 192, 192
      %42 = vsyncadd [#allocation7], %s41
      %s44 = sshll.u32 [#allocation8], 4
      %s45 = int_to_ptr.vmem [resolvable:$true] %s44
      %47 = dma.hbm_to_vmem [thread:$0]  %s2, 192, %s45, [#allocation7]
    $region13: #{tpu_custom_call.1} parent=1 // pred_fallthru
      _
    // Predicated region
    $region14: #{tpu_custom_call.1} parent=1 // pred_check
      _
    $region15: #{tpu_custom_call.1} parent=1 // pred_check_branch
      %49 = sbr.rel (0) target = $region17
    $region16: #{tpu_custom_call.1} parent=1 // pred_region
      %s51 = ssub.s32 36864, 36864
      %52 = vsyncadd [#allocation10], %s51
      %s53 = sshll.u32 [#allocation9], 4
      %s54 = int_to_ptr.vmem [resolvable:$true] %s53
      %59 = dma.hbm_to_vmem [thread:$0]  %s3, 36864, %s54, [#allocation10], 192, 192, 12
    $region17: #{tpu_custom_call.1} parent=1 // pred_fallthru
      _
    // Predicated region
    $region18: #{tpu_custom_call.1} parent=1 // pred_check
      _
    $region19: #{tpu_custom_call.1} parent=1 // pred_check_branch
      %61 = sbr.rel (0) target = $region21
    $region20: #{tpu_custom_call.1} parent=1 // pred_region
      %s63 = ssub.s32 48, 48
      %64 = vsyncadd [#allocation10], %s63
      %s66 = sshll.u32 [#allocation11], 4
      %s67 = int_to_ptr.vmem [resolvable:$true] %s66
      %69 = dma.hbm_to_vmem [thread:$0]  %s4, 48, %s67, [#allocation10]
    $region21: #{tpu_custom_call.1} parent=1 // pred_fallthru
      _
    // Predicated region
    $region22: #{tpu_custom_call.1} parent=1 // pred_check
      _
    $region23: #{tpu_custom_call.1} parent=1 // pred_check_branch
      %71 = sbr.rel (0) target = $region25
    $region24: #{tpu_custom_call.1} parent=1 // pred_region
      %72 = dma.done [#allocation4], 768
    $region25: #{tpu_custom_call.1} parent=1 // pred_fallthru
      _
    // Predicated region
    $region26: #{tpu_custom_call.1} parent=1 // pred_check
      _
    $region27: #{tpu_custom_call.1} parent=1 // pred_check_branch
      %74 = sbr.rel (0) target = $region29
    $region28: #{tpu_custom_call.1} parent=1 // pred_region
      %75 = dma.done [#allocation7], 36864
    $region29: #{tpu_custom_call.1} parent=1 // pred_fallthru
      _
    // Predicated region
    $region30: #{tpu_custom_call.1} parent=1 // pred_check
      _
    $region31: #{tpu_custom_call.1} parent=1 // pred_check_branch
      %77 = sbr.rel (0) target = $region33
    $region32: #{tpu_custom_call.1} parent=1 // pred_region
      %78 = dma.done [#allocation7], 192
    $region33: #{tpu_custom_call.1} parent=1 // pred_fallthru
      _
    // Predicated region
    $region34: #{tpu_custom_call.1} parent=1 // pred_check
      _
    $region35: #{tpu_custom_call.1} parent=1 // pred_check_branch
      %80 = sbr.rel (0) target = $region37
    $region36: #{tpu_custom_call.1} parent=1 // pred_region
      %81 = dma.done [#allocation10], 36864
    $region37: #{tpu_custom_call.1} parent=1 // pred_fallthru
      _
    // Predicated region
    $region38: #{tpu_custom_call.1} parent=1 // pred_check
      _
    $region39: #{tpu_custom_call.1} parent=1 // pred_check_branch
      %83 = sbr.rel (0) target = $region41
    $region40: #{tpu_custom_call.1} parent=1 // pred_region
      %84 = dma.done [#allocation10], 48
    $region41: #{tpu_custom_call.1} parent=1 // pred_fallthru
      _
    %v86 = vld [vmem:[#allocation3] sm:$0xff]
    %v87 = vld [vmem:[#allocation3 + $0x8] sm:$0xff]
    %v88 = vld [vmem:[#allocation3 + $0x10] sm:$0xff]
    %v89 = vld [vmem:[#allocation3 + $0x18] sm:$0xff]
    %v90 = vld [vmem:[#allocation3 + $0x20] sm:$0xff]
    %v91 = vld [vmem:[#allocation3 + $0x28] sm:$0xff]
    %v92 = vpack.c.bf16 %v89, %v86
    %v93 = vpack.c.bf16 %v90, %v87
    %v94 = vpack.c.bf16 %v91, %v88
    %95 = vst [vmem:[#allocation2] sm:$0xff] 0.0
    %96 = vst [vmem:[#allocation2 + $0x8] sm:$0xff] 0.0
    %97 = vst [vmem:[#allocation2 + $0x10] sm:$0xff] 0.0
    %98 = vst [vmem:[#allocation2 + $0x18] sm:$0xff] 0.0
    %99 = vst [vmem:[#allocation2 + $0x20] sm:$0xff] 0.0
    %100 = vst [vmem:[#allocation2 + $0x28] sm:$0xff] 0.0
    %v101 = vld [vmem:[#allocation6] sm:$0xff]
    %v102 = vld [vmem:[#allocation6 + $0x8] sm:$0xff]
    %v103 = vld [vmem:[#allocation6 + $0x30] sm:$0xff]
    %v104 = vld [vmem:[#allocation6 + $0x38] sm:$0xff]
    %v105 = vld [vmem:[#allocation6 + $0x60] sm:$0xff]
    %v106 = vld [vmem:[#allocation6 + $0x68] sm:$0xff]
    %v107 = vld [vmem:[#allocation6 + $0x90] sm:$0xff]
    %v108 = vld [vmem:[#allocation6 + $0x98] sm:$0xff]
    %v109 = vld [vmem:[#allocation6 + $0xc0] sm:$0xff]
    %v110 = vld [vmem:[#allocation6 + $0xc8] sm:$0xff]
    %v111 = vld [vmem:[#allocation6 + $0xf0] sm:$0xff]
    %v112 = vld [vmem:[#allocation6 + $0xf8] sm:$0xff]
    %v113 = vld [vmem:[#allocation6 + $0x120] sm:$0xff]
    %v114 = vld [vmem:[#allocation6 + $0x128] sm:$0xff]
    %v115 = vld [vmem:[#allocation6 + $0x150] sm:$0xff]
    %v116 = vld [vmem:[#allocation6 + $0x158] sm:$0xff]
    %v117 = vld [vmem:[#allocation6 + $0x180] sm:$0xff]
    %v118 = vld [vmem:[#allocation6 + $0x188] sm:$0xff]
    %v119 = vld [vmem:[#allocation6 + $0x1b0] sm:$0xff]
    %v120 = vld [vmem:[#allocation6 + $0x1b8] sm:$0xff]
    %v121 = vld [vmem:[#allocation6 + $0x1e0] sm:$0xff]
    %v122 = vld [vmem:[#allocation6 + $0x1e8] sm:$0xff]
    %v123 = vld [vmem:[#allocation6 + $0x210] sm:$0xff]
    %v124 = vld [vmem:[#allocation6 + $0x218] sm:$0xff]
    %v125 = vld [vmem:[#allocation6 + $0x240] sm:$0xff]
    %v126 = vld [vmem:[#allocation6 + $0x248] sm:$0xff]
    %v127 = vld [vmem:[#allocation6 + $0x270] sm:$0xff]
    %v128 = vld [vmem:[#allocation6 + $0x278] sm:$0xff]
    %v129 = vld [vmem:[#allocation6 + $0x2a0] sm:$0xff]
    %v130 = vld [vmem:[#allocation6 + $0x2a8] sm:$0xff]
    %v131 = vld [vmem:[#allocation6 + $0x2d0] sm:$0xff]
    %v132 = vld [vmem:[#allocation6 + $0x2d8] sm:$0xff]
    %v133 = vld [vmem:[#allocation6 + $0x300] sm:$0xff]
    %v134 = vld [vmem:[#allocation6 + $0x308] sm:$0xff]
    %v135 = vld [vmem:[#allocation6 + $0x330] sm:$0xff]
    %v136 = vld [vmem:[#allocation6 + $0x338] sm:$0xff]
    %v137 = vld [vmem:[#allocation6 + $0x360] sm:$0xff]
    %v138 = vld [vmem:[#allocation6 + $0x368] sm:$0xff]
    %v139 = vld [vmem:[#allocation6 + $0x390] sm:$0xff]
    %v140 = vld [vmem:[#allocation6 + $0x398] sm:$0xff]
    %v141 = vld [vmem:[#allocation6 + $0x3c0] sm:$0xff]
    %v142 = vld [vmem:[#allocation6 + $0x3c8] sm:$0xff]
    %v143 = vld [vmem:[#allocation6 + $0x3f0] sm:$0xff]
    %v144 = vld [vmem:[#allocation6 + $0x3f8] sm:$0xff]
    %v145 = vld [vmem:[#allocation6 + $0x420] sm:$0xff]
    %v146 = vld [vmem:[#allocation6 + $0x428] sm:$0xff]
    %v147 = vld [vmem:[#allocation6 + $0x450] sm:$0xff]
    %v148 = vld [vmem:[#allocation6 + $0x458] sm:$0xff]
    %v149 = vld [vmem:[#allocation6 + $0x480] sm:$0xff]
    %v150 = vld [vmem:[#allocation6 + $0x488] sm:$0xff]
    %v151 = vld [vmem:[#allocation6 + $0x4b0] sm:$0xff]
    %v152 = vld [vmem:[#allocation6 + $0x4b8] sm:$0xff]
    %v153 = vld [vmem:[#allocation6 + $0x4e0] sm:$0xff]
    %v154 = vld [vmem:[#allocation6 + $0x4e8] sm:$0xff]
    %v155 = vld [vmem:[#allocation6 + $0x510] sm:$0xff]
    %v156 = vld [vmem:[#allocation6 + $0x518] sm:$0xff]
    %v157 = vld [vmem:[#allocation6 + $0x540] sm:$0xff]
    %v158 = vld [vmem:[#allocation6 + $0x548] sm:$0xff]
    %v159 = vld [vmem:[#allocation6 + $0x570] sm:$0xff]
    %v160 = vld [vmem:[#allocation6 + $0x578] sm:$0xff]
    %v161 = vld [vmem:[#allocation6 + $0x5a0] sm:$0xff]
    %v162 = vld [vmem:[#allocation6 + $0x5a8] sm:$0xff]
    %v163 = vld [vmem:[#allocation6 + $0x5d0] sm:$0xff]
    %v164 = vld [vmem:[#allocation6 + $0x5d8] sm:$0xff]
    %v165 = vld [vmem:[#allocation6 + $0x600] sm:$0xff]
    %v166 = vld [vmem:[#allocation6 + $0x608] sm:$0xff]
    %v167 = vld [vmem:[#allocation6 + $0x630] sm:$0xff]
    %v168 = vld [vmem:[#allocation6 + $0x638] sm:$0xff]
    %v169 = vld [vmem:[#allocation6 + $0x660] sm:$0xff]
    %v170 = vld [vmem:[#allocation6 + $0x668] sm:$0xff]
    %v171 = vld [vmem:[#allocation6 + $0x690] sm:$0xff]
    %v172 = vld [vmem:[#allocation6 + $0x698] sm:$0xff]
    %v173 = vld [vmem:[#allocation6 + $0x6c0] sm:$0xff]
    %v174 = vld [vmem:[#allocation6 + $0x6c8] sm:$0xff]
    %v175 = vld [vmem:[#allocation6 + $0x6f0] sm:$0xff]
    %v176 = vld [vmem:[#allocation6 + $0x6f8] sm:$0xff]
    %v177 = vld [vmem:[#allocation6 + $0x720] sm:$0xff]
    %v178 = vld [vmem:[#allocation6 + $0x728] sm:$0xff]
    %v179 = vld [vmem:[#allocation6 + $0x750] sm:$0xff]
    %v180 = vld [vmem:[#allocation6 + $0x758] sm:$0xff]
    %v181 = vld [vmem:[#allocation6 + $0x780] sm:$0xff]
    %v182 = vld [vmem:[#allocation6 + $0x788] sm:$0xff]
    %v183 = vld [vmem:[#allocation6 + $0x7b0] sm:$0xff]
    %v184 = vld [vmem:[#allocation6 + $0x7b8] sm:$0xff]
    %v185 = vld [vmem:[#allocation6 + $0x7e0] sm:$0xff]
    %v186 = vld [vmem:[#allocation6 + $0x7e8] sm:$0xff]
    %v187 = vld [vmem:[#allocation6 + $0x810] sm:$0xff]
    %v188 = vld [vmem:[#allocation6 + $0x818] sm:$0xff]
    %v189 = vld [vmem:[#allocation6 + $0x840] sm:$0xff]
    %v190 = vld [vmem:[#allocation6 + $0x848] sm:$0xff]
    %v191 = vld [vmem:[#allocation6 + $0x870] sm:$0xff]
    %v192 = vld [vmem:[#allocation6 + $0x878] sm:$0xff]
    %v193 = vld [vmem:[#allocation6 + $0x8a0] sm:$0xff]
    %v194 = vld [vmem:[#allocation6 + $0x8a8] sm:$0xff]
    %v195 = vld [vmem:[#allocation6 + $0x8d0] sm:$0xff]
    %v196 = vld [vmem:[#allocation6 + $0x8d8] sm:$0xff]
    %v197 = vld [vmem:[#allocation8] sm:$0xf]
    %s198 = smul.u32 0, 3
    %s199 = smul.addr %s198, 4
    %s200 = scalar_lea.vmem [#allocation9], %s199
    %v201 = vld [vmem:[%s200] sm:$0xff]
    %v202 = vld [vmem:[%s200 + $0x8] sm:$0xf]
    %v203 = vld [vmem:[%s200 + $0xc] sm:$0xff]
    %v204 = vld [vmem:[%s200 + $0x14] sm:$0xf]
    %v205 = vld [vmem:[%s200 + $0x18] sm:$0xff]
    %v206 = vld [vmem:[%s200 + $0x20] sm:$0xf]
    %v207 = vld [vmem:[%s200 + $0x24] sm:$0xff]
    %v208 = vld [vmem:[%s200 + $0x2c] sm:$0xf]
    %v209 = vld [vmem:[%s200 + $0x30] sm:$0xff]
    %v210 = vld [vmem:[%s200 + $0x38] sm:$0xf]
    %v211 = vld [vmem:[%s200 + $0x3c] sm:$0xff]
    %v212 = vld [vmem:[%s200 + $0x44] sm:$0xf]
    %v213 = vld [vmem:[%s200 + $0x48] sm:$0xff]
    %v214 = vld [vmem:[%s200 + $0x50] sm:$0xf]
    %v215 = vld [vmem:[%s200 + $0x54] sm:$0xff]
    %v216 = vld [vmem:[%s200 + $0x5c] sm:$0xf]
    %v217 = vld [vmem:[%s200 + $0x60] sm:$0xff]
    %v218 = vld [vmem:[%s200 + $0x68] sm:$0xf]
    %v219 = vld [vmem:[%s200 + $0x6c] sm:$0xff]
    %v220 = vld [vmem:[%s200 + $0x74] sm:$0xf]
    %v221 = vld [vmem:[%s200 + $0x78] sm:$0xff]
    %v222 = vld [vmem:[%s200 + $0x80] sm:$0xf]
    %v223 = vld [vmem:[%s200 + $0x84] sm:$0xff]
    %v224 = vld [vmem:[%s200 + $0x8c] sm:$0xf]
    %v225 = vld [vmem:[%s200 + $0x90] sm:$0xff]
    %v226 = vld [vmem:[%s200 + $0x98] sm:$0xf]
    %v227 = vld [vmem:[%s200 + $0x9c] sm:$0xff]
    %v228 = vld [vmem:[%s200 + $0xa4] sm:$0xf]
    %v229 = vld [vmem:[%s200 + $0xa8] sm:$0xff]
    %v230 = vld [vmem:[%s200 + $0xb0] sm:$0xf]
    %v231 = vld [vmem:[%s200 + $0xb4] sm:$0xff]
    %v232 = vld [vmem:[%s200 + $0xbc] sm:$0xf]
    %v233 = vld [vmem:[%s200 + $0xc0] sm:$0xff]
    %v234 = vld [vmem:[%s200 + $0xc8] sm:$0xf]
    %v235 = vld [vmem:[%s200 + $0xcc] sm:$0xff]
    %v236 = vld [vmem:[%s200 + $0xd4] sm:$0xf]
    %v237 = vld [vmem:[%s200 + $0xd8] sm:$0xff]
    %v238 = vld [vmem:[%s200 + $0xe0] sm:$0xf]
    %v239 = vld [vmem:[%s200 + $0xe4] sm:$0xff]
    %v240 = vld [vmem:[%s200 + $0xec] sm:$0xf]
    %v241 = vld [vmem:[%s200 + $0xf0] sm:$0xff]
    %v242 = vld [vmem:[%s200 + $0xf8] sm:$0xf]
    %v243 = vld [vmem:[%s200 + $0xfc] sm:$0xff]
    %v244 = vld [vmem:[%s200 + $0x104] sm:$0xf]
    %v245 = vld [vmem:[%s200 + $0x108] sm:$0xff]
    %v246 = vld [vmem:[%s200 + $0x110] sm:$0xf]
    %v247 = vld [vmem:[%s200 + $0x114] sm:$0xff]
    %v248 = vld [vmem:[%s200 + $0x11c] sm:$0xf]
    %v249 = vld [vmem:[%s200 + $0x120] sm:$0xff]
    %v250 = vld [vmem:[%s200 + $0x128] sm:$0xf]
    %v251 = vld [vmem:[%s200 + $0x12c] sm:$0xff]
    %v252 = vld [vmem:[%s200 + $0x134] sm:$0xf]
    %v253 = vld [vmem:[%s200 + $0x138] sm:$0xff]
    %v254 = vld [vmem:[%s200 + $0x140] sm:$0xf]
    %v255 = vld [vmem:[%s200 + $0x144] sm:$0xff]
    %v256 = vld [vmem:[%s200 + $0x14c] sm:$0xf]
    %v257 = vld [vmem:[%s200 + $0x150] sm:$0xff]
    %v258 = vld [vmem:[%s200 + $0x158] sm:$0xf]
    %v259 = vld [vmem:[%s200 + $0x15c] sm:$0xff]
    %v260 = vld [vmem:[%s200 + $0x164] sm:$0xf]
    %v261 = vld [vmem:[%s200 + $0x168] sm:$0xff]
    %v262 = vld [vmem:[%s200 + $0x170] sm:$0xf]
    %v263 = vld [vmem:[%s200 + $0x174] sm:$0xff]
    %v264 = vld [vmem:[%s200 + $0x17c] sm:$0xf]
    %v265 = vld [vmem:[%s200 + $0x180] sm:$0xff]
    %v266 = vld [vmem:[%s200 + $0x188] sm:$0xf]
    %v267 = vld [vmem:[%s200 + $0x18c] sm:$0xff]
    %v268 = vld [vmem:[%s200 + $0x194] sm:$0xf]
    %v269 = vld [vmem:[%s200 + $0x198] sm:$0xff]
    %v270 = vld [vmem:[%s200 + $0x1a0] sm:$0xf]
    %v271 = vld [vmem:[%s200 + $0x1a4] sm:$0xff]
    %v272 = vld [vmem:[%s200 + $0x1ac] sm:$0xf]
    %v273 = vld [vmem:[%s200 + $0x1b0] sm:$0xff]
    %v274 = vld [vmem:[%s200 + $0x1b8] sm:$0xf]
    %v275 = vld [vmem:[%s200 + $0x1bc] sm:$0xff]
    %v276 = vld [vmem:[%s200 + $0x1c4] sm:$0xf]
    %v277 = vld [vmem:[%s200 + $0x1c8] sm:$0xff]
    %v278 = vld [vmem:[%s200 + $0x1d0] sm:$0xf]
    %v279 = vld [vmem:[%s200 + $0x1d4] sm:$0xff]
    %v280 = vld [vmem:[%s200 + $0x1dc] sm:$0xf]
    %v281 = vld [vmem:[%s200 + $0x1e0] sm:$0xff]
    %v282 = vld [vmem:[%s200 + $0x1e8] sm:$0xf]
    %v283 = vld [vmem:[%s200 + $0x1ec] sm:$0xff]
    %v284 = vld [vmem:[%s200 + $0x1f4] sm:$0xf]
    %v285 = vld [vmem:[%s200 + $0x1f8] sm:$0xff]
    %v286 = vld [vmem:[%s200 + $0x200] sm:$0xf]
    %v287 = vld [vmem:[%s200 + $0x204] sm:$0xff]
    %v288 = vld [vmem:[%s200 + $0x20c] sm:$0xf]
    %v289 = vld [vmem:[%s200 + $0x210] sm:$0xff]
    %v290 = vld [vmem:[%s200 + $0x218] sm:$0xf]
    %v291 = vld [vmem:[%s200 + $0x21c] sm:$0xff]
    %v292 = vld [vmem:[%s200 + $0x224] sm:$0xf]
    %v293 = vld [vmem:[%s200 + $0x228] sm:$0xff]
    %v294 = vld [vmem:[%s200 + $0x230] sm:$0xf]
    %v295 = vld [vmem:[%s200 + $0x234] sm:$0xff]
    %v296 = vld [vmem:[%s200 + $0x23c] sm:$0xf]
    %v297 = vld [vmem:[%s200 + $0x240] sm:$0xff]
    %v298 = vld [vmem:[%s200 + $0x248] sm:$0xf]
    %v299 = vld [vmem:[%s200 + $0x24c] sm:$0xff]
    %v300 = vld [vmem:[%s200 + $0x254] sm:$0xf]
    %v301 = vld [vmem:[%s200 + $0x258] sm:$0xff]
    %v302 = vld [vmem:[%s200 + $0x260] sm:$0xf]
    %v303 = vld [vmem:[%s200 + $0x264] sm:$0xff]
    %v304 = vld [vmem:[%s200 + $0x26c] sm:$0xf]
    %v305 = vld [vmem:[%s200 + $0x270] sm:$0xff]
    %v306 = vld [vmem:[%s200 + $0x278] sm:$0xf]
    %v307 = vld [vmem:[%s200 + $0x27c] sm:$0xff]
    %v308 = vld [vmem:[%s200 + $0x284] sm:$0xf]
    %v309 = vld [vmem:[%s200 + $0x288] sm:$0xff]
    %v310 = vld [vmem:[%s200 + $0x290] sm:$0xf]
    %v311 = vld [vmem:[%s200 + $0x294] sm:$0xff]
    %v312 = vld [vmem:[%s200 + $0x29c] sm:$0xf]
    %v313 = vld [vmem:[%s200 + $0x2a0] sm:$0xff]
    %v314 = vld [vmem:[%s200 + $0x2a8] sm:$0xf]
    %v315 = vld [vmem:[%s200 + $0x2ac] sm:$0xff]
    %v316 = vld [vmem:[%s200 + $0x2b4] sm:$0xf]
    %v317 = vld [vmem:[%s200 + $0x2b8] sm:$0xff]
    %v318 = vld [vmem:[%s200 + $0x2c0] sm:$0xf]
    %v319 = vld [vmem:[%s200 + $0x2c4] sm:$0xff]
    %v320 = vld [vmem:[%s200 + $0x2cc] sm:$0xf]
    %v321 = vld [vmem:[%s200 + $0x2d0] sm:$0xff]
    %v322 = vld [vmem:[%s200 + $0x2d8] sm:$0xf]
    %v323 = vld [vmem:[%s200 + $0x2dc] sm:$0xff]
    %v324 = vld [vmem:[%s200 + $0x2e4] sm:$0xf]
    %v325 = vld [vmem:[%s200 + $0x2e8] sm:$0xff]
    %v326 = vld [vmem:[%s200 + $0x2f0] sm:$0xf]
    %v327 = vld [vmem:[%s200 + $0x2f4] sm:$0xff]
    %v328 = vld [vmem:[%s200 + $0x2fc] sm:$0xf]
    %v330 = vlaneseq
    %v331 = vshrl.u32 %v330, 7
    %v332 = vsub.s32 0, %v331
    %v333 = vrot.slane %v197, %v332
    %v334 = vlaneseq
    %v335 = vshrl.u32 %v334, 7
    %v336 = vsub.s32 1, %v335
    %v337 = vrot.slane %v197, %v336
    %v338 = vlaneseq
    %v339 = vshrl.u32 %v338, 7
    %v340 = vsub.s32 2, %v339
    %v341 = vrot.slane %v197, %v340
    %v342 = vlaneseq
    %v343 = vshrl.u32 %v342, 7
    %v344 = vsub.s32 3, %v343
    %v345 = vrot.slane %v197, %v344
    %v446 = vunpack.c.l.b16 %v101
    %v447 = vunpack.c.h.b16 %v101
    %v448 = vunpack.c.l.b16 %v102
    %v449 = vunpack.c.h.b16 %v102
    %v450 = vunpack.c.l.b16 %v103
    %v451 = vunpack.c.h.b16 %v103
    %v452 = vunpack.c.l.b16 %v104
    %v453 = vunpack.c.h.b16 %v104
    %v454 = vunpack.c.l.b16 %v105
    %v455 = vunpack.c.h.b16 %v105
    %v456 = vunpack.c.l.b16 %v106
    %v457 = vunpack.c.h.b16 %v106
    %v458 = vunpack.c.l.b16 %v107
    %v459 = vunpack.c.h.b16 %v107
    %v460 = vunpack.c.l.b16 %v108
    %v461 = vunpack.c.h.b16 %v108
    %v462 = vunpack.c.l.b16 %v109
    %v463 = vunpack.c.h.b16 %v109
    %v464 = vunpack.c.l.b16 %v110
    %v465 = vunpack.c.h.b16 %v110
    %v466 = vunpack.c.l.b16 %v111
    %v467 = vunpack.c.h.b16 %v111
    %v468 = vunpack.c.l.b16 %v112
    %v469 = vunpack.c.h.b16 %v112
    %v470 = vunpack.c.l.b16 %v113
    %v471 = vunpack.c.h.b16 %v113
    %v472 = vunpack.c.l.b16 %v114
    %v473 = vunpack.c.h.b16 %v114
    %v474 = vunpack.c.l.b16 %v115
    %v475 = vunpack.c.h.b16 %v115
    %v476 = vunpack.c.l.b16 %v116
    %v477 = vunpack.c.h.b16 %v116
    %v478 = vunpack.c.l.b16 %v117
    %v479 = vunpack.c.h.b16 %v117
    %v480 = vunpack.c.l.b16 %v118
    %v481 = vunpack.c.h.b16 %v118
    %v482 = vunpack.c.l.b16 %v119
    %v483 = vunpack.c.h.b16 %v119
    %v484 = vunpack.c.l.b16 %v120
    %v485 = vunpack.c.h.b16 %v120
    %v486 = vunpack.c.l.b16 %v121
    %v487 = vunpack.c.h.b16 %v121
    %v488 = vunpack.c.l.b16 %v122
    %v489 = vunpack.c.h.b16 %v122
    %v490 = vunpack.c.l.b16 %v123
    %v491 = vunpack.c.h.b16 %v123
    %v492 = vunpack.c.l.b16 %v124
    %v493 = vunpack.c.h.b16 %v124
    %v494 = vunpack.c.l.b16 %v125
    %v495 = vunpack.c.h.b16 %v125
    %v496 = vunpack.c.l.b16 %v126
    %v497 = vunpack.c.h.b16 %v126
    %v498 = vunpack.c.l.b16 %v127
    %v499 = vunpack.c.h.b16 %v127
    %v500 = vunpack.c.l.b16 %v128
    %v501 = vunpack.c.h.b16 %v128
    %v502 = vunpack.c.l.b16 %v129
    %v503 = vunpack.c.h.b16 %v129
    %v504 = vunpack.c.l.b16 %v130
    %v505 = vunpack.c.h.b16 %v130
    %v506 = vunpack.c.l.b16 %v131
    %v507 = vunpack.c.h.b16 %v131
    %v508 = vunpack.c.l.b16 %v132
    %v509 = vunpack.c.h.b16 %v132
    %v510 = vunpack.c.l.b16 %v133
    %v511 = vunpack.c.h.b16 %v133
    %v512 = vunpack.c.l.b16 %v134
    %v513 = vunpack.c.h.b16 %v134
    %v514 = vunpack.c.l.b16 %v135
    %v515 = vunpack.c.h.b16 %v135
    %v516 = vunpack.c.l.b16 %v136
    %v517 = vunpack.c.h.b16 %v136
    %v518 = vunpack.c.l.b16 %v137
    %v519 = vunpack.c.h.b16 %v137
    %v520 = vunpack.c.l.b16 %v138
    %v521 = vunpack.c.h.b16 %v138
    %v522 = vunpack.c.l.b16 %v139
    %v523 = vunpack.c.h.b16 %v139
    %v524 = vunpack.c.l.b16 %v140
    %v525 = vunpack.c.h.b16 %v140
    %v526 = vunpack.c.l.b16 %v141
    %v527 = vunpack.c.h.b16 %v141
    %v528 = vunpack.c.l.b16 %v142
    %v529 = vunpack.c.h.b16 %v142
    %v530 = vunpack.c.l.b16 %v143
    %v531 = vunpack.c.h.b16 %v143
    %v532 = vunpack.c.l.b16 %v144
    %v533 = vunpack.c.h.b16 %v144
    %v534 = vunpack.c.l.b16 %v145
    %v535 = vunpack.c.h.b16 %v145
    %v536 = vunpack.c.l.b16 %v146
    %v537 = vunpack.c.h.b16 %v146
    %v538 = vunpack.c.l.b16 %v147
    %v539 = vunpack.c.h.b16 %v147
    %v540 = vunpack.c.l.b16 %v148
    %v541 = vunpack.c.h.b16 %v148
    %v542 = vunpack.c.l.b16 %v149
    %v543 = vunpack.c.h.b16 %v149
    %v544 = vunpack.c.l.b16 %v150
    %v545 = vunpack.c.h.b16 %v150
    %v546 = vunpack.c.l.b16 %v151
    %v547 = vunpack.c.h.b16 %v151
    %v548 = vunpack.c.l.b16 %v152
    %v549 = vunpack.c.h.b16 %v152
    %v550 = vunpack.c.l.b16 %v153
    %v551 = vunpack.c.h.b16 %v153
    %v552 = vunpack.c.l.b16 %v154
    %v553 = vunpack.c.h.b16 %v154
    %v554 = vunpack.c.l.b16 %v155
    %v555 = vunpack.c.h.b16 %v155
    %v556 = vunpack.c.l.b16 %v156
    %v557 = vunpack.c.h.b16 %v156
    %v558 = vunpack.c.l.b16 %v157
    %v559 = vunpack.c.h.b16 %v157
    %v560 = vunpack.c.l.b16 %v158
    %v561 = vunpack.c.h.b16 %v158
    %v562 = vunpack.c.l.b16 %v159
    %v563 = vunpack.c.h.b16 %v159
    %v564 = vunpack.c.l.b16 %v160
    %v565 = vunpack.c.h.b16 %v160
    %v566 = vunpack.c.l.b16 %v161
    %v567 = vunpack.c.h.b16 %v161
    %v568 = vunpack.c.l.b16 %v162
    %v569 = vunpack.c.h.b16 %v162
    %v570 = vunpack.c.l.b16 %v163
    %v571 = vunpack.c.h.b16 %v163
    %v572 = vunpack.c.l.b16 %v164
    %v573 = vunpack.c.h.b16 %v164
    %v574 = vunpack.c.l.b16 %v165
    %v575 = vunpack.c.h.b16 %v165
    %v576 = vunpack.c.l.b16 %v166
    %v577 = vunpack.c.h.b16 %v166
    %v578 = vunpack.c.l.b16 %v167
    %v579 = vunpack.c.h.b16 %v167
    %v580 = vunpack.c.l.b16 %v168
    %v581 = vunpack.c.h.b16 %v168
    %v582 = vunpack.c.l.b16 %v169
    %v583 = vunpack.c.h.b16 %v169
    %v584 = vunpack.c.l.b16 %v170
    %v585 = vunpack.c.h.b16 %v170
    %v586 = vunpack.c.l.b16 %v171
    %v587 = vunpack.c.h.b16 %v171
    %v588 = vunpack.c.l.b16 %v172
    %v589 = vunpack.c.h.b16 %v172
    %v590 = vunpack.c.l.b16 %v173
    %v591 = vunpack.c.h.b16 %v173
    %v592 = vunpack.c.l.b16 %v174
    %v593 = vunpack.c.h.b16 %v174
    %v594 = vunpack.c.l.b16 %v175
    %v595 = vunpack.c.h.b16 %v175
    %v596 = vunpack.c.l.b16 %v176
    %v597 = vunpack.c.h.b16 %v176
    %v598 = vunpack.c.l.b16 %v177
    %v599 = vunpack.c.h.b16 %v177
    %v600 = vunpack.c.l.b16 %v178
    %v601 = vunpack.c.h.b16 %v178
    %v602 = vunpack.c.l.b16 %v179
    %v603 = vunpack.c.h.b16 %v179
    %v604 = vunpack.c.l.b16 %v180
    %v605 = vunpack.c.h.b16 %v180
    %v606 = vunpack.c.l.b16 %v181
    %v607 = vunpack.c.h.b16 %v181
    %v608 = vunpack.c.l.b16 %v182
    %v609 = vunpack.c.h.b16 %v182
    %v610 = vunpack.c.l.b16 %v183
    %v611 = vunpack.c.h.b16 %v183
    %v612 = vunpack.c.l.b16 %v184
    %v613 = vunpack.c.h.b16 %v184
    %v614 = vunpack.c.l.b16 %v185
    %v615 = vunpack.c.h.b16 %v185
    %v616 = vunpack.c.l.b16 %v186
    %v617 = vunpack.c.h.b16 %v186
    %v618 = vunpack.c.l.b16 %v187
    %v619 = vunpack.c.h.b16 %v187
    %v620 = vunpack.c.l.b16 %v188
    %v621 = vunpack.c.h.b16 %v188
    %v622 = vunpack.c.l.b16 %v189
    %v623 = vunpack.c.h.b16 %v189
    %v624 = vunpack.c.l.b16 %v190
    %v625 = vunpack.c.h.b16 %v190
    %v626 = vunpack.c.l.b16 %v191
    %v627 = vunpack.c.h.b16 %v191
    %v628 = vunpack.c.l.b16 %v192
    %v629 = vunpack.c.h.b16 %v192
    %v630 = vunpack.c.l.b16 %v193
    %v631 = vunpack.c.h.b16 %v193
    %v632 = vunpack.c.l.b16 %v194
    %v633 = vunpack.c.h.b16 %v194
    %v634 = vunpack.c.l.b16 %v195
    %v635 = vunpack.c.h.b16 %v195
    %v636 = vunpack.c.l.b16 %v196
    %v637 = vunpack.c.h.b16 %v196
    %v638 = vpack.c.b16 %v450, %v446
    %v639 = vpack.c.b16 %v451, %v447
    %v640 = vpack.c.b16 %v452, %v448
    %v641 = vpack.c.b16 %v453, %v449
    %v642 = vpack.c.b16 %v458, %v454
    %v643 = vpack.c.b16 %v459, %v455
    %v644 = vpack.c.b16 %v460, %v456
    %v645 = vpack.c.b16 %v461, %v457
    %v646 = vpack.c.b16 %v466, %v462
    %v647 = vpack.c.b16 %v467, %v463
    %v648 = vpack.c.b16 %v468, %v464
    %v649 = vpack.c.b16 %v469, %v465
    %v650 = vpack.c.b16 %v474, %v470
    %v651 = vpack.c.b16 %v475, %v471
    %v652 = vpack.c.b16 %v476, %v472
    %v653 = vpack.c.b16 %v477, %v473
    %v654 = vpack.c.b16 %v482, %v478
    %v655 = vpack.c.b16 %v483, %v479
    %v656 = vpack.c.b16 %v484, %v480
    %v657 = vpack.c.b16 %v485, %v481
    %v658 = vpack.c.b16 %v490, %v486
    %v659 = vpack.c.b16 %v491, %v487
    %v660 = vpack.c.b16 %v492, %v488
    %v661 = vpack.c.b16 %v493, %v489
    %v662 = vpack.c.b16 %v498, %v494
    %v663 = vpack.c.b16 %v499, %v495
    %v664 = vpack.c.b16 %v500, %v496
    %v665 = vpack.c.b16 %v501, %v497
    %v666 = vpack.c.b16 %v506, %v502
    %v667 = vpack.c.b16 %v507, %v503
    %v668 = vpack.c.b16 %v508, %v504
    %v669 = vpack.c.b16 %v509, %v505
    %v670 = vpack.c.b16 %v514, %v510
    %v671 = vpack.c.b16 %v515, %v511
    %v672 = vpack.c.b16 %v516, %v512
    %v673 = vpack.c.b16 %v517, %v513
    %v674 = vpack.c.b16 %v522, %v518
    %v675 = vpack.c.b16 %v523, %v519
    %v676 = vpack.c.b16 %v524, %v520
    %v677 = vpack.c.b16 %v525, %v521
    %v678 = vpack.c.b16 %v530, %v526
    %v679 = vpack.c.b16 %v531, %v527
    %v680 = vpack.c.b16 %v532, %v528
    %v681 = vpack.c.b16 %v533, %v529
    %v682 = vpack.c.b16 %v538, %v534
    %v683 = vpack.c.b16 %v539, %v535
    %v684 = vpack.c.b16 %v540, %v536
    %v685 = vpack.c.b16 %v541, %v537
    %v686 = vpack.c.b16 %v546, %v542
    %v687 = vpack.c.b16 %v547, %v543
    %v688 = vpack.c.b16 %v548, %v544
    %v689 = vpack.c.b16 %v549, %v545
    %v690 = vpack.c.b16 %v554, %v550
    %v691 = vpack.c.b16 %v555, %v551
    %v692 = vpack.c.b16 %v556, %v552
    %v693 = vpack.c.b16 %v557, %v553
    %v694 = vpack.c.b16 %v562, %v558
    %v695 = vpack.c.b16 %v563, %v559
    %v696 = vpack.c.b16 %v564, %v560
    %v697 = vpack.c.b16 %v565, %v561
    %v698 = vpack.c.b16 %v570, %v566
    %v699 = vpack.c.b16 %v571, %v567
    %v700 = vpack.c.b16 %v572, %v568
    %v701 = vpack.c.b16 %v573, %v569
    %v702 = vpack.c.b16 %v578, %v574
    %v703 = vpack.c.b16 %v579, %v575
    %v704 = vpack.c.b16 %v580, %v576
    %v705 = vpack.c.b16 %v581, %v577
    %v706 = vpack.c.b16 %v586, %v582
    %v707 = vpack.c.b16 %v587, %v583
    %v708 = vpack.c.b16 %v588, %v584
    %v709 = vpack.c.b16 %v589, %v585
    %v710 = vpack.c.b16 %v594, %v590
    %v711 = vpack.c.b16 %v595, %v591
    %v712 = vpack.c.b16 %v596, %v592
    %v713 = vpack.c.b16 %v597, %v593
    %v714 = vpack.c.b16 %v602, %v598
    %v715 = vpack.c.b16 %v603, %v599
    %v716 = vpack.c.b16 %v604, %v600
    %v717 = vpack.c.b16 %v605, %v601
    %v718 = vpack.c.b16 %v610, %v606
    %v719 = vpack.c.b16 %v611, %v607
    %v720 = vpack.c.b16 %v612, %v608
    %v721 = vpack.c.b16 %v613, %v609
    %v722 = vpack.c.b16 %v618, %v614
    %v723 = vpack.c.b16 %v619, %v615
    %v724 = vpack.c.b16 %v620, %v616
    %v725 = vpack.c.b16 %v621, %v617
    %v726 = vpack.c.b16 %v626, %v622
    %v727 = vpack.c.b16 %v627, %v623
    %v728 = vpack.c.b16 %v628, %v624
    %v729 = vpack.c.b16 %v629, %v625
    %v730 = vpack.c.b16 %v634, %v630
    %v731 = vpack.c.b16 %v635, %v631
    %v732 = vpack.c.b16 %v636, %v632
    %v733 = vpack.c.b16 %v637, %v633
    %830 = vmatprep.subr.bf16.mxu0 %v639
    %831 = vmatpush1.bf16.msra.mxu0 %v638
    %832 = vmatprep.subr.bf16.mxu0 %v643
    %833 = vmatpush1.bf16.msra.mxu0 %v642
    %834 = vmatprep.subr.bf16.mxu0 %v647
    %835 = vmatpush1.bf16.msra.mxu0 %v646
    %836 = vmatprep.subr.bf16.mxu0 %v651
    %837 = vmatpush1.bf16.msra.mxu0 %v650
    %838 = vmatprep.subr.bf16.mxu0 %v655
    %839 = vmatpush1.bf16.msra.mxu0 %v654
    %840 = vmatprep.subr.bf16.mxu0 %v659
    %841 = vmatpush1.bf16.msra.mxu0 %v658
    %842 = vmatprep.subr.bf16.mxu0 %v663
    %843 = vmatpush1.bf16.msra.mxu0 %v662
    %844 = vmatprep.subr.bf16.mxu0 %v667
    %845 = vmatpush1.bf16.msra.mxu0 %v666
    %846 = vmatprep.subr.bf16.mxu0 %v671
    %847 = vmatpush1.bf16.msra.mxu0 %v670
    %848 = vmatprep.subr.bf16.mxu0 %v675
    %849 = vmatpush1.bf16.msra.mxu0 %v674
    %850 = vmatprep.subr.bf16.mxu0 %v679
    %851 = vmatpush1.bf16.msra.mxu0 %v678
    %852 = vmatprep.subr.bf16.mxu0 %v683
    %853 = vmatpush1.bf16.msra.mxu0 %v682
    %854 = vmatprep.subr.bf16.mxu0 %v687
    %855 = vmatpush1.bf16.msra.mxu0 %v686
    %856 = vmatprep.subr.bf16.mxu0 %v691
    %857 = vmatpush1.bf16.msra.mxu0 %v690
    %858 = vmatprep.subr.bf16.mxu0 %v695
    %859 = vmatpush1.bf16.msra.mxu0 %v694
    %860 = vmatprep.subr.bf16.mxu0 %v699
    %861 = vmatpush1.bf16.msra.mxu0 %v698
    %862 = vmatprep.mubr.bf16.mxu0 %v93
    %863 = vmatmul.mubr.bf16.gmra.mrb[0].mxu0 %v92
    %v864 = vpop.f32.mrb[0].mxu0
    %v865 = vadd.f32 %v333, %v864
    %v866 = vpop.f32.mrb[0].mxu0
    %v867 = vadd.f32 %v337, %v866
    %v868 = vpop.f32.mrb[0].mxu0
    %v869 = vadd.f32 %v333, %v868
    %v870 = vpop.f32.mrb[0].mxu0
    %v871 = vadd.f32 %v337, %v870
    %872 = vdwg.mxu0
    %873 = vmatprep.subr.bf16.mxu0 %v703
    %874 = vmatpush1.bf16.msra.mxu0 %v702
    %875 = vmatprep.subr.bf16.mxu0 %v707
    %876 = vmatpush1.bf16.msra.mxu0 %v706
    %877 = vmatprep.subr.bf16.mxu0 %v711
    %878 = vmatpush1.bf16.msra.mxu0 %v710
    %879 = vmatprep.subr.bf16.mxu0 %v715
    %880 = vmatpush1.bf16.msra.mxu0 %v714
    %881 = vmatprep.subr.bf16.mxu0 %v719
    %882 = vmatpush1.bf16.msra.mxu0 %v718
    %883 = vmatprep.subr.bf16.mxu0 %v723
    %884 = vmatpush1.bf16.msra.mxu0 %v722
    %885 = vmatprep.subr.bf16.mxu0 %v727
    %886 = vmatpush1.bf16.msra.mxu0 %v726
    %887 = vmatprep.subr.bf16.mxu0 %v731
    %888 = vmatpush1.bf16.msra.mxu0 %v730
    %889 = vmatprep.subr.bf16.mxu0 0
    %890 = vmatpush1.bf16.msra.mxu0 0
    %891 = vmatprep.subr.bf16.mxu0 0
    %892 = vmatpush1.bf16.msra.mxu0 0
    %893 = vmatprep.subr.bf16.mxu0 0
    %894 = vmatpush1.bf16.msra.mxu0 0
    %895 = vmatprep.subr.bf16.mxu0 0
    %896 = vmatpush1.bf16.msra.mxu0 0
    %897 = vmatprep.subr.bf16.mxu0 0
    %898 = vmatpush1.bf16.msra.mxu0 0
    %899 = vmatprep.subr.bf16.mxu0 0
    %900 = vmatpush1.bf16.msra.mxu0 0
    %901 = vmatprep.subr.bf16.mxu0 0
    %902 = vmatpush1.bf16.msra.mxu0 0
    %903 = vmatprep.subr.bf16.mxu0 0
    %904 = vmatpush1.bf16.msra.mxu0 0
    %905 = vmatprep.mubr.bf16.mxu0 0
    %906 = vmatmul.mubr.bf16.gmra.mrb[0].mxu0 %v94
    %v907 = vpop.f32.mrb[0].mxu0
    %v908 = vadd.f32 %v865, %v907
    %v909 = vpop.f32.mrb[0].mxu0
    %v910 = vadd.f32 %v867, %v909
    %v911 = vpop.f32.mrb[0].mxu0
    %v912 = vadd.f32 %v869, %v911
    %v913 = vpop.f32.mrb[0].mxu0
    %v914 = vadd.f32 %v871, %v913
    %915 = vdwg.mxu0
    %916 = vmatprep.subr.bf16.mxu0 %v641
    %917 = vmatpush1.bf16.msra.mxu0 %v640
    %918 = vmatprep.subr.bf16.mxu0 %v645
    %919 = vmatpush1.bf16.msra.mxu0 %v644
    %920 = vmatprep.subr.bf16.mxu0 %v649
    %921 = vmatpush1.bf16.msra.mxu0 %v648
    %922 = vmatprep.subr.bf16.mxu0 %v653
    %923 = vmatpush1.bf16.msra.mxu0 %v652
    %924 = vmatprep.subr.bf16.mxu0 %v657
    %925 = vmatpush1.bf16.msra.mxu0 %v656
    %926 = vmatprep.subr.bf16.mxu0 %v661
    %927 = vmatpush1.bf16.msra.mxu0 %v660
    %928 = vmatprep.subr.bf16.mxu0 %v665
    %929 = vmatpush1.bf16.msra.mxu0 %v664
    %930 = vmatprep.subr.bf16.mxu0 %v669
    %931 = vmatpush1.bf16.msra.mxu0 %v668
    %932 = vmatprep.subr.bf16.mxu0 %v673
    %933 = vmatpush1.bf16.msra.mxu0 %v672
    %934 = vmatprep.subr.bf16.mxu0 %v677
    %935 = vmatpush1.bf16.msra.mxu0 %v676
    %936 = vmatprep.subr.bf16.mxu0 %v681
    %937 = vmatpush1.bf16.msra.mxu0 %v680
    %938 = vmatprep.subr.bf16.mxu0 %v685
    %939 = vmatpush1.bf16.msra.mxu0 %v684
    %940 = vmatprep.subr.bf16.mxu0 %v689
    %941 = vmatpush1.bf16.msra.mxu0 %v688
    %942 = vmatprep.subr.bf16.mxu0 %v693
    %943 = vmatpush1.bf16.msra.mxu0 %v692
    %944 = vmatprep.subr.bf16.mxu0 %v697
    %945 = vmatpush1.bf16.msra.mxu0 %v696
    %946 = vmatprep.subr.bf16.mxu0 %v701
    %947 = vmatpush1.bf16.msra.mxu0 %v700
    %948 = vmatprep.mubr.bf16.mxu0 %v93
    %949 = vmatmul.mubr.bf16.gmra.mrb[0].mxu0 %v92
    %v950 = vpop.f32.mrb[0].mxu0
    %v951 = vadd.f32 %v341, %v950
    %v952 = vpop.f32.mrb[0].mxu0
    %v953 = vadd.f32 %v345, %v952
    %v954 = vpop.f32.mrb[0].mxu0
    %v955 = vadd.f32 %v341, %v954
    %v956 = vpop.f32.mrb[0].mxu0
    %v957 = vadd.f32 %v345, %v956
    %958 = vdwg.mxu0
    %959 = vmatprep.subr.bf16.mxu0 %v705
    %960 = vmatpush1.bf16.msra.mxu0 %v704
    %961 = vmatprep.subr.bf16.mxu0 %v709
    %962 = vmatpush1.bf16.msra.mxu0 %v708
    %963 = vmatprep.subr.bf16.mxu0 %v713
    %964 = vmatpush1.bf16.msra.mxu0 %v712
    %965 = vmatprep.subr.bf16.mxu0 %v717
    %966 = vmatpush1.bf16.msra.mxu0 %v716
    %967 = vmatprep.subr.bf16.mxu0 %v721
    %968 = vmatpush1.bf16.msra.mxu0 %v720
    %969 = vmatprep.subr.bf16.mxu0 %v725
    %970 = vmatpush1.bf16.msra.mxu0 %v724
    %971 = vmatprep.subr.bf16.mxu0 %v729
    %972 = vmatpush1.bf16.msra.mxu0 %v728
    %973 = vmatprep.subr.bf16.mxu0 %v733
    %974 = vmatpush1.bf16.msra.mxu0 %v732
    %975 = vmatprep.subr.bf16.mxu0 0
    %976 = vmatpush1.bf16.msra.mxu0 0
    %977 = vmatprep.subr.bf16.mxu0 0
    %978 = vmatpush1.bf16.msra.mxu0 0
    %979 = vmatprep.subr.bf16.mxu0 0
    %980 = vmatpush1.bf16.msra.mxu0 0
    %981 = vmatprep.subr.bf16.mxu0 0
    %982 = vmatpush1.bf16.msra.mxu0 0
    %983 = vmatprep.subr.bf16.mxu0 0
    %984 = vmatpush1.bf16.msra.mxu0 0
    %985 = vmatprep.subr.bf16.mxu0 0
    %986 = vmatpush1.bf16.msra.mxu0 0
    %987 = vmatprep.subr.bf16.mxu0 0
    %988 = vmatpush1.bf16.msra.mxu0 0
    %989 = vmatprep.subr.bf16.mxu0 0
    %990 = vmatpush1.bf16.msra.mxu0 0
    %991 = vmatprep.mubr.bf16.mxu0 0
    %992 = vmatmul.mubr.bf16.gmra.mrb[0].mxu0 %v94
    %v993 = vpop.f32.mrb[0].mxu0
    %v994 = vadd.f32 %v951, %v993
    %v995 = vpop.f32.mrb[0].mxu0
    %v996 = vadd.f32 %v953, %v995
    %v997 = vpop.f32.mrb[0].mxu0
    %v998 = vadd.f32 %v955, %v997
    %v999 = vpop.f32.mrb[0].mxu0
    %v1000 = vadd.f32 %v957, %v999
    %1001 = vdwg.mxu0
    %v1002 = vmax.f32 %v908, 0.0
    %v1003 = vmax.f32 %v910, 0.0
    %v1004 = vmax.f32 %v994, 0.0
    %v1005 = vmax.f32 %v996, 0.0
    %v1006 = vmax.f32 %v912, 0.0
    %v1007 = vmax.f32 %v914, 0.0
    %v1008 = vmax.f32 %v998, 0.0
    %v1009 = vmax.f32 %v1000, 0.0
    %v1010 = vld [vmem:[#allocation2] sm:$0xff]
    %v1011 = vld [vmem:[#allocation2 + $0x8] sm:$0xff]
    %v1012 = vld [vmem:[#allocation2 + $0x10] sm:$0xff]
    %v1013 = vld [vmem:[#allocation2 + $0x18] sm:$0xff]
    %v1014 = vld [vmem:[#allocation2 + $0x20] sm:$0xff]
    %v1015 = vld [vmem:[#allocation2 + $0x28] sm:$0xff]
    %v1016 = vpack.c.bf16 %v1006, %v1002
    %v1017 = vpack.c.bf16 %v1007, %v1003
    %v1018 = vpack.c.bf16 %v1008, %v1004
    %v1019 = vpack.c.bf16 %v1009, %v1005
    %v1148 = vunpack.c.l.b16 %v201
    %v1149 = vunpack.c.h.b16 %v201
    %v1150 = vunpack.c.l.b16 %v202
    %v1151 = vunpack.c.l.b16 %v203
    %v1152 = vunpack.c.h.b16 %v203
    %v1153 = vunpack.c.l.b16 %v204
    %v1154 = vunpack.c.l.b16 %v205
    %v1155 = vunpack.c.h.b16 %v205
    %v1156 = vunpack.c.l.b16 %v206
    %v1157 = vunpack.c.l.b16 %v207
    %v1158 = vunpack.c.h.b16 %v207
    %v1159 = vunpack.c.l.b16 %v208
    %v1160 = vunpack.c.l.b16 %v209
    %v1161 = vunpack.c.h.b16 %v209
    %v1162 = vunpack.c.l.b16 %v210
    %v1163 = vunpack.c.l.b16 %v211
    %v1164 = vunpack.c.h.b16 %v211
    %v1165 = vunpack.c.l.b16 %v212
    %v1166 = vunpack.c.l.b16 %v213
    %v1167 = vunpack.c.h.b16 %v213
    %v1168 = vunpack.c.l.b16 %v214
    %v1169 = vunpack.c.l.b16 %v215
    %v1170 = vunpack.c.h.b16 %v215
    %v1171 = vunpack.c.l.b16 %v216
    %v1172 = vunpack.c.l.b16 %v217
    %v1173 = vunpack.c.h.b16 %v217
    %v1174 = vunpack.c.l.b16 %v218
    %v1175 = vunpack.c.l.b16 %v219
    %v1176 = vunpack.c.h.b16 %v219
    %v1177 = vunpack.c.l.b16 %v220
    %v1178 = vunpack.c.l.b16 %v221
    %v1179 = vunpack.c.h.b16 %v221
    %v1180 = vunpack.c.l.b16 %v222
    %v1181 = vunpack.c.l.b16 %v223
    %v1182 = vunpack.c.h.b16 %v223
    %v1183 = vunpack.c.l.b16 %v224
    %v1184 = vunpack.c.l.b16 %v225
    %v1185 = vunpack.c.h.b16 %v225
    %v1186 = vunpack.c.l.b16 %v226
    %v1187 = vunpack.c.l.b16 %v227
    %v1188 = vunpack.c.h.b16 %v227
    %v1189 = vunpack.c.l.b16 %v228
    %v1190 = vunpack.c.l.b16 %v229
    %v1191 = vunpack.c.h.b16 %v229
    %v1192 = vunpack.c.l.b16 %v230
    %v1193 = vunpack.c.l.b16 %v231
    %v1194 = vunpack.c.h.b16 %v231
    %v1195 = vunpack.c.l.b16 %v232
    %v1196 = vunpack.c.l.b16 %v233
    %v1197 = vunpack.c.h.b16 %v233
    %v1198 = vunpack.c.l.b16 %v234
    %v1199 = vunpack.c.l.b16 %v235
    %v1200 = vunpack.c.h.b16 %v235
    %v1201 = vunpack.c.l.b16 %v236
    %v1202 = vunpack.c.l.b16 %v237
    %v1203 = vunpack.c.h.b16 %v237
    %v1204 = vunpack.c.l.b16 %v238
    %v1205 = vunpack.c.l.b16 %v239
    %v1206 = vunpack.c.h.b16 %v239
    %v1207 = vunpack.c.l.b16 %v240
    %v1208 = vunpack.c.l.b16 %v241
    %v1209 = vunpack.c.h.b16 %v241
    %v1210 = vunpack.c.l.b16 %v242
    %v1211 = vunpack.c.l.b16 %v243
    %v1212 = vunpack.c.h.b16 %v243
    %v1213 = vunpack.c.l.b16 %v244
    %v1214 = vunpack.c.l.b16 %v245
    %v1215 = vunpack.c.h.b16 %v245
    %v1216 = vunpack.c.l.b16 %v246
    %v1217 = vunpack.c.l.b16 %v247
    %v1218 = vunpack.c.h.b16 %v247
    %v1219 = vunpack.c.l.b16 %v248
    %v1220 = vunpack.c.l.b16 %v249
    %v1221 = vunpack.c.h.b16 %v249
    %v1222 = vunpack.c.l.b16 %v250
    %v1223 = vunpack.c.l.b16 %v251
    %v1224 = vunpack.c.h.b16 %v251
    %v1225 = vunpack.c.l.b16 %v252
    %v1226 = vunpack.c.l.b16 %v253
    %v1227 = vunpack.c.h.b16 %v253
    %v1228 = vunpack.c.l.b16 %v254
    %v1229 = vunpack.c.l.b16 %v255
    %v1230 = vunpack.c.h.b16 %v255
    %v1231 = vunpack.c.l.b16 %v256
    %v1232 = vunpack.c.l.b16 %v257
    %v1233 = vunpack.c.h.b16 %v257
    %v1234 = vunpack.c.l.b16 %v258
    %v1235 = vunpack.c.l.b16 %v259
    %v1236 = vunpack.c.h.b16 %v259
    %v1237 = vunpack.c.l.b16 %v260
    %v1238 = vunpack.c.l.b16 %v261
    %v1239 = vunpack.c.h.b16 %v261
    %v1240 = vunpack.c.l.b16 %v262
    %v1241 = vunpack.c.l.b16 %v263
    %v1242 = vunpack.c.h.b16 %v263
    %v1243 = vunpack.c.l.b16 %v264
    %v1244 = vunpack.c.l.b16 %v265
    %v1245 = vunpack.c.h.b16 %v265
    %v1246 = vunpack.c.l.b16 %v266
    %v1247 = vunpack.c.l.b16 %v267
    %v1248 = vunpack.c.h.b16 %v267
    %v1249 = vunpack.c.l.b16 %v268
    %v1250 = vunpack.c.l.b16 %v269
    %v1251 = vunpack.c.h.b16 %v269
    %v1252 = vunpack.c.l.b16 %v270
    %v1253 = vunpack.c.l.b16 %v271
    %v1254 = vunpack.c.h.b16 %v271
    %v1255 = vunpack.c.l.b16 %v272
    %v1256 = vunpack.c.l.b16 %v273
    %v1257 = vunpack.c.h.b16 %v273
    %v1258 = vunpack.c.l.b16 %v274
    %v1259 = vunpack.c.l.b16 %v275
    %v1260 = vunpack.c.h.b16 %v275
    %v1261 = vunpack.c.l.b16 %v276
    %v1262 = vunpack.c.l.b16 %v277
    %v1263 = vunpack.c.h.b16 %v277
    %v1264 = vunpack.c.l.b16 %v278
    %v1265 = vunpack.c.l.b16 %v279
    %v1266 = vunpack.c.h.b16 %v279
    %v1267 = vunpack.c.l.b16 %v280
    %v1268 = vunpack.c.l.b16 %v281
    %v1269 = vunpack.c.h.b16 %v281
    %v1270 = vunpack.c.l.b16 %v282
    %v1271 = vunpack.c.l.b16 %v283
    %v1272 = vunpack.c.h.b16 %v283
    %v1273 = vunpack.c.l.b16 %v284
    %v1274 = vunpack.c.l.b16 %v285
    %v1275 = vunpack.c.h.b16 %v285
    %v1276 = vunpack.c.l.b16 %v286
    %v1277 = vunpack.c.l.b16 %v287
    %v1278 = vunpack.c.h.b16 %v287
    %v1279 = vunpack.c.l.b16 %v288
    %v1280 = vunpack.c.l.b16 %v289
    %v1281 = vunpack.c.h.b16 %v289
    %v1282 = vunpack.c.l.b16 %v290
    %v1283 = vunpack.c.l.b16 %v291
    %v1284 = vunpack.c.h.b16 %v291
    %v1285 = vunpack.c.l.b16 %v292
    %v1286 = vunpack.c.l.b16 %v293
    %v1287 = vunpack.c.h.b16 %v293
    %v1288 = vunpack.c.l.b16 %v294
    %v1289 = vunpack.c.l.b16 %v295
    %v1290 = vunpack.c.h.b16 %v295
    %v1291 = vunpack.c.l.b16 %v296
    %v1292 = vunpack.c.l.b16 %v297
    %v1293 = vunpack.c.h.b16 %v297
    %v1294 = vunpack.c.l.b16 %v298
    %v1295 = vunpack.c.l.b16 %v299
    %v1296 = vunpack.c.h.b16 %v299
    %v1297 = vunpack.c.l.b16 %v300
    %v1298 = vunpack.c.l.b16 %v301
    %v1299 = vunpack.c.h.b16 %v301
    %v1300 = vunpack.c.l.b16 %v302
    %v1301 = vunpack.c.l.b16 %v303
    %v1302 = vunpack.c.h.b16 %v303
    %v1303 = vunpack.c.l.b16 %v304
    %v1304 = vunpack.c.l.b16 %v305
    %v1305 = vunpack.c.h.b16 %v305
    %v1306 = vunpack.c.l.b16 %v306
    %v1307 = vunpack.c.l.b16 %v307
    %v1308 = vunpack.c.h.b16 %v307
    %v1309 = vunpack.c.l.b16 %v308
    %v1310 = vunpack.c.l.b16 %v309
    %v1311 = vunpack.c.h.b16 %v309
    %v1312 = vunpack.c.l.b16 %v310
    %v1313 = vunpack.c.l.b16 %v311
    %v1314 = vunpack.c.h.b16 %v311
    %v1315 = vunpack.c.l.b16 %v312
    %v1316 = vunpack.c.l.b16 %v313
    %v1317 = vunpack.c.h.b16 %v313
    %v1318 = vunpack.c.l.b16 %v314
    %v1319 = vunpack.c.l.b16 %v315
    %v1320 = vunpack.c.h.b16 %v315
    %v1321 = vunpack.c.l.b16 %v316
    %v1322 = vunpack.c.l.b16 %v317
    %v1323 = vunpack.c.h.b16 %v317
    %v1324 = vunpack.c.l.b16 %v318
    %v1325 = vunpack.c.l.b16 %v319
    %v1326 = vunpack.c.h.b16 %v319
    %v1327 = vunpack.c.l.b16 %v320
    %v1328 = vunpack.c.l.b16 %v321
    %v1329 = vunpack.c.h.b16 %v321
    %v1330 = vunpack.c.l.b16 %v322
    %v1331 = vunpack.c.l.b16 %v323
    %v1332 = vunpack.c.h.b16 %v323
    %v1333 = vunpack.c.l.b16 %v324
    %v1334 = vunpack.c.l.b16 %v325
    %v1335 = vunpack.c.h.b16 %v325
    %v1336 = vunpack.c.l.b16 %v326
    %v1337 = vunpack.c.l.b16 %v327
    %v1338 = vunpack.c.h.b16 %v327
    %v1339 = vunpack.c.l.b16 %v328
    %v1340 = vpack.c.b16 %v1151, %v1148
    %v1341 = vpack.c.b16 %v1152, %v1149
    %v1342 = vpack.c.b16 %v1153, %v1150
    %v1343 = vpack.c.b16 %v1157, %v1154
    %v1344 = vpack.c.b16 %v1158, %v1155
    %v1345 = vpack.c.b16 %v1159, %v1156
    %v1346 = vpack.c.b16 %v1163, %v1160
    %v1347 = vpack.c.b16 %v1164, %v1161
    %v1348 = vpack.c.b16 %v1165, %v1162
    %v1349 = vpack.c.b16 %v1169, %v1166
    %v1350 = vpack.c.b16 %v1170, %v1167
    %v1351 = vpack.c.b16 %v1171, %v1168
    %v1352 = vpack.c.b16 %v1175, %v1172
    %v1353 = vpack.c.b16 %v1176, %v1173
    %v1354 = vpack.c.b16 %v1177, %v1174
    %v1355 = vpack.c.b16 %v1181, %v1178
    %v1356 = vpack.c.b16 %v1182, %v1179
    %v1357 = vpack.c.b16 %v1183, %v1180
    %v1358 = vpack.c.b16 %v1187, %v1184
    %v1359 = vpack.c.b16 %v1188, %v1185
    %v1360 = vpack.c.b16 %v1189, %v1186
    %v1361 = vpack.c.b16 %v1193, %v1190
    %v1362 = vpack.c.b16 %v1194, %v1191
    %v1363 = vpack.c.b16 %v1195, %v1192
    %v1364 = vpack.c.b16 %v1199, %v1196
    %v1365 = vpack.c.b16 %v1200, %v1197
    %v1366 = vpack.c.b16 %v1201, %v1198
    %v1367 = vpack.c.b16 %v1205, %v1202
    %v1368 = vpack.c.b16 %v1206, %v1203
    %v1369 = vpack.c.b16 %v1207, %v1204
    %v1370 = vpack.c.b16 %v1211, %v1208
    %v1371 = vpack.c.b16 %v1212, %v1209
    %v1372 = vpack.c.b16 %v1213, %v1210
    %v1373 = vpack.c.b16 %v1217, %v1214
    %v1374 = vpack.c.b16 %v1218, %v1215
    %v1375 = vpack.c.b16 %v1219, %v1216
    %v1376 = vpack.c.b16 %v1223, %v1220
    %v1377 = vpack.c.b16 %v1224, %v1221
    %v1378 = vpack.c.b16 %v1225, %v1222
    %v1379 = vpack.c.b16 %v1229, %v1226
    %v1380 = vpack.c.b16 %v1230, %v1227
    %v1381 = vpack.c.b16 %v1231, %v1228
    %v1382 = vpack.c.b16 %v1235, %v1232
    %v1383 = vpack.c.b16 %v1236, %v1233
    %v1384 = vpack.c.b16 %v1237, %v1234
    %v1385 = vpack.c.b16 %v1241, %v1238
    %v1386 = vpack.c.b16 %v1242, %v1239
    %v1387 = vpack.c.b16 %v1243, %v1240
    %v1388 = vpack.c.b16 %v1247, %v1244
    %v1389 = vpack.c.b16 %v1248, %v1245
    %v1390 = vpack.c.b16 %v1249, %v1246
    %v1391 = vpack.c.b16 %v1253, %v1250
    %v1392 = vpack.c.b16 %v1254, %v1251
    %v1393 = vpack.c.b16 %v1255, %v1252
    %v1394 = vpack.c.b16 %v1259, %v1256
    %v1395 = vpack.c.b16 %v1260, %v1257
    %v1396 = vpack.c.b16 %v1261, %v1258
    %v1397 = vpack.c.b16 %v1265, %v1262
    %v1398 = vpack.c.b16 %v1266, %v1263
    %v1399 = vpack.c.b16 %v1267, %v1264
    %v1400 = vpack.c.b16 %v1271, %v1268
    %v1401 = vpack.c.b16 %v1272, %v1269
    %v1402 = vpack.c.b16 %v1273, %v1270
    %v1403 = vpack.c.b16 %v1277, %v1274
    %v1404 = vpack.c.b16 %v1278, %v1275
    %v1405 = vpack.c.b16 %v1279, %v1276
    %v1406 = vpack.c.b16 %v1283, %v1280
    %v1407 = vpack.c.b16 %v1284, %v1281
    %v1408 = vpack.c.b16 %v1285, %v1282
    %v1409 = vpack.c.b16 %v1289, %v1286
    %v1410 = vpack.c.b16 %v1290, %v1287
    %v1411 = vpack.c.b16 %v1291, %v1288
    %v1412 = vpack.c.b16 %v1295, %v1292
    %v1413 = vpack.c.b16 %v1296, %v1293
    %v1414 = vpack.c.b16 %v1297, %v1294
    %v1415 = vpack.c.b16 %v1301, %v1298
    %v1416 = vpack.c.b16 %v1302, %v1299
    %v1417 = vpack.c.b16 %v1303, %v1300
    %v1418 = vpack.c.b16 %v1307, %v1304
    %v1419 = vpack.c.b16 %v1308, %v1305
    %v1420 = vpack.c.b16 %v1309, %v1306
    %v1421 = vpack.c.b16 %v1313, %v1310
    %v1422 = vpack.c.b16 %v1314, %v1311
    %v1423 = vpack.c.b16 %v1315, %v1312
    %v1424 = vpack.c.b16 %v1319, %v1316
    %v1425 = vpack.c.b16 %v1320, %v1317
    %v1426 = vpack.c.b16 %v1321, %v1318
    %v1427 = vpack.c.b16 %v1325, %v1322
    %v1428 = vpack.c.b16 %v1326, %v1323
    %v1429 = vpack.c.b16 %v1327, %v1324
    %v1430 = vpack.c.b16 %v1331, %v1328
    %v1431 = vpack.c.b16 %v1332, %v1329
    %v1432 = vpack.c.b16 %v1333, %v1330
    %v1433 = vpack.c.b16 %v1337, %v1334
    %v1434 = vpack.c.b16 %v1338, %v1335
    %v1435 = vpack.c.b16 %v1339, %v1336
    %1532 = vmatprep.subr.bf16.mxu0 %v1341
    %1533 = vmatpush1.bf16.msra.mxu0 %v1340
    %1534 = vmatprep.subr.bf16.mxu0 %v1344
    %1535 = vmatpush1.bf16.msra.mxu0 %v1343
    %1536 = vmatprep.subr.bf16.mxu0 %v1347
    %1537 = vmatpush1.bf16.msra.mxu0 %v1346
    %1538 = vmatprep.subr.bf16.mxu0 %v1350
    %1539 = vmatpush1.bf16.msra.mxu0 %v1349
    %1540 = vmatprep.subr.bf16.mxu0 %v1353
    %1541 = vmatpush1.bf16.msra.mxu0 %v1352
    %1542 = vmatprep.subr.bf16.mxu0 %v1356
    %1543 = vmatpush1.bf16.msra.mxu0 %v1355
    %1544 = vmatprep.subr.bf16.mxu0 %v1359
    %1545 = vmatpush1.bf16.msra.mxu0 %v1358
    %1546 = vmatprep.subr.bf16.mxu0 %v1362
    %1547 = vmatpush1.bf16.msra.mxu0 %v1361
    %1548 = vmatprep.subr.bf16.mxu0 %v1365
    %1549 = vmatpush1.bf16.msra.mxu0 %v1364
    %1550 = vmatprep.subr.bf16.mxu0 %v1368
    %1551 = vmatpush1.bf16.msra.mxu0 %v1367
    %1552 = vmatprep.subr.bf16.mxu0 %v1371
    %1553 = vmatpush1.bf16.msra.mxu0 %v1370
    %1554 = vmatprep.subr.bf16.mxu0 %v1374
    %1555 = vmatpush1.bf16.msra.mxu0 %v1373
    %1556 = vmatprep.subr.bf16.mxu0 %v1377
    %1557 = vmatpush1.bf16.msra.mxu0 %v1376
    %1558 = vmatprep.subr.bf16.mxu0 %v1380
    %1559 = vmatpush1.bf16.msra.mxu0 %v1379
    %1560 = vmatprep.subr.bf16.mxu0 %v1383
    %1561 = vmatpush1.bf16.msra.mxu0 %v1382
    %1562 = vmatprep.subr.bf16.mxu0 %v1386
    %1563 = vmatpush1.bf16.msra.mxu0 %v1385
    %1564 = vmatprep.mubr.bf16.mxu0 %v1017
    %1565 = vmatmul.mubr.bf16.gmra.mrb[0].mxu0 %v1016
    %v1566 = vpop.f32.mrb[0].mxu0
    %v1567 = vadd.f32 0.0, %v1566
    %v1568 = vpop.f32.mrb[0].mxu0
    %v1569 = vadd.f32 0.0, %v1568
    %v1570 = vpop.f32.mrb[0].mxu0
    %v1571 = vadd.f32 0.0, %v1570
    %v1572 = vpop.f32.mrb[0].mxu0
    %v1573 = vadd.f32 0.0, %v1572
    %1574 = vdwg.mxu0
    %1575 = vmatprep.subr.bf16.mxu0 %v1389
    %1576 = vmatpush1.bf16.msra.mxu0 %v1388
    %1577 = vmatprep.subr.bf16.mxu0 %v1392
    %1578 = vmatpush1.bf16.msra.mxu0 %v1391
    %1579 = vmatprep.subr.bf16.mxu0 %v1395
    %1580 = vmatpush1.bf16.msra.mxu0 %v1394
    %1581 = vmatprep.subr.bf16.mxu0 %v1398
    %1582 = vmatpush1.bf16.msra.mxu0 %v1397
    %1583 = vmatprep.subr.bf16.mxu0 %v1401
    %1584 = vmatpush1.bf16.msra.mxu0 %v1400
    %1585 = vmatprep.subr.bf16.mxu0 %v1404
    %1586 = vmatpush1.bf16.msra.mxu0 %v1403
    %1587 = vmatprep.subr.bf16.mxu0 %v1407
    %1588 = vmatpush1.bf16.msra.mxu0 %v1406
    %1589 = vmatprep.subr.bf16.mxu0 %v1410
    %1590 = vmatpush1.bf16.msra.mxu0 %v1409
    %1591 = vmatprep.subr.bf16.mxu0 %v1413
    %1592 = vmatpush1.bf16.msra.mxu0 %v1412
    %1593 = vmatprep.subr.bf16.mxu0 %v1416
    %1594 = vmatpush1.bf16.msra.mxu0 %v1415
    %1595 = vmatprep.subr.bf16.mxu0 %v1419
    %1596 = vmatpush1.bf16.msra.mxu0 %v1418
    %1597 = vmatprep.subr.bf16.mxu0 %v1422
    %1598 = vmatpush1.bf16.msra.mxu0 %v1421
    %1599 = vmatprep.subr.bf16.mxu0 %v1425
    %1600 = vmatpush1.bf16.msra.mxu0 %v1424
    %1601 = vmatprep.subr.bf16.mxu0 %v1428
    %1602 = vmatpush1.bf16.msra.mxu0 %v1427
    %1603 = vmatprep.subr.bf16.mxu0 %v1431
    %1604 = vmatpush1.bf16.msra.mxu0 %v1430
    %1605 = vmatprep.subr.bf16.mxu0 %v1434
    %1606 = vmatpush1.bf16.msra.mxu0 %v1433
    %1607 = vmatprep.mubr.bf16.mxu0 %v1019
    %1608 = vmatmul.mubr.bf16.gmra.mrb[0].mxu0 %v1018
    %v1609 = vpop.f32.mrb[0].mxu0
    %v1610 = vadd.f32 %v1567, %v1609
    %v1611 = vpop.f32.mrb[0].mxu0
    %v1612 = vadd.f32 %v1569, %v1611
    %v1613 = vpop.f32.mrb[0].mxu0
    %v1614 = vadd.f32 %v1571, %v1613
    %v1615 = vpop.f32.mrb[0].mxu0
    %v1616 = vadd.f32 %v1573, %v1615
    %1617 = vdwg.mxu0
    %1618 = vmatprep.subr.bf16.mxu0 0
    %1619 = vmatpush1.bf16.msra.mxu0 %v1342
    %1620 = vmatprep.subr.bf16.mxu0 0
    %1621 = vmatpush1.bf16.msra.mxu0 %v1345
    %1622 = vmatprep.subr.bf16.mxu0 0
    %1623 = vmatpush1.bf16.msra.mxu0 %v1348
    %1624 = vmatprep.subr.bf16.mxu0 0
    %1625 = vmatpush1.bf16.msra.mxu0 %v1351
    %1626 = vmatprep.subr.bf16.mxu0 0
    %1627 = vmatpush1.bf16.msra.mxu0 %v1354
    %1628 = vmatprep.subr.bf16.mxu0 0
    %1629 = vmatpush1.bf16.msra.mxu0 %v1357
    %1630 = vmatprep.subr.bf16.mxu0 0
    %1631 = vmatpush1.bf16.msra.mxu0 %v1360
    %1632 = vmatprep.subr.bf16.mxu0 0
    %1633 = vmatpush1.bf16.msra.mxu0 %v1363
    %1634 = vmatprep.subr.bf16.mxu0 0
    %1635 = vmatpush1.bf16.msra.mxu0 %v1366
    %1636 = vmatprep.subr.bf16.mxu0 0
    %1637 = vmatpush1.bf16.msra.mxu0 %v1369
    %1638 = vmatprep.subr.bf16.mxu0 0
    %1639 = vmatpush1.bf16.msra.mxu0 %v1372
    %1640 = vmatprep.subr.bf16.mxu0 0
    %1641 = vmatpush1.bf16.msra.mxu0 %v1375
    %1642 = vmatprep.subr.bf16.mxu0 0
    %1643 = vmatpush1.bf16.msra.mxu0 %v1378
    %1644 = vmatprep.subr.bf16.mxu0 0
    %1645 = vmatpush1.bf16.msra.mxu0 %v1381
    %1646 = vmatprep.subr.bf16.mxu0 0
    %1647 = vmatpush1.bf16.msra.mxu0 %v1384
    %1648 = vmatprep.subr.bf16.mxu0 0
    %1649 = vmatpush1.bf16.msra.mxu0 %v1387
    %1650 = vmatprep.mubr.bf16.mxu0 %v1017
    %1651 = vmatmul.mubr.bf16.gmra.mrb[0].mxu0 %v1016
    %v1652 = vpop.f32.mrb[0].mxu0
    %v1653 = vadd.f32 0.0, %v1652
    %v1654 = vpop.f32.mrb[0].mxu0
    %v1655 = vpop.f32.mrb[0].mxu0
    %v1656 = vadd.f32 0.0, %v1655
    %v1657 = vpop.f32.mrb[0].mxu0
    %1658 = vdwg.mxu0
    %1659 = vmatprep.subr.bf16.mxu0 0
    %1660 = vmatpush1.bf16.msra.mxu0 %v1390
    %1661 = vmatprep.subr.bf16.mxu0 0
    %1662 = vmatpush1.bf16.msra.mxu0 %v1393
    %1663 = vmatprep.subr.bf16.mxu0 0
    %1664 = vmatpush1.bf16.msra.mxu0 %v1396
    %1665 = vmatprep.subr.bf16.mxu0 0
    %1666 = vmatpush1.bf16.msra.mxu0 %v1399
    %1667 = vmatprep.subr.bf16.mxu0 0
    %1668 = vmatpush1.bf16.msra.mxu0 %v1402
    %1669 = vmatprep.subr.bf16.mxu0 0
    %1670 = vmatpush1.bf16.msra.mxu0 %v1405
    %1671 = vmatprep.subr.bf16.mxu0 0
    %1672 = vmatpush1.bf16.msra.mxu0 %v1408
    %1673 = vmatprep.subr.bf16.mxu0 0
    %1674 = vmatpush1.bf16.msra.mxu0 %v1411
    %1675 = vmatprep.subr.bf16.mxu0 0
    %1676 = vmatpush1.bf16.msra.mxu0 %v1414
    %1677 = vmatprep.subr.bf16.mxu0 0
    %1678 = vmatpush1.bf16.msra.mxu0 %v1417
    %1679 = vmatprep.subr.bf16.mxu0 0
    %1680 = vmatpush1.bf16.msra.mxu0 %v1420
    %1681 = vmatprep.subr.bf16.mxu0 0
    %1682 = vmatpush1.bf16.msra.mxu0 %v1423
    %1683 = vmatprep.subr.bf16.mxu0 0
    %1684 = vmatpush1.bf16.msra.mxu0 %v1426
    %1685 = vmatprep.subr.bf16.mxu0 0
    %1686 = vmatpush1.bf16.msra.mxu0 %v1429
    %1687 = vmatprep.subr.bf16.mxu0 0
    %1688 = vmatpush1.bf16.msra.mxu0 %v1432
    %1689 = vmatprep.subr.bf16.mxu0 0
    %1690 = vmatpush1.bf16.msra.mxu0 %v1435
    %1691 = vmatprep.mubr.bf16.mxu0 %v1019
    %1692 = vmatmul.mubr.bf16.gmra.mrb[0].mxu0 %v1018
    %v1693 = vpop.f32.mrb[0].mxu0
    %v1694 = vadd.f32 %v1653, %v1693
    %v1695 = vpop.f32.mrb[0].mxu0
    %v1696 = vpop.f32.mrb[0].mxu0
    %v1697 = vadd.f32 %v1656, %v1696
    %v1698 = vpop.f32.mrb[0].mxu0
    %1699 = vdwg.mxu0
    %v1700 = vadd.f32 %v1010, %v1610
    %v1701 = vadd.f32 %v1011, %v1612
    %v1702 = vadd.f32 %v1012, %v1694
    %v1703 = vadd.f32 %v1013, %v1614
    %v1704 = vadd.f32 %v1014, %v1616
    %v1705 = vadd.f32 %v1015, %v1697
    %1706 = vst [vmem:[#allocation2] sm:$0xff] %v1700
    %1707 = vst [vmem:[#allocation2 + $0x8] sm:$0xff] %v1701
    %1708 = vst [vmem:[#allocation2 + $0x10] sm:$0xff] %v1702
    %1709 = vst [vmem:[#allocation2 + $0x18] sm:$0xff] %v1703
    %1710 = vst [vmem:[#allocation2 + $0x20] sm:$0xff] %v1704
    %1711 = vst [vmem:[#allocation2 + $0x28] sm:$0xff] %v1705
    %s1712 = scalar_lea.vmem [#allocation6], 16
    %v1713 = vld [vmem:[%s1712] sm:$0xff]
    %v1714 = vld [vmem:[%s1712 + $0x8] sm:$0xff]
    %v1715 = vld [vmem:[%s1712 + $0x30] sm:$0xff]
    %v1716 = vld [vmem:[%s1712 + $0x38] sm:$0xff]
    %v1717 = vld [vmem:[%s1712 + $0x60] sm:$0xff]
    %v1718 = vld [vmem:[%s1712 + $0x68] sm:$0xff]
    %v1719 = vld [vmem:[%s1712 + $0x90] sm:$0xff]
    %v1720 = vld [vmem:[%s1712 + $0x98] sm:$0xff]
    %v1721 = vld [vmem:[%s1712 + $0xc0] sm:$0xff]
    %v1722 = vld [vmem:[%s1712 + $0xc8] sm:$0xff]
    %v1723 = vld [vmem:[%s1712 + $0xf0] sm:$0xff]
    %v1724 = vld [vmem:[%s1712 + $0xf8] sm:$0xff]
    %v1725 = vld [vmem:[%s1712 + $0x120] sm:$0xff]
    %v1726 = vld [vmem:[%s1712 + $0x128] sm:$0xff]
    %v1727 = vld [vmem:[%s1712 + $0x150] sm:$0xff]
    %v1728 = vld [vmem:[%s1712 + $0x158] sm:$0xff]
    %v1729 = vld [vmem:[%s1712 + $0x180] sm:$0xff]
    %v1730 = vld [vmem:[%s1712 + $0x188] sm:$0xff]
    %v1731 = vld [vmem:[%s1712 + $0x1b0] sm:$0xff]
    %v1732 = vld [vmem:[%s1712 + $0x1b8] sm:$0xff]
    %v1733 = vld [vmem:[%s1712 + $0x1e0] sm:$0xff]
    %v1734 = vld [vmem:[%s1712 + $0x1e8] sm:$0xff]
    %v1735 = vld [vmem:[%s1712 + $0x210] sm:$0xff]
    %v1736 = vld [vmem:[%s1712 + $0x218] sm:$0xff]
    %v1737 = vld [vmem:[%s1712 + $0x240] sm:$0xff]
    %v1738 = vld [vmem:[%s1712 + $0x248] sm:$0xff]
    %v1739 = vld [vmem:[%s1712 + $0x270] sm:$0xff]
    %v1740 = vld [vmem:[%s1712 + $0x278] sm:$0xff]
    %v1741 = vld [vmem:[%s1712 + $0x2a0] sm:$0xff]
    %v1742 = vld [vmem:[%s1712 + $0x2a8] sm:$0xff]
    %v1743 = vld [vmem:[%s1712 + $0x2d0] sm:$0xff]
    %v1744 = vld [vmem:[%s1712 + $0x2d8] sm:$0xff]
    %v1745 = vld [vmem:[%s1712 + $0x300] sm:$0xff]
    %v1746 = vld [vmem:[%s1712 + $0x308] sm:$0xff]
    %v1747 = vld [vmem:[%s1712 + $0x330] sm:$0xff]
    %v1748 = vld [vmem:[%s1712 + $0x338] sm:$0xff]
    %v1749 = vld [vmem:[%s1712 + $0x360] sm:$0xff]
    %v1750 = vld [vmem:[%s1712 + $0x368] sm:$0xff]
    %v1751 = vld [vmem:[%s1712 + $0x390] sm:$0xff]
    %v1752 = vld [vmem:[%s1712 + $0x398] sm:$0xff]
    %v1753 = vld [vmem:[%s1712 + $0x3c0] sm:$0xff]
    %v1754 = vld [vmem:[%s1712 + $0x3c8] sm:$0xff]
    %v1755 = vld [vmem:[%s1712 + $0x3f0] sm:$0xff]
    %v1756 = vld [vmem:[%s1712 + $0x3f8] sm:$0xff]
    %v1757 = vld [vmem:[%s1712 + $0x420] sm:$0xff]
    %v1758 = vld [vmem:[%s1712 + $0x428] sm:$0xff]
    %v1759 = vld [vmem:[%s1712 + $0x450] sm:$0xff]
    %v1760 = vld [vmem:[%s1712 + $0x458] sm:$0xff]
    %v1761 = vld [vmem:[%s1712 + $0x480] sm:$0xff]
    %v1762 = vld [vmem:[%s1712 + $0x488] sm:$0xff]
    %v1763 = vld [vmem:[%s1712 + $0x4b0] sm:$0xff]
    %v1764 = vld [vmem:[%s1712 + $0x4b8] sm:$0xff]
    %v1765 = vld [vmem:[%s1712 + $0x4e0] sm:$0xff]
    %v1766 = vld [vmem:[%s1712 + $0x4e8] sm:$0xff]
    %v1767 = vld [vmem:[%s1712 + $0x510] sm:$0xff]
    %v1768 = vld [vmem:[%s1712 + $0x518] sm:$0xff]
    %v1769 = vld [vmem:[%s1712 + $0x540] sm:$0xff]
    %v1770 = vld [vmem:[%s1712 + $0x548] sm:$0xff]
    %v1771 = vld [vmem:[%s1712 + $0x570] sm:$0xff]
    %v1772 = vld [vmem:[%s1712 + $0x578] sm:$0xff]
    %v1773 = vld [vmem:[%s1712 + $0x5a0] sm:$0xff]
    %v1774 = vld [vmem:[%s1712 + $0x5a8] sm:$0xff]
    %v1775 = vld [vmem:[%s1712 + $0x5d0] sm:$0xff]
    %v1776 = vld [vmem:[%s1712 + $0x5d8] sm:$0xff]
    %v1777 = vld [vmem:[%s1712 + $0x600] sm:$0xff]
    %v1778 = vld [vmem:[%s1712 + $0x608] sm:$0xff]
    %v1779 = vld [vmem:[%s1712 + $0x630] sm:$0xff]
    %v1780 = vld [vmem:[%s1712 + $0x638] sm:$0xff]
    %v1781 = vld [vmem:[%s1712 + $0x660] sm:$0xff]
    %v1782 = vld [vmem:[%s1712 + $0x668] sm:$0xff]
    %v1783 = vld [vmem:[%s1712 + $0x690] sm:$0xff]
    %v1784 = vld [vmem:[%s1712 + $0x698] sm:$0xff]
    %v1785 = vld [vmem:[%s1712 + $0x6c0] sm:$0xff]
    %v1786 = vld [vmem:[%s1712 + $0x6c8] sm:$0xff]
    %v1787 = vld [vmem:[%s1712 + $0x6f0] sm:$0xff]
    %v1788 = vld [vmem:[%s1712 + $0x6f8] sm:$0xff]
    %v1789 = vld [vmem:[%s1712 + $0x720] sm:$0xff]
    %v1790 = vld [vmem:[%s1712 + $0x728] sm:$0xff]
    %v1791 = vld [vmem:[%s1712 + $0x750] sm:$0xff]
    %v1792 = vld [vmem:[%s1712 + $0x758] sm:$0xff]
    %v1793 = vld [vmem:[%s1712 + $0x780] sm:$0xff]
    %v1794 = vld [vmem:[%s1712 + $0x788] sm:$0xff]
    %v1795 = vld [vmem:[%s1712 + $0x7b0] sm:$0xff]
    %v1796 = vld [vmem:[%s1712 + $0x7b8] sm:$0xff]
    %v1797 = vld [vmem:[%s1712 + $0x7e0] sm:$0xff]
    %v1798 = vld [vmem:[%s1712 + $0x7e8] sm:$0xff]
    %v1799 = vld [vmem:[%s1712 + $0x810] sm:$0xff]
    %v1800 = vld [vmem:[%s1712 + $0x818] sm:$0xff]
    %v1801 = vld [vmem:[%s1712 + $0x840] sm:$0xff]
    %v1802 = vld [vmem:[%s1712 + $0x848] sm:$0xff]
    %v1803 = vld [vmem:[%s1712 + $0x870] sm:$0xff]
    %v1804 = vld [vmem:[%s1712 + $0x878] sm:$0xff]
    %v1805 = vld [vmem:[%s1712 + $0x8a0] sm:$0xff]
    %v1806 = vld [vmem:[%s1712 + $0x8a8] sm:$0xff]
    %v1807 = vld [vmem:[%s1712 + $0x8d0] sm:$0xff]
    %v1808 = vld [vmem:[%s1712 + $0x8d8] sm:$0xff]
    %s1809 = scalar_lea.vmem [#allocation8], 4
    %v1810 = vld [vmem:[%s1809] sm:$0xf]
    %s1811 = smul.u32 64, 3
    %s1812 = smul.addr %s1811, 4
    %s1813 = scalar_lea.vmem [#allocation9], %s1812
    %v1814 = vld [vmem:[%s1813] sm:$0xff]
    %v1815 = vld [vmem:[%s1813 + $0x8] sm:$0xf]
    %v1816 = vld [vmem:[%s1813 + $0xc] sm:$0xff]
    %v1817 = vld [vmem:[%s1813 + $0x14] sm:$0xf]
    %v1818 = vld [vmem:[%s1813 + $0x18] sm:$0xff]
    %v1819 = vld [vmem:[%s1813 + $0x20] sm:$0xf]
    %v1820 = vld [vmem:[%s1813 + $0x24] sm:$0xff]
    %v1821 = vld [vmem:[%s1813 + $0x2c] sm:$0xf]
    %v1822 = vld [vmem:[%s1813 + $0x30] sm:$0xff]
    %v1823 = vld [vmem:[%s1813 + $0x38] sm:$0xf]
    %v1824 = vld [vmem:[%s1813 + $0x3c] sm:$0xff]
    %v1825 = vld [vmem:[%s1813 + $0x44] sm:$0xf]
    %v1826 = vld [vmem:[%s1813 + $0x48] sm:$0xff]
    %v1827 = vld [vmem:[%s1813 + $0x50] sm:$0xf]
    %v1828 = vld [vmem:[%s1813 + $0x54] sm:$0xff]
    %v1829 = vld [vmem:[%s1813 + $0x5c] sm:$0xf]
    %v1830 = vld [vmem:[%s1813 + $0x60] sm:$0xff]
    %v1831 = vld [vmem:[%s1813 + $0x68] sm:$0xf]
    %v1832 = vld [vmem:[%s1813 + $0x6c] sm:$0xff]
    %v1833 = vld [vmem:[%s1813 + $0x74] sm:$0xf]
    %v1834 = vld [vmem:[%s1813 + $0x78] sm:$0xff]
    %v1835 = vld [vmem:[%s1813 + $0x80] sm:$0xf]
    %v1836 = vld [vmem:[%s1813 + $0x84] sm:$0xff]
    %v1837 = vld [vmem:[%s1813 + $0x8c] sm:$0xf]
    %v1838 = vld [vmem:[%s1813 + $0x90] sm:$0xff]
    %v1839 = vld [vmem:[%s1813 + $0x98] sm:$0xf]
    %v1840 = vld [vmem:[%s1813 + $0x9c] sm:$0xff]
    %v1841 = vld [vmem:[%s1813 + $0xa4] sm:$0xf]
    %v1842 = vld [vmem:[%s1813 + $0xa8] sm:$0xff]
    %v1843 = vld [vmem:[%s1813 + $0xb0] sm:$0xf]
    %v1844 = vld [vmem:[%s1813 + $0xb4] sm:$0xff]
    %v1845 = vld [vmem:[%s1813 + $0xbc] sm:$0xf]
    %v1846 = vld [vmem:[%s1813 + $0xc0] sm:$0xff]
    %v1847 = vld [vmem:[%s1813 + $0xc8] sm:$0xf]
    %v1848 = vld [vmem:[%s1813 + $0xcc] sm:$0xff]
    %v1849 = vld [vmem:[%s1813 + $0xd4] sm:$0xf]
    %v1850 = vld [vmem:[%s1813 + $0xd8] sm:$0xff]
    %v1851 = vld [vmem:[%s1813 + $0xe0] sm:$0xf]
    %v1852 = vld [vmem:[%s1813 + $0xe4] sm:$0xff]
    %v1853 = vld [vmem:[%s1813 + $0xec] sm:$0xf]
    %v1854 = vld [vmem:[%s1813 + $0xf0] sm:$0xff]
    %v1855 = vld [vmem:[%s1813 + $0xf8] sm:$0xf]
    %v1856 = vld [vmem:[%s1813 + $0xfc] sm:$0xff]
    %v1857 = vld [vmem:[%s1813 + $0x104] sm:$0xf]
    %v1858 = vld [vmem:[%s1813 + $0x108] sm:$0xff]
    %v1859 = vld [vmem:[%s1813 + $0x110] sm:$0xf]
    %v1860 = vld [vmem:[%s1813 + $0x114] sm:$0xff]
    %v1861 = vld [vmem:[%s1813 + $0x11c] sm:$0xf]
    %v1862 = vld [vmem:[%s1813 + $0x120] sm:$0xff]
    %v1863 = vld [vmem:[%s1813 + $0x128] sm:$0xf]
    %v1864 = vld [vmem:[%s1813 + $0x12c] sm:$0xff]
    %v1865 = vld [vmem:[%s1813 + $0x134] sm:$0xf]
    %v1866 = vld [vmem:[%s1813 + $0x138] sm:$0xff]
    %v1867 = vld [vmem:[%s1813 + $0x140] sm:$0xf]
    %v1868 = vld [vmem:[%s1813 + $0x144] sm:$0xff]
    %v1869 = vld [vmem:[%s1813 + $0x14c] sm:$0xf]
    %v1870 = vld [vmem:[%s1813 + $0x150] sm:$0xff]
    %v1871 = vld [vmem:[%s1813 + $0x158] sm:$0xf]
    %v1872 = vld [vmem:[%s1813 + $0x15c] sm:$0xff]
    %v1873 = vld [vmem:[%s1813 + $0x164] sm:$0xf]
    %v1874 = vld [vmem:[%s1813 + $0x168] sm:$0xff]
    %v1875 = vld [vmem:[%s1813 + $0x170] sm:$0xf]
    %v1876 = vld [vmem:[%s1813 + $0x174] sm:$0xff]
    %v1877 = vld [vmem:[%s1813 + $0x17c] sm:$0xf]
    %v1878 = vld [vmem:[%s1813 + $0x180] sm:$0xff]
    %v1879 = vld [vmem:[%s1813 + $0x188] sm:$0xf]
    %v1880 = vld [vmem:[%s1813 + $0x18c] sm:$0xff]
    %v1881 = vld [vmem:[%s1813 + $0x194] sm:$0xf]
    %v1882 = vld [vmem:[%s1813 + $0x198] sm:$0xff]
    %v1883 = vld [vmem:[%s1813 + $0x1a0] sm:$0xf]
    %v1884 = vld [vmem:[%s1813 + $0x1a4] sm:$0xff]
    %v1885 = vld [vmem:[%s1813 + $0x1ac] sm:$0xf]
    %v1886 = vld [vmem:[%s1813 + $0x1b0] sm:$0xff]
    %v1887 = vld [vmem:[%s1813 + $0x1b8] sm:$0xf]
    %v1888 = vld [vmem:[%s1813 + $0x1bc] sm:$0xff]
    %v1889 = vld [vmem:[%s1813 + $0x1c4] sm:$0xf]
    %v1890 = vld [vmem:[%s1813 + $0x1c8] sm:$0xff]
    %v1891 = vld [vmem:[%s1813 + $0x1d0] sm:$0xf]
    %v1892 = vld [vmem:[%s1813 + $0x1d4] sm:$0xff]
    %v1893 = vld [vmem:[%s1813 + $0x1dc] sm:$0xf]
    %v1894 = vld [vmem:[%s1813 + $0x1e0] sm:$0xff]
    %v1895 = vld [vmem:[%s1813 + $0x1e8] sm:$0xf]
    %v1896 = vld [vmem:[%s1813 + $0x1ec] sm:$0xff]
    %v1897 = vld [vmem:[%s1813 + $0x1f4] sm:$0xf]
    %v1898 = vld [vmem:[%s1813 + $0x1f8] sm:$0xff]
    %v1899 = vld [vmem:[%s1813 + $0x200] sm:$0xf]
    %v1900 = vld [vmem:[%s1813 + $0x204] sm:$0xff]
    %v1901 = vld [vmem:[%s1813 + $0x20c] sm:$0xf]
    %v1902 = vld [vmem:[%s1813 + $0x210] sm:$0xff]
    %v1903 = vld [vmem:[%s1813 + $0x218] sm:$0xf]
    %v1904 = vld [vmem:[%s1813 + $0x21c] sm:$0xff]
    %v1905 = vld [vmem:[%s1813 + $0x224] sm:$0xf]
    %v1906 = vld [vmem:[%s1813 + $0x228] sm:$0xff]
    %v1907 = vld [vmem:[%s1813 + $0x230] sm:$0xf]
    %v1908 = vld [vmem:[%s1813 + $0x234] sm:$0xff]
    %v1909 = vld [vmem:[%s1813 + $0x23c] sm:$0xf]
    %v1910 = vld [vmem:[%s1813 + $0x240] sm:$0xff]
    %v1911 = vld [vmem:[%s1813 + $0x248] sm:$0xf]
    %v1912 = vld [vmem:[%s1813 + $0x24c] sm:$0xff]
    %v1913 = vld [vmem:[%s1813 + $0x254] sm:$0xf]
    %v1914 = vld [vmem:[%s1813 + $0x258] sm:$0xff]
    %v1915 = vld [vmem:[%s1813 + $0x260] sm:$0xf]
    %v1916 = vld [vmem:[%s1813 + $0x264] sm:$0xff]
    %v1917 = vld [vmem:[%s1813 + $0x26c] sm:$0xf]
    %v1918 = vld [vmem:[%s1813 + $0x270] sm:$0xff]
    %v1919 = vld [vmem:[%s1813 + $0x278] sm:$0xf]
    %v1920 = vld [vmem:[%s1813 + $0x27c] sm:$0xff]
    %v1921 = vld [vmem:[%s1813 + $0x284] sm:$0xf]
    %v1922 = vld [vmem:[%s1813 + $0x288] sm:$0xff]
    %v1923 = vld [vmem:[%s1813 + $0x290] sm:$0xf]
    %v1924 = vld [vmem:[%s1813 + $0x294] sm:$0xff]
    %v1925 = vld [vmem:[%s1813 + $0x29c] sm:$0xf]
    %v1926 = vld [vmem:[%s1813 + $0x2a0] sm:$0xff]
    %v1927 = vld [vmem:[%s1813 + $0x2a8] sm:$0xf]
    %v1928 = vld [vmem:[%s1813 + $0x2ac] sm:$0xff]
    %v1929 = vld [vmem:[%s1813 + $0x2b4] sm:$0xf]
    %v1930 = vld [vmem:[%s1813 + $0x2b8] sm:$0xff]
    %v1931 = vld [vmem:[%s1813 + $0x2c0] sm:$0xf]
    %v1932 = vld [vmem:[%s1813 + $0x2c4] sm:$0xff]
    %v1933 = vld [vmem:[%s1813 + $0x2cc] sm:$0xf]
    %v1934 = vld [vmem:[%s1813 + $0x2d0] sm:$0xff]
    %v1935 = vld [vmem:[%s1813 + $0x2d8] sm:$0xf]
    %v1936 = vld [vmem:[%s1813 + $0x2dc] sm:$0xff]
    %v1937 = vld [vmem:[%s1813 + $0x2e4] sm:$0xf]
    %v1938 = vld [vmem:[%s1813 + $0x2e8] sm:$0xff]
    %v1939 = vld [vmem:[%s1813 + $0x2f0] sm:$0xf]
    %v1940 = vld [vmem:[%s1813 + $0x2f4] sm:$0xff]
    %v1941 = vld [vmem:[%s1813 + $0x2fc] sm:$0xf]
    %v1943 = vlaneseq
    %v1944 = vshrl.u32 %v1943, 7
    %v1945 = vsub.s32 0, %v1944
    %v1946 = vrot.slane %v1810, %v1945
    %v1947 = vlaneseq
    %v1948 = vshrl.u32 %v1947, 7
    %v1949 = vsub.s32 1, %v1948
    %v1950 = vrot.slane %v1810, %v1949
    %v1951 = vlaneseq
    %v1952 = vshrl.u32 %v1951, 7
    %v1953 = vsub.s32 2, %v1952
    %v1954 = vrot.slane %v1810, %v1953
    %v1955 = vlaneseq
    %v1956 = vshrl.u32 %v1955, 7
    %v1957 = vsub.s32 3, %v1956
    %v1958 = vrot.slane %v1810, %v1957
    %v2059 = vunpack.c.l.b16 %v1713
    %v2060 = vunpack.c.h.b16 %v1713
    %v2061 = vunpack.c.l.b16 %v1714
    %v2062 = vunpack.c.h.b16 %v1714
    %v2063 = vunpack.c.l.b16 %v1715
    %v2064 = vunpack.c.h.b16 %v1715
    %v2065 = vunpack.c.l.b16 %v1716
    %v2066 = vunpack.c.h.b16 %v1716
    %v2067 = vunpack.c.l.b16 %v1717
    %v2068 = vunpack.c.h.b16 %v1717
    %v2069 = vunpack.c.l.b16 %v1718
    %v2070 = vunpack.c.h.b16 %v1718
    %v2071 = vunpack.c.l.b16 %v1719
    %v2072 = vunpack.c.h.b16 %v1719
    %v2073 = vunpack.c.l.b16 %v1720
    %v2074 = vunpack.c.h.b16 %v1720
    %v2075 = vunpack.c.l.b16 %v1721
    %v2076 = vunpack.c.h.b16 %v1721
    %v2077 = vunpack.c.l.b16 %v1722
    %v2078 = vunpack.c.h.b16 %v1722
    %v2079 = vunpack.c.l.b16 %v1723
    %v2080 = vunpack.c.h.b16 %v1723
    %v2081 = vunpack.c.l.b16 %v1724
    %v2082 = vunpack.c.h.b16 %v1724
    %v2083 = vunpack.c.l.b16 %v1725
    %v2084 = vunpack.c.h.b16 %v1725
    %v2085 = vunpack.c.l.b16 %v1726
    %v2086 = vunpack.c.h.b16 %v1726
    %v2087 = vunpack.c.l.b16 %v1727
    %v2088 = vunpack.c.h.b16 %v1727
    %v2089 = vunpack.c.l.b16 %v1728
    %v2090 = vunpack.c.h.b16 %v1728
    %v2091 = vunpack.c.l.b16 %v1729
    %v2092 = vunpack.c.h.b16 %v1729
    %v2093 = vunpack.c.l.b16 %v1730
    %v2094 = vunpack.c.h.b16 %v1730
    %v2095 = vunpack.c.l.b16 %v1731
    %v2096 = vunpack.c.h.b16 %v1731
    %v2097 = vunpack.c.l.b16 %v1732
    %v2098 = vunpack.c.h.b16 %v1732
    %v2099 = vunpack.c.l.b16 %v1733
    %v2100 = vunpack.c.h.b16 %v1733
    %v2101 = vunpack.c.l.b16 %v1734
    %v2102 = vunpack.c.h.b16 %v1734
    %v2103 = vunpack.c.l.b16 %v1735
    %v2104 = vunpack.c.h.b16 %v1735
    %v2105 = vunpack.c.l.b16 %v1736
    %v2106 = vunpack.c.h.b16 %v1736
    %v2107 = vunpack.c.l.b16 %v1737
    %v2108 = vunpack.c.h.b16 %v1737
    %v2109 = vunpack.c.l.b16 %v1738
    %v2110 = vunpack.c.h.b16 %v1738
    %v2111 = vunpack.c.l.b16 %v1739
    %v2112 = vunpack.c.h.b16 %v1739
    %v2113 = vunpack.c.l.b16 %v1740
    %v2114 = vunpack.c.h.b16 %v1740
    %v2115 = vunpack.c.l.b16 %v1741
    %v2116 = vunpack.c.h.b16 %v1741
    %v2117 = vunpack.c.l.b16 %v1742
    %v2118 = vunpack.c.h.b16 %v1742
    %v2119 = vunpack.c.l.b16 %v1743
    %v2120 = vunpack.c.h.b16 %v1743
    %v2121 = vunpack.c.l.b16 %v1744
    %v2122 = vunpack.c.h.b16 %v1744
    %v2123 = vunpack.c.l.b16 %v1745
    %v2124 = vunpack.c.h.b16 %v1745
    %v2125 = vunpack.c.l.b16 %v1746
    %v2126 = vunpack.c.h.b16 %v1746
    %v2127 = vunpack.c.l.b16 %v1747
    %v2128 = vunpack.c.h.b16 %v1747
    %v2129 = vunpack.c.l.b16 %v1748
    %v2130 = vunpack.c.h.b16 %v1748
    %v2131 = vunpack.c.l.b16 %v1749
    %v2132 = vunpack.c.h.b16 %v1749
    %v2133 = vunpack.c.l.b16 %v1750
    %v2134 = vunpack.c.h.b16 %v1750
    %v2135 = vunpack.c.l.b16 %v1751
    %v2136 = vunpack.c.h.b16 %v1751
    %v2137 = vunpack.c.l.b16 %v1752
    %v2138 = vunpack.c.h.b16 %v1752
    %v2139 = vunpack.c.l.b16 %v1753
    %v2140 = vunpack.c.h.b16 %v1753
    %v2141 = vunpack.c.l.b16 %v1754
    %v2142 = vunpack.c.h.b16 %v1754
    %v2143 = vunpack.c.l.b16 %v1755
    %v2144 = vunpack.c.h.b16 %v1755
    %v2145 = vunpack.c.l.b16 %v1756
    %v2146 = vunpack.c.h.b16 %v1756
    %v2147 = vunpack.c.l.b16 %v1757
    %v2148 = vunpack.c.h.b16 %v1757
    %v2149 = vunpack.c.l.b16 %v1758
    %v2150 = vunpack.c.h.b16 %v1758
    %v2151 = vunpack.c.l.b16 %v1759
    %v2152 = vunpack.c.h.b16 %v1759
    %v2153 = vunpack.c.l.b16 %v1760
    %v2154 = vunpack.c.h.b16 %v1760
    %v2155 = vunpack.c.l.b16 %v1761
    %v2156 = vunpack.c.h.b16 %v1761
    %v2157 = vunpack.c.l.b16 %v1762
    %v2158 = vunpack.c.h.b16 %v1762
    %v2159 = vunpack.c.l.b16 %v1763
    %v2160 = vunpack.c.h.b16 %v1763
    %v2161 = vunpack.c.l.b16 %v1764
    %v2162 = vunpack.c.h.b16 %v1764
    %v2163 = vunpack.c.l.b16 %v1765
    %v2164 = vunpack.c.h.b16 %v1765
    %v2165 = vunpack.c.l.b16 %v1766
    %v2166 = vunpack.c.h.b16 %v1766
    %v2167 = vunpack.c.l.b16 %v1767
    %v2168 = vunpack.c.h.b16 %v1767
    %v2169 = vunpack.c.l.b16 %v1768
    %v2170 = vunpack.c.h.b16 %v1768
    %v2171 = vunpack.c.l.b16 %v1769
    %v2172 = vunpack.c.h.b16 %v1769
    %v2173 = vunpack.c.l.b16 %v1770
    %v2174 = vunpack.c.h.b16 %v1770
    %v2175 = vunpack.c.l.b16 %v1771
    %v2176 = vunpack.c.h.b16 %v1771
    %v2177 = vunpack.c.l.b16 %v1772
    %v2178 = vunpack.c.h.b16 %v1772
    %v2179 = vunpack.c.l.b16 %v1773
    %v2180 = vunpack.c.h.b16 %v1773
    %v2181 = vunpack.c.l.b16 %v1774
    %v2182 = vunpack.c.h.b16 %v1774
    %v2183 = vunpack.c.l.b16 %v1775
    %v2184 = vunpack.c.h.b16 %v1775
    %v2185 = vunpack.c.l.b16 %v1776
    %v2186 = vunpack.c.h.b16 %v1776
    %v2187 = vunpack.c.l.b16 %v1777
    %v2188 = vunpack.c.h.b16 %v1777
    %v2189 = vunpack.c.l.b16 %v1778
    %v2190 = vunpack.c.h.b16 %v1778
    %v2191 = vunpack.c.l.b16 %v1779
    %v2192 = vunpack.c.h.b16 %v1779
    %v2193 = vunpack.c.l.b16 %v1780
    %v2194 = vunpack.c.h.b16 %v1780
    %v2195 = vunpack.c.l.b16 %v1781
    %v2196 = vunpack.c.h.b16 %v1781
    %v2197 = vunpack.c.l.b16 %v1782
    %v2198 = vunpack.c.h.b16 %v1782
    %v2199 = vunpack.c.l.b16 %v1783
    %v2200 = vunpack.c.h.b16 %v1783
    %v2201 = vunpack.c.l.b16 %v1784
    %v2202 = vunpack.c.h.b16 %v1784
    %v2203 = vunpack.c.l.b16 %v1785
    %v2204 = vunpack.c.h.b16 %v1785
    %v2205 = vunpack.c.l.b16 %v1786
    %v2206 = vunpack.c.h.b16 %v1786
    %v2207 = vunpack.c.l.b16 %v1787
    %v2208 = vunpack.c.h.b16 %v1787
    %v2209 = vunpack.c.l.b16 %v1788
    %v2210 = vunpack.c.h.b16 %v1788
    %v2211 = vunpack.c.l.b16 %v1789
    %v2212 = vunpack.c.h.b16 %v1789
    %v2213 = vunpack.c.l.b16 %v1790
    %v2214 = vunpack.c.h.b16 %v1790
    %v2215 = vunpack.c.l.b16 %v1791
    %v2216 = vunpack.c.h.b16 %v1791
    %v2217 = vunpack.c.l.b16 %v1792
    %v2218 = vunpack.c.h.b16 %v1792
    %v2219 = vunpack.c.l.b16 %v1793
    %v2220 = vunpack.c.h.b16 %v1793
    %v2221 = vunpack.c.l.b16 %v1794
    %v2222 = vunpack.c.h.b16 %v1794
    %v2223 = vunpack.c.l.b16 %v1795
    %v2224 = vunpack.c.h.b16 %v1795
    %v2225 = vunpack.c.l.b16 %v1796
    %v2226 = vunpack.c.h.b16 %v1796
    %v2227 = vunpack.c.l.b16 %v1797
    %v2228 = vunpack.c.h.b16 %v1797
    %v2229 = vunpack.c.l.b16 %v1798
    %v2230 = vunpack.c.h.b16 %v1798
    %v2231 = vunpack.c.l.b16 %v1799
    %v2232 = vunpack.c.h.b16 %v1799
    %v2233 = vunpack.c.l.b16 %v1800
    %v2234 = vunpack.c.h.b16 %v1800
    %v2235 = vunpack.c.l.b16 %v1801
    %v2236 = vunpack.c.h.b16 %v1801
    %v2237 = vunpack.c.l.b16 %v1802
    %v2238 = vunpack.c.h.b16 %v1802
    %v2239 = vunpack.c.l.b16 %v1803
    %v2240 = vunpack.c.h.b16 %v1803
    %v2241 = vunpack.c.l.b16 %v1804
    %v2242 = vunpack.c.h.b16 %v1804
    %v2243 = vunpack.c.l.b16 %v1805
    %v2244 = vunpack.c.h.b16 %v1805
    %v2245 = vunpack.c.l.b16 %v1806
    %v2246 = vunpack.c.h.b16 %v1806
    %v2247 = vunpack.c.l.b16 %v1807
    %v2248 = vunpack.c.h.b16 %v1807
    %v2249 = vunpack.c.l.b16 %v1808
    %v2250 = vunpack.c.h.b16 %v1808
    %v2251 = vpack.c.b16 %v2063, %v2059
    %v2252 = vpack.c.b16 %v2064, %v2060
    %v2253 = vpack.c.b16 %v2065, %v2061
    %v2254 = vpack.c.b16 %v2066, %v2062
    %v2255 = vpack.c.b16 %v2071, %v2067
    %v2256 = vpack.c.b16 %v2072, %v2068
    %v2257 = vpack.c.b16 %v2073, %v2069
    %v2258 = vpack.c.b16 %v2074, %v2070
    %v2259 = vpack.c.b16 %v2079, %v2075
    %v2260 = vpack.c.b16 %v2080, %v2076
    %v2261 = vpack.c.b16 %v2081, %v2077
    %v2262 = vpack.c.b16 %v2082, %v2078
    %v2263 = vpack.c.b16 %v2087, %v2083
    %v2264 = vpack.c.b16 %v2088, %v2084
    %v2265 = vpack.c.b16 %v2089, %v2085
    %v2266 = vpack.c.b16 %v2090, %v2086
    %v2267 = vpack.c.b16 %v2095, %v2091
    %v2268 = vpack.c.b16 %v2096, %v2092
    %v2269 = vpack.c.b16 %v2097, %v2093
    %v2270 = vpack.c.b16 %v2098, %v2094
    %v2271 = vpack.c.b16 %v2103, %v2099
    %v2272 = vpack.c.b16 %v2104, %v2100
    %v2273 = vpack.c.b16 %v2105, %v2101
    %v2274 = vpack.c.b16 %v2106, %v2102
    %v2275 = vpack.c.b16 %v2111, %v2107
    %v2276 = vpack.c.b16 %v2112, %v2108
    %v2277 = vpack.c.b16 %v2113, %v2109
    %v2278 = vpack.c.b16 %v2114, %v2110
    %v2279 = vpack.c.b16 %v2119, %v2115
    %v2280 = vpack.c.b16 %v2120, %v2116
    %v2281 = vpack.c.b16 %v2121, %v2117
    %v2282 = vpack.c.b16 %v2122, %v2118
    %v2283 = vpack.c.b16 %v2127, %v2123
    %v2284 = vpack.c.b16 %v2128, %v2124
    %v2285 = vpack.c.b16 %v2129, %v2125
    %v2286 = vpack.c.b16 %v2130, %v2126
    %v2287 = vpack.c.b16 %v2135, %v2131
    %v2288 = vpack.c.b16 %v2136, %v2132
    %v2289 = vpack.c.b16 %v2137, %v2133
    %v2290 = vpack.c.b16 %v2138, %v2134
    %v2291 = vpack.c.b16 %v2143, %v2139
    %v2292 = vpack.c.b16 %v2144, %v2140
    %v2293 = vpack.c.b16 %v2145, %v2141
    %v2294 = vpack.c.b16 %v2146, %v2142
    %v2295 = vpack.c.b16 %v2151, %v2147
    %v2296 = vpack.c.b16 %v2152, %v2148
    %v2297 = vpack.c.b16 %v2153, %v2149
    %v2298 = vpack.c.b16 %v2154, %v2150
    %v2299 = vpack.c.b16 %v2159, %v2155
    %v2300 = vpack.c.b16 %v2160, %v2156
    %v2301 = vpack.c.b16 %v2161, %v2157
    %v2302 = vpack.c.b16 %v2162, %v2158
    %v2303 = vpack.c.b16 %v2167, %v2163
    %v2304 = vpack.c.b16 %v2168, %v2164
    %v2305 = vpack.c.b16 %v2169, %v2165
    %v2306 = vpack.c.b16 %v2170, %v2166
    %v2307 = vpack.c.b16 %v2175, %v2171
    %v2308 = vpack.c.b16 %v2176, %v2172
    %v2309 = vpack.c.b16 %v2177, %v2173
    %v2310 = vpack.c.b16 %v2178, %v2174
    %v2311 = vpack.c.b16 %v2183, %v2179
    %v2312 = vpack.c.b16 %v2184, %v2180
    %v2313 = vpack.c.b16 %v2185, %v2181
    %v2314 = vpack.c.b16 %v2186, %v2182
    %v2315 = vpack.c.b16 %v2191, %v2187
    %v2316 = vpack.c.b16 %v2192, %v2188
    %v2317 = vpack.c.b16 %v2193, %v2189
    %v2318 = vpack.c.b16 %v2194, %v2190
    %v2319 = vpack.c.b16 %v2199, %v2195
    %v2320 = vpack.c.b16 %v2200, %v2196
    %v2321 = vpack.c.b16 %v2201, %v2197
    %v2322 = vpack.c.b16 %v2202, %v2198
    %v2323 = vpack.c.b16 %v2207, %v2203
    %v2324 = vpack.c.b16 %v2208, %v2204
    %v2325 = vpack.c.b16 %v2209, %v2205
    %v2326 = vpack.c.b16 %v2210, %v2206
    %v2327 = vpack.c.b16 %v2215, %v2211
    %v2328 = vpack.c.b16 %v2216, %v2212
    %v2329 = vpack.c.b16 %v2217, %v2213
    %v2330 = vpack.c.b16 %v2218, %v2214
    %v2331 = vpack.c.b16 %v2223, %v2219
    %v2332 = vpack.c.b16 %v2224, %v2220
    %v2333 = vpack.c.b16 %v2225, %v2221
    %v2334 = vpack.c.b16 %v2226, %v2222
    %v2335 = vpack.c.b16 %v2231, %v2227
    %v2336 = vpack.c.b16 %v2232, %v2228
    %v2337 = vpack.c.b16 %v2233, %v2229
    %v2338 = vpack.c.b16 %v2234, %v2230
    %v2339 = vpack.c.b16 %v2239, %v2235
    %v2340 = vpack.c.b16 %v2240, %v2236
    %v2341 = vpack.c.b16 %v2241, %v2237
    %v2342 = vpack.c.b16 %v2242, %v2238
    %v2343 = vpack.c.b16 %v2247, %v2243
    %v2344 = vpack.c.b16 %v2248, %v2244
    %v2345 = vpack.c.b16 %v2249, %v2245
    %v2346 = vpack.c.b16 %v2250, %v2246
    %2443 = vmatprep.subr.bf16.mxu0 %v2252
    %2444 = vmatpush1.bf16.msra.mxu0 %v2251
    %2445 = vmatprep.subr.bf16.mxu0 %v2256
    %2446 = vmatpush1.bf16.msra.mxu0 %v2255
    %2447 = vmatprep.subr.bf16.mxu0 %v2260
    %2448 = vmatpush1.bf16.msra.mxu0 %v2259
    %2449 = vmatprep.subr.bf16.mxu0 %v2264
    %2450 = vmatpush1.bf16.msra.mxu0 %v2263
    %2451 = vmatprep.subr.bf16.mxu0 %v2268
    %2452 = vmatpush1.bf16.msra.mxu0 %v2267
    %2453 = vmatprep.subr.bf16.mxu0 %v2272
    %2454 = vmatpush1.bf16.msra.mxu0 %v2271
    %2455 = vmatprep.subr.bf16.mxu0 %v2276
    %2456 = vmatpush1.bf16.msra.mxu0 %v2275
    %2457 = vmatprep.subr.bf16.mxu0 %v2280
    %2458 = vmatpush1.bf16.msra.mxu0 %v2279
    %2459 = vmatprep.subr.bf16.mxu0 %v2284
    %2460 = vmatpush1.bf16.msra.mxu0 %v2283
    %2461 = vmatprep.subr.bf16.mxu0 %v2288
    %2462 = vmatpush1.bf16.msra.mxu0 %v2287
    %2463 = vmatprep.subr.bf16.mxu0 %v2292
    %2464 = vmatpush1.bf16.msra.mxu0 %v2291
    %2465 = vmatprep.subr.bf16.mxu0 %v2296
    %2466 = vmatpush1.bf16.msra.mxu0 %v2295
    %2467 = vmatprep.subr.bf16.mxu0 %v2300
    %2468 = vmatpush1.bf16.msra.mxu0 %v2299
    %2469 = vmatprep.subr.bf16.mxu0 %v2304
    %2470 = vmatpush1.bf16.msra.mxu0 %v2303
    %2471 = vmatprep.subr.bf16.mxu0 %v2308
    %2472 = vmatpush1.bf16.msra.mxu0 %v2307
    %2473 = vmatprep.subr.bf16.mxu0 %v2312
    %2474 = vmatpush1.bf16.msra.mxu0 %v2311
    %2475 = vmatprep.mubr.bf16.mxu0 %v93
    %2476 = vmatmul.mubr.bf16.gmra.mrb[0].mxu0 %v92
    %v2477 = vpop.f32.mrb[0].mxu0
    %v2478 = vadd.f32 %v1946, %v2477
    %v2479 = vpop.f32.mrb[0].mxu0
    %v2480 = vadd.f32 %v1950, %v2479
    %v2481 = vpop.f32.mrb[0].mxu0
    %v2482 = vadd.f32 %v1946, %v2481
    %v2483 = vpop.f32.mrb[0].mxu0
    %v2484 = vadd.f32 %v1950, %v2483
    %2485 = vdwg.mxu0
    %2486 = vmatprep.subr.bf16.mxu0 %v2316
    %2487 = vmatpush1.bf16.msra.mxu0 %v2315
    %2488 = vmatprep.subr.bf16.mxu0 %v2320
    %2489 = vmatpush1.bf16.msra.mxu0 %v2319
    %2490 = vmatprep.subr.bf16.mxu0 %v2324
    %2491 = vmatpush1.bf16.msra.mxu0 %v2323
    %2492 = vmatprep.subr.bf16.mxu0 %v2328
    %2493 = vmatpush1.bf16.msra.mxu0 %v2327
    %2494 = vmatprep.subr.bf16.mxu0 %v2332
    %2495 = vmatpush1.bf16.msra.mxu0 %v2331
    %2496 = vmatprep.subr.bf16.mxu0 %v2336
    %2497 = vmatpush1.bf16.msra.mxu0 %v2335
    %2498 = vmatprep.subr.bf16.mxu0 %v2340
    %2499 = vmatpush1.bf16.msra.mxu0 %v2339
    %2500 = vmatprep.subr.bf16.mxu0 %v2344
    %2501 = vmatpush1.bf16.msra.mxu0 %v2343
    %2502 = vmatprep.subr.bf16.mxu0 0
    %2503 = vmatpush1.bf16.msra.mxu0 0
    %2504 = vmatprep.subr.bf16.mxu0 0
    %2505 = vmatpush1.bf16.msra.mxu0 0
    %2506 = vmatprep.subr.bf16.mxu0 0
    %2507 = vmatpush1.bf16.msra.mxu0 0
    %2508 = vmatprep.subr.bf16.mxu0 0
    %2509 = vmatpush1.bf16.msra.mxu0 0
    %2510 = vmatprep.subr.bf16.mxu0 0
    %2511 = vmatpush1.bf16.msra.mxu0 0
    %2512 = vmatprep.subr.bf16.mxu0 0
    %2513 = vmatpush1.bf16.msra.mxu0 0
    %2514 = vmatprep.subr.bf16.mxu0 0
    %2515 = vmatpush1.bf16.msra.mxu0 0
    %2516 = vmatprep.subr.bf16.mxu0 0
    %2517 = vmatpush1.bf16.msra.mxu0 0
    %2518 = vmatprep.mubr.bf16.mxu0 0
    %2519 = vmatmul.mubr.bf16.gmra.mrb[0].mxu0 %v94
    %v2520 = vpop.f32.mrb[0].mxu0
    %v2521 = vadd.f32 %v2478, %v2520
    %v2522 = vpop.f32.mrb[0].mxu0
    %v2523 = vadd.f32 %v2480, %v2522
    %v2524 = vpop.f32.mrb[0].mxu0
    %v2525 = vadd.f32 %v2482, %v2524
    %v2526 = vpop.f32.mrb[0].mxu0
    %v2527 = vadd.f32 %v2484, %v2526
    %2528 = vdwg.mxu0
    %2529 = vmatprep.subr.bf16.mxu0 %v2254
    %2530 = vmatpush1.bf16.msra.mxu0 %v2253
    %2531 = vmatprep.subr.bf16.mxu0 %v2258
    %2532 = vmatpush1.bf16.msra.mxu0 %v2257
    %2533 = vmatprep.subr.bf16.mxu0 %v2262
    %2534 = vmatpush1.bf16.msra.mxu0 %v2261
    %2535 = vmatprep.subr.bf16.mxu0 %v2266
    %2536 = vmatpush1.bf16.msra.mxu0 %v2265
    %2537 = vmatprep.subr.bf16.mxu0 %v2270
    %2538 = vmatpush1.bf16.msra.mxu0 %v2269
    %2539 = vmatprep.subr.bf16.mxu0 %v2274
    %2540 = vmatpush1.bf16.msra.mxu0 %v2273
    %2541 = vmatprep.subr.bf16.mxu0 %v2278
    %2542 = vmatpush1.bf16.msra.mxu0 %v2277
    %2543 = vmatprep.subr.bf16.mxu0 %v2282
    %2544 = vmatpush1.bf16.msra.mxu0 %v2281
    %2545 = vmatprep.subr.bf16.mxu0 %v2286
    %2546 = vmatpush1.bf16.msra.mxu0 %v2285
    %2547 = vmatprep.subr.bf16.mxu0 %v2290
    %2548 = vmatpush1.bf16.msra.mxu0 %v2289
    %2549 = vmatprep.subr.bf16.mxu0 %v2294
    %2550 = vmatpush1.bf16.msra.mxu0 %v2293
    %2551 = vmatprep.subr.bf16.mxu0 %v2298
    %2552 = vmatpush1.bf16.msra.mxu0 %v2297
    %2553 = vmatprep.subr.bf16.mxu0 %v2302
    %2554 = vmatpush1.bf16.msra.mxu0 %v2301
    %2555 = vmatprep.subr.bf16.mxu0 %v2306
    %2556 = vmatpush1.bf16.msra.mxu0 %v2305
    %2557 = vmatprep.subr.bf16.mxu0 %v2310
    %2558 = vmatpush1.bf16.msra.mxu0 %v2309
    %2559 = vmatprep.subr.bf16.mxu0 %v2314
    %2560 = vmatpush1.bf16.msra.mxu0 %v2313
    %2561 = vmatprep.mubr.bf16.mxu0 %v93
    %2562 = vmatmul.mubr.bf16.gmra.mrb[0].mxu0 %v92
    %v2563 = vpop.f32.mrb[0].mxu0
    %v2564 = vadd.f32 %v1954, %v2563
    %v2565 = vpop.f32.mrb[0].mxu0
    %v2566 = vadd.f32 %v1958, %v2565
    %v2567 = vpop.f32.mrb[0].mxu0
    %v2568 = vadd.f32 %v1954, %v2567
    %v2569 = vpop.f32.mrb[0].mxu0
    %v2570 = vadd.f32 %v1958, %v2569
    %2571 = vdwg.mxu0
    %2572 = vmatprep.subr.bf16.mxu0 %v2318
    %2573 = vmatpush1.bf16.msra.mxu0 %v2317
    %2574 = vmatprep.subr.bf16.mxu0 %v2322
    %2575 = vmatpush1.bf16.msra.mxu0 %v2321
    %2576 = vmatprep.subr.bf16.mxu0 %v2326
    %2577 = vmatpush1.bf16.msra.mxu0 %v2325
    %2578 = vmatprep.subr.bf16.mxu0 %v2330
    %2579 = vmatpush1.bf16.msra.mxu0 %v2329
    %2580 = vmatprep.subr.bf16.mxu0 %v2334
    %2581 = vmatpush1.bf16.msra.mxu0 %v2333
    %2582 = vmatprep.subr.bf16.mxu0 %v2338
    %2583 = vmatpush1.bf16.msra.mxu0 %v2337
    %2584 = vmatprep.subr.bf16.mxu0 %v2342
    %2585 = vmatpush1.bf16.msra.mxu0 %v2341
    %2586 = vmatprep.subr.bf16.mxu0 %v2346
    %2587 = vmatpush1.bf16.msra.mxu0 %v2345
    %2588 = vmatprep.subr.bf16.mxu0 0
    %2589 = vmatpush1.bf16.msra.mxu0 0
    %2590 = vmatprep.subr.bf16.mxu0 0
    %2591 = vmatpush1.bf16.msra.mxu0 0
    %2592 = vmatprep.subr.bf16.mxu0 0
    %2593 = vmatpush1.bf16.msra.mxu0 0
    %2594 = vmatprep.subr.bf16.mxu0 0
    %2595 = vmatpush1.bf16.msra.mxu0 0
    %2596 = vmatprep.subr.bf16.mxu0 0
    %2597 = vmatpush1.bf16.msra.mxu0 0
    %2598 = vmatprep.subr.bf16.mxu0 0
    %2599 = vmatpush1.bf16.msra.mxu0 0
    %2600 = vmatprep.subr.bf16.mxu0 0
    %2601 = vmatpush1.bf16.msra.mxu0 0
    %2602 = vmatprep.subr.bf16.mxu0 0
    %2603 = vmatpush1.bf16.msra.mxu0 0
    %2604 = vmatprep.mubr.bf16.mxu0 0
    %2605 = vmatmul.mubr.bf16.gmra.mrb[0].mxu0 %v94
    %v2606 = vpop.f32.mrb[0].mxu0
    %v2607 = vadd.f32 %v2564, %v2606
    %v2608 = vpop.f32.mrb[0].mxu0
    %v2609 = vadd.f32 %v2566, %v2608
    %v2610 = vpop.f32.mrb[0].mxu0
    %v2611 = vadd.f32 %v2568, %v2610
    %v2612 = vpop.f32.mrb[0].mxu0
    %v2613 = vadd.f32 %v2570, %v2612
    %2614 = vdwg.mxu0
    %v2615 = vmax.f32 %v2521, 0.0
    %v2616 = vmax.f32 %v2523, 0.0
    %v2617 = vmax.f32 %v2607, 0.0
    %v2618 = vmax.f32 %v2609, 0.0
    %v2619 = vmax.f32 %v2525, 0.0
    %v2620 = vmax.f32 %v2527, 0.0
    %v2621 = vmax.f32 %v2611, 0.0
    %v2622 = vmax.f32 %v2613, 0.0
    %v2623 = vld [vmem:[#allocation2] sm:$0xff]
    %v2624 = vld [vmem:[#allocation2 + $0x8] sm:$0xff]
    %v2625 = vld [vmem:[#allocation2 + $0x10] sm:$0xff]
    %v2626 = vld [vmem:[#allocation2 + $0x18] sm:$0xff]
    %v2627 = vld [vmem:[#allocation2 + $0x20] sm:$0xff]
    %v2628 = vld [vmem:[#allocation2 + $0x28] sm:$0xff]
    %v2629 = vpack.c.bf16 %v2619, %v2615
    %v2630 = vpack.c.bf16 %v2620, %v2616
    %v2631 = vpack.c.bf16 %v2621, %v2617
    %v2632 = vpack.c.bf16 %v2622, %v2618
    %v2761 = vunpack.c.l.b16 %v1814
    %v2762 = vunpack.c.h.b16 %v1814
    %v2763 = vunpack.c.l.b16 %v1815
    %v2764 = vunpack.c.l.b16 %v1816
    %v2765 = vunpack.c.h.b16 %v1816
    %v2766 = vunpack.c.l.b16 %v1817
    %v2767 = vunpack.c.l.b16 %v1818
    %v2768 = vunpack.c.h.b16 %v1818
    %v2769 = vunpack.c.l.b16 %v1819
    %v2770 = vunpack.c.l.b16 %v1820
    %v2771 = vunpack.c.h.b16 %v1820
    %v2772 = vunpack.c.l.b16 %v1821
    %v2773 = vunpack.c.l.b16 %v1822
    %v2774 = vunpack.c.h.b16 %v1822
    %v2775 = vunpack.c.l.b16 %v1823
    %v2776 = vunpack.c.l.b16 %v1824
    %v2777 = vunpack.c.h.b16 %v1824
    %v2778 = vunpack.c.l.b16 %v1825
    %v2779 = vunpack.c.l.b16 %v1826
    %v2780 = vunpack.c.h.b16 %v1826
    %v2781 = vunpack.c.l.b16 %v1827
    %v2782 = vunpack.c.l.b16 %v1828
    %v2783 = vunpack.c.h.b16 %v1828
    %v2784 = vunpack.c.l.b16 %v1829
    %v2785 = vunpack.c.l.b16 %v1830
    %v2786 = vunpack.c.h.b16 %v1830
    %v2787 = vunpack.c.l.b16 %v1831
    %v2788 = vunpack.c.l.b16 %v1832
    %v2789 = vunpack.c.h.b16 %v1832
    %v2790 = vunpack.c.l.b16 %v1833
    %v2791 = vunpack.c.l.b16 %v1834
    %v2792 = vunpack.c.h.b16 %v1834
    %v2793 = vunpack.c.l.b16 %v1835
    %v2794 = vunpack.c.l.b16 %v1836
    %v2795 = vunpack.c.h.b16 %v1836
    %v2796 = vunpack.c.l.b16 %v1837
    %v2797 = vunpack.c.l.b16 %v1838
    %v2798 = vunpack.c.h.b16 %v1838
    %v2799 = vunpack.c.l.b16 %v1839
    %v2800 = vunpack.c.l.b16 %v1840
    %v2801 = vunpack.c.h.b16 %v1840
    %v2802 = vunpack.c.l.b16 %v1841
    %v2803 = vunpack.c.l.b16 %v1842
    %v2804 = vunpack.c.h.b16 %v1842
    %v2805 = vunpack.c.l.b16 %v1843
    %v2806 = vunpack.c.l.b16 %v1844
    %v2807 = vunpack.c.h.b16 %v1844
    %v2808 = vunpack.c.l.b16 %v1845
    %v2809 = vunpack.c.l.b16 %v1846
    %v2810 = vunpack.c.h.b16 %v1846
    %v2811 = vunpack.c.l.b16 %v1847
    %v2812 = vunpack.c.l.b16 %v1848
    %v2813 = vunpack.c.h.b16 %v1848
    %v2814 = vunpack.c.l.b16 %v1849
    %v2815 = vunpack.c.l.b16 %v1850
    %v2816 = vunpack.c.h.b16 %v1850
    %v2817 = vunpack.c.l.b16 %v1851
    %v2818 = vunpack.c.l.b16 %v1852
    %v2819 = vunpack.c.h.b16 %v1852
    %v2820 = vunpack.c.l.b16 %v1853
    %v2821 = vunpack.c.l.b16 %v1854
    %v2822 = vunpack.c.h.b16 %v1854
    %v2823 = vunpack.c.l.b16 %v1855
    %v2824 = vunpack.c.l.b16 %v1856
    %v2825 = vunpack.c.h.b16 %v1856
    %v2826 = vunpack.c.l.b16 %v1857
    %v2827 = vunpack.c.l.b16 %v1858
    %v2828 = vunpack.c.h.b16 %v1858
    %v2829 = vunpack.c.l.b16 %v1859
    %v2830 = vunpack.c.l.b16 %v1860
    %v2831 = vunpack.c.h.b16 %v1860
    %v2832 = vunpack.c.l.b16 %v1861
    %v2833 = vunpack.c.l.b16 %v1862
    %v2834 = vunpack.c.h.b16 %v1862
    %v2835 = vunpack.c.l.b16 %v1863
    %v2836 = vunpack.c.l.b16 %v1864
    %v2837 = vunpack.c.h.b16 %v1864
    %v2838 = vunpack.c.l.b16 %v1865
    %v2839 = vunpack.c.l.b16 %v1866
    %v2840 = vunpack.c.h.b16 %v1866
    %v2841 = vunpack.c.l.b16 %v1867
    %v2842 = vunpack.c.l.b16 %v1868
    %v2843 = vunpack.c.h.b16 %v1868
    %v2844 = vunpack.c.l.b16 %v1869
    %v2845 = vunpack.c.l.b16 %v1870
    %v2846 = vunpack.c.h.b16 %v1870
    %v2847 = vunpack.c.l.b16 %v1871
    %v2848 = vunpack.c.l.b16 %v1872
    %v2849 = vunpack.c.h.b16 %v1872
    %v2850 = vunpack.c.l.b16 %v1873
    %v2851 = vunpack.c.l.b16 %v1874
    %v2852 = vunpack.c.h.b16 %v1874
    %v2853 = vunpack.c.l.b16 %v1875
    %v2854 = vunpack.c.l.b16 %v1876
    %v2855 = vunpack.c.h.b16 %v1876
    %v2856 = vunpack.c.l.b16 %v1877
    %v2857 = vunpack.c.l.b16 %v1878
    %v2858 = vunpack.c.h.b16 %v1878
    %v2859 = vunpack.c.l.b16 %v1879
    %v2860 = vunpack.c.l.b16 %v1880
    %v2861 = vunpack.c.h.b16 %v1880
    %v2862 = vunpack.c.l.b16 %v1881
    %v2863 = vunpack.c.l.b16 %v1882
    %v2864 = vunpack.c.h.b16 %v1882
    %v2865 = vunpack.c.l.b16 %v1883
    %v2866 = vunpack.c.l.b16 %v1884
    %v2867 = vunpack.c.h.b16 %v1884
    %v2868 = vunpack.c.l.b16 %v1885
    %v2869 = vunpack.c.l.b16 %v1886
    %v2870 = vunpack.c.h.b16 %v1886
    %v2871 = vunpack.c.l.b16 %v1887
    %v2872 = vunpack.c.l.b16 %v1888
    %v2873 = vunpack.c.h.b16 %v1888
    %v2874 = vunpack.c.l.b16 %v1889
    %v2875 = vunpack.c.l.b16 %v1890
    %v2876 = vunpack.c.h.b16 %v1890
    %v2877 = vunpack.c.l.b16 %v1891
    %v2878 = vunpack.c.l.b16 %v1892
    %v2879 = vunpack.c.h.b16 %v1892
    %v2880 = vunpack.c.l.b16 %v1893
    %v2881 = vunpack.c.l.b16 %v1894
    %v2882 = vunpack.c.h.b16 %v1894
    %v2883 = vunpack.c.l.b16 %v1895
    %v2884 = vunpack.c.l.b16 %v1896
    %v2885 = vunpack.c.h.b16 %v1896
    %v2886 = vunpack.c.l.b16 %v1897
    %v2887 = vunpack.c.l.b16 %v1898
    %v2888 = vunpack.c.h.b16 %v1898
    %v2889 = vunpack.c.l.b16 %v1899
    %v2890 = vunpack.c.l.b16 %v1900
    %v2891 = vunpack.c.h.b16 %v1900
    %v2892 = vunpack.c.l.b16 %v1901
    %v2893 = vunpack.c.l.b16 %v1902
    %v2894 = vunpack.c.h.b16 %v1902
    %v2895 = vunpack.c.l.b16 %v1903
    %v2896 = vunpack.c.l.b16 %v1904
    %v2897 = vunpack.c.h.b16 %v1904
    %v2898 = vunpack.c.l.b16 %v1905
    %v2899 = vunpack.c.l.b16 %v1906
    %v2900 = vunpack.c.h.b16 %v1906
    %v2901 = vunpack.c.l.b16 %v1907
    %v2902 = vunpack.c.l.b16 %v1908
    %v2903 = vunpack.c.h.b16 %v1908
    %v2904 = vunpack.c.l.b16 %v1909
    %v2905 = vunpack.c.l.b16 %v1910
    %v2906 = vunpack.c.h.b16 %v1910
    %v2907 = vunpack.c.l.b16 %v1911
    %v2908 = vunpack.c.l.b16 %v1912
    %v2909 = vunpack.c.h.b16 %v1912
    %v2910 = vunpack.c.l.b16 %v1913
    %v2911 = vunpack.c.l.b16 %v1914
    %v2912 = vunpack.c.h.b16 %v1914
    %v2913 = vunpack.c.l.b16 %v1915
    %v2914 = vunpack.c.l.b16 %v1916
    %v2915 = vunpack.c.h.b16 %v1916
    %v2916 = vunpack.c.l.b16 %v1917
    %v2917 = vunpack.c.l.b16 %v1918
    %v2918 = vunpack.c.h.b16 %v1918
    %v2919 = vunpack.c.l.b16 %v1919
    %v2920 = vunpack.c.l.b16 %v1920
    %v2921 = vunpack.c.h.b16 %v1920
    %v2922 = vunpack.c.l.b16 %v1921
    %v2923 = vunpack.c.l.b16 %v1922
    %v2924 = vunpack.c.h.b16 %v1922
    %v2925 = vunpack.c.l.b16 %v1923
    %v2926 = vunpack.c.l.b16 %v1924
    %v2927 = vunpack.c.h.b16 %v1924
    %v2928 = vunpack.c.l.b16 %v1925
    %v2929 = vunpack.c.l.b16 %v1926
    %v2930 = vunpack.c.h.b16 %v1926
    %v2931 = vunpack.c.l.b16 %v1927
    %v2932 = vunpack.c.l.b16 %v1928
    %v2933 = vunpack.c.h.b16 %v1928
    %v2934 = vunpack.c.l.b16 %v1929
    %v2935 = vunpack.c.l.b16 %v1930
    %v2936 = vunpack.c.h.b16 %v1930
    %v2937 = vunpack.c.l.b16 %v1931
    %v2938 = vunpack.c.l.b16 %v1932
    %v2939 = vunpack.c.h.b16 %v1932
    %v2940 = vunpack.c.l.b16 %v1933
    %v2941 = vunpack.c.l.b16 %v1934
    %v2942 = vunpack.c.h.b16 %v1934
    %v2943 = vunpack.c.l.b16 %v1935
    %v2944 = vunpack.c.l.b16 %v1936
    %v2945 = vunpack.c.h.b16 %v1936
    %v2946 = vunpack.c.l.b16 %v1937
    %v2947 = vunpack.c.l.b16 %v1938
    %v2948 = vunpack.c.h.b16 %v1938
    %v2949 = vunpack.c.l.b16 %v1939
    %v2950 = vunpack.c.l.b16 %v1940
    %v2951 = vunpack.c.h.b16 %v1940
    %v2952 = vunpack.c.l.b16 %v1941
    %v2953 = vpack.c.b16 %v2764, %v2761
    %v2954 = vpack.c.b16 %v2765, %v2762
    %v2955 = vpack.c.b16 %v2766, %v2763
    %v2956 = vpack.c.b16 %v2770, %v2767
    %v2957 = vpack.c.b16 %v2771, %v2768
    %v2958 = vpack.c.b16 %v2772, %v2769
    %v2959 = vpack.c.b16 %v2776, %v2773
    %v2960 = vpack.c.b16 %v2777, %v2774
    %v2961 = vpack.c.b16 %v2778, %v2775
    %v2962 = vpack.c.b16 %v2782, %v2779
    %v2963 = vpack.c.b16 %v2783, %v2780
    %v2964 = vpack.c.b16 %v2784, %v2781
    %v2965 = vpack.c.b16 %v2788, %v2785
    %v2966 = vpack.c.b16 %v2789, %v2786
    %v2967 = vpack.c.b16 %v2790, %v2787
    %v2968 = vpack.c.b16 %v2794, %v2791
    %v2969 = vpack.c.b16 %v2795, %v2792
    %v2970 = vpack.c.b16 %v2796, %v2793
    %v2971 = vpack.c.b16 %v2800, %v2797
    %v2972 = vpack.c.b16 %v2801, %v2798
    %v2973 = vpack.c.b16 %v2802, %v2799
    %v2974 = vpack.c.b16 %v2806, %v2803
    %v2975 = vpack.c.b16 %v2807, %v2804
    %v2976 = vpack.c.b16 %v2808, %v2805
    %v2977 = vpack.c.b16 %v2812, %v2809
    %v2978 = vpack.c.b16 %v2813, %v2810
    %v2979 = vpack.c.b16 %v2814, %v2811
    %v2980 = vpack.c.b16 %v2818, %v2815
    %v2981 = vpack.c.b16 %v2819, %v2816
    %v2982 = vpack.c.b16 %v2820, %v2817
    %v2983 = vpack.c.b16 %v2824, %v2821
    %v2984 = vpack.c.b16 %v2825, %v2822
    %v2985 = vpack.c.b16 %v2826, %v2823
    %v2986 = vpack.c.b16 %v2830, %v2827
    %v2987 = vpack.c.b16 %v2831, %v2828
    %v2988 = vpack.c.b16 %v2832, %v2829
    %v2989 = vpack.c.b16 %v2836, %v2833
    %v2990 = vpack.c.b16 %v2837, %v2834
    %v2991 = vpack.c.b16 %v2838, %v2835
    %v2992 = vpack.c.b16 %v2842, %v2839
    %v2993 = vpack.c.b16 %v2843, %v2840
    %v2994 = vpack.c.b16 %v2844, %v2841
    %v2995 = vpack.c.b16 %v2848, %v2845
    %v2996 = vpack.c.b16 %v2849, %v2846
    %v2997 = vpack.c.b16 %v2850, %v2847
    %v2998 = vpack.c.b16 %v2854, %v2851
    %v2999 = vpack.c.b16 %v2855, %v2852
    %v3000 = vpack.c.b16 %v2856, %v2853
    %v3001 = vpack.c.b16 %v2860, %v2857
    %v3002 = vpack.c.b16 %v2861, %v2858
    %v3003 = vpack.c.b16 %v2862, %v2859
    %v3004 = vpack.c.b16 %v2866, %v2863
    %v3005 = vpack.c.b16 %v2867, %v2864
    %v3006 = vpack.c.b16 %v2868, %v2865
    %v3007 = vpack.c.b16 %v2872, %v2869
    %v3008 = vpack.c.b16 %v2873, %v2870
    %v3009 = vpack.c.b16 %v2874, %v2871
    %v3010 = vpack.c.b16 %v2878, %v2875
    %v3011 = vpack.c.b16 %v2879, %v2876
    %v3012 = vpack.c.b16 %v2880, %v2877
    %v3013 = vpack.c.b16 %v2884, %v2881
    %v3014 = vpack.c.b16 %v2885, %v2882
    %v3015 = vpack.c.b16 %v2886, %v2883
    %v3016 = vpack.c.b16 %v2890, %v2887
    %v3017 = vpack.c.b16 %v2891, %v2888
    %v3018 = vpack.c.b16 %v2892, %v2889
    %v3019 = vpack.c.b16 %v2896, %v2893
    %v3020 = vpack.c.b16 %v2897, %v2894
    %v3021 = vpack.c.b16 %v2898, %v2895
    %v3022 = vpack.c.b16 %v2902, %v2899
    %v3023 = vpack.c.b16 %v2903, %v2900
    %v3024 = vpack.c.b16 %v2904, %v2901
    %v3025 = vpack.c.b16 %v2908, %v2905
    %v3026 = vpack.c.b16 %v2909, %v2906
    %v3027 = vpack.c.b16 %v2910, %v2907
    %v3028 = vpack.c.b16 %v2914, %v2911
    %v3029 = vpack.c.b16 %v2915, %v2912
    %v3030 = vpack.c.b16 %v2916, %v2913
    %v3031 = vpack.c.b16 %v2920, %v2917
    %v3032 = vpack.c.b16 %v2921, %v2918
    %v3033 = vpack.c.b16 %v2922, %v2919
    %v3034 = vpack.c.b16 %v2926, %v2923
    %v3035 = vpack.c.b16 %v2927, %v2924
    %v3036 = vpack.c.b16 %v2928, %v2925
    %v3037 = vpack.c.b16 %v2932, %v2929
    %v3038 = vpack.c.b16 %v2933, %v2930
    %v3039 = vpack.c.b16 %v2934, %v2931
    %v3040 = vpack.c.b16 %v2938, %v2935
    %v3041 = vpack.c.b16 %v2939, %v2936
    %v3042 = vpack.c.b16 %v2940, %v2937
    %v3043 = vpack.c.b16 %v2944, %v2941
    %v3044 = vpack.c.b16 %v2945, %v2942
    %v3045 = vpack.c.b16 %v2946, %v2943
    %v3046 = vpack.c.b16 %v2950, %v2947
    %v3047 = vpack.c.b16 %v2951, %v2948
    %v3048 = vpack.c.b16 %v2952, %v2949
    %3145 = vmatprep.subr.bf16.mxu0 %v2954
    %3146 = vmatpush1.bf16.msra.mxu0 %v2953
    %3147 = vmatprep.subr.bf16.mxu0 %v2957
    %3148 = vmatpush1.bf16.msra.mxu0 %v2956
    %3149 = vmatprep.subr.bf16.mxu0 %v2960
    %3150 = vmatpush1.bf16.msra.mxu0 %v2959
    %3151 = vmatprep.subr.bf16.mxu0 %v2963
    %3152 = vmatpush1.bf16.msra.mxu0 %v2962
    %3153 = vmatprep.subr.bf16.mxu0 %v2966
    %3154 = vmatpush1.bf16.msra.mxu0 %v2965
    %3155 = vmatprep.subr.bf16.mxu0 %v2969
    %3156 = vmatpush1.bf16.msra.mxu0 %v2968
    %3157 = vmatprep.subr.bf16.mxu0 %v2972
    %3158 = vmatpush1.bf16.msra.mxu0 %v2971
    %3159 = vmatprep.subr.bf16.mxu0 %v2975
    %3160 = vmatpush1.bf16.msra.mxu0 %v2974
    %3161 = vmatprep.subr.bf16.mxu0 %v2978
    %3162 = vmatpush1.bf16.msra.mxu0 %v2977
    %3163 = vmatprep.subr.bf16.mxu0 %v2981
    %3164 = vmatpush1.bf16.msra.mxu0 %v2980
    %3165 = vmatprep.subr.bf16.mxu0 %v2984
    %3166 = vmatpush1.bf16.msra.mxu0 %v2983
    %3167 = vmatprep.subr.bf16.mxu0 %v2987
    %3168 = vmatpush1.bf16.msra.mxu0 %v2986
    %3169 = vmatprep.subr.bf16.mxu0 %v2990
    %3170 = vmatpush1.bf16.msra.mxu0 %v2989
    %3171 = vmatprep.subr.bf16.mxu0 %v2993
    %3172 = vmatpush1.bf16.msra.mxu0 %v2992
    %3173 = vmatprep.subr.bf16.mxu0 %v2996
    %3174 = vmatpush1.bf16.msra.mxu0 %v2995
    %3175 = vmatprep.subr.bf16.mxu0 %v2999
    %3176 = vmatpush1.bf16.msra.mxu0 %v2998
    %3177 = vmatprep.mubr.bf16.mxu0 %v2630
    %3178 = vmatmul.mubr.bf16.gmra.mrb[0].mxu0 %v2629
    %v3179 = vpop.f32.mrb[0].mxu0
    %v3180 = vadd.f32 0.0, %v3179
    %v3181 = vpop.f32.mrb[0].mxu0
    %v3182 = vadd.f32 0.0, %v3181
    %v3183 = vpop.f32.mrb[0].mxu0
    %v3184 = vadd.f32 0.0, %v3183
    %v3185 = vpop.f32.mrb[0].mxu0
    %v3186 = vadd.f32 0.0, %v3185
    %3187 = vdwg.mxu0
    %3188 = vmatprep.subr.bf16.mxu0 %v3002
    %3189 = vmatpush1.bf16.msra.mxu0 %v3001
    %3190 = vmatprep.subr.bf16.mxu0 %v3005
    %3191 = vmatpush1.bf16.msra.mxu0 %v3004
    %3192 = vmatprep.subr.bf16.mxu0 %v3008
    %3193 = vmatpush1.bf16.msra.mxu0 %v3007
    %3194 = vmatprep.subr.bf16.mxu0 %v3011
    %3195 = vmatpush1.bf16.msra.mxu0 %v3010
    %3196 = vmatprep.subr.bf16.mxu0 %v3014
    %3197 = vmatpush1.bf16.msra.mxu0 %v3013
    %3198 = vmatprep.subr.bf16.mxu0 %v3017
    %3199 = vmatpush1.bf16.msra.mxu0 %v3016
    %3200 = vmatprep.subr.bf16.mxu0 %v3020
    %3201 = vmatpush1.bf16.msra.mxu0 %v3019
    %3202 = vmatprep.subr.bf16.mxu0 %v3023
    %3203 = vmatpush1.bf16.msra.mxu0 %v3022
    %3204 = vmatprep.subr.bf16.mxu0 %v3026
    %3205 = vmatpush1.bf16.msra.mxu0 %v3025
    %3206 = vmatprep.subr.bf16.mxu0 %v3029
    %3207 = vmatpush1.bf16.msra.mxu0 %v3028
    %3208 = vmatprep.subr.bf16.mxu0 %v3032
    %3209 = vmatpush1.bf16.msra.mxu0 %v3031
    %3210 = vmatprep.subr.bf16.mxu0 %v3035
    %3211 = vmatpush1.bf16.msra.mxu0 %v3034
    %3212 = vmatprep.subr.bf16.mxu0 %v3038
    %3213 = vmatpush1.bf16.msra.mxu0 %v3037
    %3214 = vmatprep.subr.bf16.mxu0 %v3041
    %3215 = vmatpush1.bf16.msra.mxu0 %v3040
    %3216 = vmatprep.subr.bf16.mxu0 %v3044
    %3217 = vmatpush1.bf16.msra.mxu0 %v3043
    %3218 = vmatprep.subr.bf16.mxu0 %v3047
    %3219 = vmatpush1.bf16.msra.mxu0 %v3046
    %3220 = vmatprep.mubr.bf16.mxu0 %v2632
    %3221 = vmatmul.mubr.bf16.gmra.mrb[0].mxu0 %v2631
    %v3222 = vpop.f32.mrb[0].mxu0
    %v3223 = vadd.f32 %v3180, %v3222
    %v3224 = vpop.f32.mrb[0].mxu0
    %v3225 = vadd.f32 %v3182, %v3224
    %v3226 = vpop.f32.mrb[0].mxu0
    %v3227 = vadd.f32 %v3184, %v3226
    %v3228 = vpop.f32.mrb[0].mxu0
    %v3229 = vadd.f32 %v3186, %v3228
    %3230 = vdwg.mxu0
    %3231 = vmatprep.subr.bf16.mxu0 0
    %3232 = vmatpush1.bf16.msra.mxu0 %v2955
    %3233 = vmatprep.subr.bf16.mxu0 0
    %3234 = vmatpush1.bf16.msra.mxu0 %v2958
    %3235 = vmatprep.subr.bf16.mxu0 0
    %3236 = vmatpush1.bf16.msra.mxu0 %v2961
    %3237 = vmatprep.subr.bf16.mxu0 0
    %3238 = vmatpush1.bf16.msra.mxu0 %v2964
    %3239 = vmatprep.subr.bf16.mxu0 0
    %3240 = vmatpush1.bf16.msra.mxu0 %v2967
    %3241 = vmatprep.subr.bf16.mxu0 0
    %3242 = vmatpush1.bf16.msra.mxu0 %v2970
    %3243 = vmatprep.subr.bf16.mxu0 0
    %3244 = vmatpush1.bf16.msra.mxu0 %v2973
    %3245 = vmatprep.subr.bf16.mxu0 0
    %3246 = vmatpush1.bf16.msra.mxu0 %v2976
    %3247 = vmatprep.subr.bf16.mxu0 0
    %3248 = vmatpush1.bf16.msra.mxu0 %v2979
    %3249 = vmatprep.subr.bf16.mxu0 0
    %3250 = vmatpush1.bf16.msra.mxu0 %v2982
    %3251 = vmatprep.subr.bf16.mxu0 0
    %3252 = vmatpush1.bf16.msra.mxu0 %v2985
    %3253 = vmatprep.subr.bf16.mxu0 0
    %3254 = vmatpush1.bf16.msra.mxu0 %v2988
    %3255 = vmatprep.subr.bf16.mxu0 0
    %3256 = vmatpush1.bf16.msra.mxu0 %v2991
    %3257 = vmatprep.subr.bf16.mxu0 0
    %3258 = vmatpush1.bf16.msra.mxu0 %v2994
    %3259 = vmatprep.subr.bf16.mxu0 0
    %3260 = vmatpush1.bf16.msra.mxu0 %v2997
    %3261 = vmatprep.subr.bf16.mxu0 0
    %3262 = vmatpush1.bf16.msra.mxu0 %v3000
    %3263 = vmatprep.mubr.bf16.mxu0 %v2630
    %3264 = vmatmul.mubr.bf16.gmra.mrb[0].mxu0 %v2629
    %v3265 = vpop.f32.mrb[0].mxu0
    %v3266 = vadd.f32 0.0, %v3265
    %v3267 = vpop.f32.mrb[0].mxu0
    %v3268 = vpop.f32.mrb[0].mxu0
    %v3269 = vadd.f32 0.0, %v3268
    %v3270 = vpop.f32.mrb[0].mxu0
    %3271 = vdwg.mxu0
    %3272 = vmatprep.subr.bf16.mxu0 0
    %3273 = vmatpush1.bf16.msra.mxu0 %v3003
    %3274 = vmatprep.subr.bf16.mxu0 0
    %3275 = vmatpush1.bf16.msra.mxu0 %v3006
    %3276 = vmatprep.subr.bf16.mxu0 0
    %3277 = vmatpush1.bf16.msra.mxu0 %v3009
    %3278 = vmatprep.subr.bf16.mxu0 0
    %3279 = vmatpush1.bf16.msra.mxu0 %v3012
    %3280 = vmatprep.subr.bf16.mxu0 0
    %3281 = vmatpush1.bf16.msra.mxu0 %v3015
    %3282 = vmatprep.subr.bf16.mxu0 0
    %3283 = vmatpush1.bf16.msra.mxu0 %v3018
    %3284 = vmatprep.subr.bf16.mxu0 0
    %3285 = vmatpush1.bf16.msra.mxu0 %v3021
    %3286 = vmatprep.subr.bf16.mxu0 0
    %3287 = vmatpush1.bf16.msra.mxu0 %v3024
    %3288 = vmatprep.subr.bf16.mxu0 0
    %3289 = vmatpush1.bf16.msra.mxu0 %v3027
    %3290 = vmatprep.subr.bf16.mxu0 0
    %3291 = vmatpush1.bf16.msra.mxu0 %v3030
    %3292 = vmatprep.subr.bf16.mxu0 0
    %3293 = vmatpush1.bf16.msra.mxu0 %v3033
    %3294 = vmatprep.subr.bf16.mxu0 0
    %3295 = vmatpush1.bf16.msra.mxu0 %v3036
    %3296 = vmatprep.subr.bf16.mxu0 0
    %3297 = vmatpush1.bf16.msra.mxu0 %v3039
    %3298 = vmatprep.subr.bf16.mxu0 0
    %3299 = vmatpush1.bf16.msra.mxu0 %v3042
    %3300 = vmatprep.subr.bf16.mxu0 0
    %3301 = vmatpush1.bf16.msra.mxu0 %v3045
    %3302 = vmatprep.subr.bf16.mxu0 0
    %3303 = vmatpush1.bf16.msra.mxu0 %v3048
    %3304 = vmatprep.mubr.bf16.mxu0 %v2632
    %3305 = vmatmul.mubr.bf16.gmra.mrb[0].mxu0 %v2631
    %v3306 = vpop.f32.mrb[0].mxu0
    %v3307 = vadd.f32 %v3266, %v3306
    %v3308 = vpop.f32.mrb[0].mxu0
    %v3309 = vpop.f32.mrb[0].mxu0
    %v3310 = vadd.f32 %v3269, %v3309
    %v3311 = vpop.f32.mrb[0].mxu0
    %3312 = vdwg.mxu0
    %v3313 = vadd.f32 %v2623, %v3223
    %v3314 = vadd.f32 %v2624, %v3225
    %v3315 = vadd.f32 %v2625, %v3307
    %v3316 = vadd.f32 %v2626, %v3227
    %v3317 = vadd.f32 %v2627, %v3229
    %v3318 = vadd.f32 %v2628, %v3310
    %3319 = vst [vmem:[#allocation2] sm:$0xff] %v3313
    %3320 = vst [vmem:[#allocation2 + $0x8] sm:$0xff] %v3314
    %3321 = vst [vmem:[#allocation2 + $0x10] sm:$0xff] %v3315
    %3322 = vst [vmem:[#allocation2 + $0x18] sm:$0xff] %v3316
    %3323 = vst [vmem:[#allocation2 + $0x20] sm:$0xff] %v3317
    %3324 = vst [vmem:[#allocation2 + $0x28] sm:$0xff] %v3318
    %s3325 = scalar_lea.vmem [#allocation6], 32
    %v3326 = vld [vmem:[%s3325] sm:$0xff]
    %v3327 = vld [vmem:[%s3325 + $0x8] sm:$0xff]
    %v3328 = vld [vmem:[%s3325 + $0x30] sm:$0xff]
    %v3329 = vld [vmem:[%s3325 + $0x38] sm:$0xff]
    %v3330 = vld [vmem:[%s3325 + $0x60] sm:$0xff]
    %v3331 = vld [vmem:[%s3325 + $0x68] sm:$0xff]
    %v3332 = vld [vmem:[%s3325 + $0x90] sm:$0xff]
    %v3333 = vld [vmem:[%s3325 + $0x98] sm:$0xff]
    %v3334 = vld [vmem:[%s3325 + $0xc0] sm:$0xff]
    %v3335 = vld [vmem:[%s3325 + $0xc8] sm:$0xff]
    %v3336 = vld [vmem:[%s3325 + $0xf0] sm:$0xff]
    %v3337 = vld [vmem:[%s3325 + $0xf8] sm:$0xff]
    %v3338 = vld [vmem:[%s3325 + $0x120] sm:$0xff]
    %v3339 = vld [vmem:[%s3325 + $0x128] sm:$0xff]
    %v3340 = vld [vmem:[%s3325 + $0x150] sm:$0xff]
    %v3341 = vld [vmem:[%s3325 + $0x158] sm:$0xff]
    %v3342 = vld [vmem:[%s3325 + $0x180] sm:$0xff]
    %v3343 = vld [vmem:[%s3325 + $0x188] sm:$0xff]
    %v3344 = vld [vmem:[%s3325 + $0x1b0] sm:$0xff]
    %v3345 = vld [vmem:[%s3325 + $0x1b8] sm:$0xff]
    %v3346 = vld [vmem:[%s3325 + $0x1e0] sm:$0xff]
    %v3347 = vld [vmem:[%s3325 + $0x1e8] sm:$0xff]
    %v3348 = vld [vmem:[%s3325 + $0x210] sm:$0xff]
    %v3349 = vld [vmem:[%s3325 + $0x218] sm:$0xff]
    %v3350 = vld [vmem:[%s3325 + $0x240] sm:$0xff]
    %v3351 = vld [vmem:[%s3325 + $0x248] sm:$0xff]
    %v3352 = vld [vmem:[%s3325 + $0x270] sm:$0xff]
    %v3353 = vld [vmem:[%s3325 + $0x278] sm:$0xff]
    %v3354 = vld [vmem:[%s3325 + $0x2a0] sm:$0xff]
    %v3355 = vld [vmem:[%s3325 + $0x2a8] sm:$0xff]
    %v3356 = vld [vmem:[%s3325 + $0x2d0] sm:$0xff]
    %v3357 = vld [vmem:[%s3325 + $0x2d8] sm:$0xff]
    %v3358 = vld [vmem:[%s3325 + $0x300] sm:$0xff]
    %v3359 = vld [vmem:[%s3325 + $0x308] sm:$0xff]
    %v3360 = vld [vmem:[%s3325 + $0x330] sm:$0xff]
    %v3361 = vld [vmem:[%s3325 + $0x338] sm:$0xff]
    %v3362 = vld [vmem:[%s3325 + $0x360] sm:$0xff]
    %v3363 = vld [vmem:[%s3325 + $0x368] sm:$0xff]
    %v3364 = vld [vmem:[%s3325 + $0x390] sm:$0xff]
    %v3365 = vld [vmem:[%s3325 + $0x398] sm:$0xff]
    %v3366 = vld [vmem:[%s3325 + $0x3c0] sm:$0xff]
    %v3367 = vld [vmem:[%s3325 + $0x3c8] sm:$0xff]
    %v3368 = vld [vmem:[%s3325 + $0x3f0] sm:$0xff]
    %v3369 = vld [vmem:[%s3325 + $0x3f8] sm:$0xff]
    %v3370 = vld [vmem:[%s3325 + $0x420] sm:$0xff]
    %v3371 = vld [vmem:[%s3325 + $0x428] sm:$0xff]
    %v3372 = vld [vmem:[%s3325 + $0x450] sm:$0xff]
    %v3373 = vld [vmem:[%s3325 + $0x458] sm:$0xff]
    %v3374 = vld [vmem:[%s3325 + $0x480] sm:$0xff]
    %v3375 = vld [vmem:[%s3325 + $0x488] sm:$0xff]
    %v3376 = vld [vmem:[%s3325 + $0x4b0] sm:$0xff]
    %v3377 = vld [vmem:[%s3325 + $0x4b8] sm:$0xff]
    %v3378 = vld [vmem:[%s3325 + $0x4e0] sm:$0xff]
    %v3379 = vld [vmem:[%s3325 + $0x4e8] sm:$0xff]
    %v3380 = vld [vmem:[%s3325 + $0x510] sm:$0xff]
    %v3381 = vld [vmem:[%s3325 + $0x518] sm:$0xff]
    %v3382 = vld [vmem:[%s3325 + $0x540] sm:$0xff]
    %v3383 = vld [vmem:[%s3325 + $0x548] sm:$0xff]
    %v3384 = vld [vmem:[%s3325 + $0x570] sm:$0xff]
    %v3385 = vld [vmem:[%s3325 + $0x578] sm:$0xff]
    %v3386 = vld [vmem:[%s3325 + $0x5a0] sm:$0xff]
    %v3387 = vld [vmem:[%s3325 + $0x5a8] sm:$0xff]
    %v3388 = vld [vmem:[%s3325 + $0x5d0] sm:$0xff]
    %v3389 = vld [vmem:[%s3325 + $0x5d8] sm:$0xff]
    %v3390 = vld [vmem:[%s3325 + $0x600] sm:$0xff]
    %v3391 = vld [vmem:[%s3325 + $0x608] sm:$0xff]
    %v3392 = vld [vmem:[%s3325 + $0x630] sm:$0xff]
    %v3393 = vld [vmem:[%s3325 + $0x638] sm:$0xff]
    %v3394 = vld [vmem:[%s3325 + $0x660] sm:$0xff]
    %v3395 = vld [vmem:[%s3325 + $0x668] sm:$0xff]
    %v3396 = vld [vmem:[%s3325 + $0x690] sm:$0xff]
    %v3397 = vld [vmem:[%s3325 + $0x698] sm:$0xff]
    %v3398 = vld [vmem:[%s3325 + $0x6c0] sm:$0xff]
    %v3399 = vld [vmem:[%s3325 + $0x6c8] sm:$0xff]
    %v3400 = vld [vmem:[%s3325 + $0x6f0] sm:$0xff]
    %v3401 = vld [vmem:[%s3325 + $0x6f8] sm:$0xff]
    %v3402 = vld [vmem:[%s3325 + $0x720] sm:$0xff]
    %v3403 = vld [vmem:[%s3325 + $0x728] sm:$0xff]
    %v3404 = vld [vmem:[%s3325 + $0x750] sm:$0xff]
    %v3405 = vld [vmem:[%s3325 + $0x758] sm:$0xff]
    %v3406 = vld [vmem:[%s3325 + $0x780] sm:$0xff]
    %v3407 = vld [vmem:[%s3325 + $0x788] sm:$0xff]
    %v3408 = vld [vmem:[%s3325 + $0x7b0] sm:$0xff]
    %v3409 = vld [vmem:[%s3325 + $0x7b8] sm:$0xff]
    %v3410 = vld [vmem:[%s3325 + $0x7e0] sm:$0xff]
    %v3411 = vld [vmem:[%s3325 + $0x7e8] sm:$0xff]
    %v3412 = vld [vmem:[%s3325 + $0x810] sm:$0xff]
    %v3413 = vld [vmem:[%s3325 + $0x818] sm:$0xff]
    %v3414 = vld [vmem:[%s3325 + $0x840] sm:$0xff]
    %v3415 = vld [vmem:[%s3325 + $0x848] sm:$0xff]
    %v3416 = vld [vmem:[%s3325 + $0x870] sm:$0xff]
    %v3417 = vld [vmem:[%s3325 + $0x878] sm:$0xff]
    %v3418 = vld [vmem:[%s3325 + $0x8a0] sm:$0xff]
    %v3419 = vld [vmem:[%s3325 + $0x8a8] sm:$0xff]
    %v3420 = vld [vmem:[%s3325 + $0x8d0] sm:$0xff]
    %v3421 = vld [vmem:[%s3325 + $0x8d8] sm:$0xff]
    %s3422 = scalar_lea.vmem [#allocation8], 8
    %v3423 = vld [vmem:[%s3422] sm:$0xf]
    %s3424 = smul.u32 128, 3
    %s3425 = smul.addr %s3424, 4
    %s3426 = scalar_lea.vmem [#allocation9], %s3425
    %v3427 = vld [vmem:[%s3426] sm:$0xff]
    %v3428 = vld [vmem:[%s3426 + $0x8] sm:$0xf]
    %v3429 = vld [vmem:[%s3426 + $0xc] sm:$0xff]
    %v3430 = vld [vmem:[%s3426 + $0x14] sm:$0xf]
    %v3431 = vld [vmem:[%s3426 + $0x18] sm:$0xff]
    %v3432 = vld [vmem:[%s3426 + $0x20] sm:$0xf]
    %v3433 = vld [vmem:[%s3426 + $0x24] sm:$0xff]
    %v3434 = vld [vmem:[%s3426 + $0x2c] sm:$0xf]
    %v3435 = vld [vmem:[%s3426 + $0x30] sm:$0xff]
    %v3436 = vld [vmem:[%s3426 + $0x38] sm:$0xf]
    %v3437 = vld [vmem:[%s3426 + $0x3c] sm:$0xff]
    %v3438 = vld [vmem:[%s3426 + $0x44] sm:$0xf]
    %v3439 = vld [vmem:[%s3426 + $0x48] sm:$0xff]
    %v3440 = vld [vmem:[%s3426 + $0x50] sm:$0xf]
    %v3441 = vld [vmem:[%s3426 + $0x54] sm:$0xff]
    %v3442 = vld [vmem:[%s3426 + $0x5c] sm:$0xf]
    %v3443 = vld [vmem:[%s3426 + $0x60] sm:$0xff]
    %v3444 = vld [vmem:[%s3426 + $0x68] sm:$0xf]
    %v3445 = vld [vmem:[%s3426 + $0x6c] sm:$0xff]
    %v3446 = vld [vmem:[%s3426 + $0x74] sm:$0xf]
    %v3447 = vld [vmem:[%s3426 + $0x78] sm:$0xff]
    %v3448 = vld [vmem:[%s3426 + $0x80] sm:$0xf]
    %v3449 = vld [vmem:[%s3426 + $0x84] sm:$0xff]
    %v3450 = vld [vmem:[%s3426 + $0x8c] sm:$0xf]
    %v3451 = vld [vmem:[%s3426 + $0x90] sm:$0xff]
    %v3452 = vld [vmem:[%s3426 + $0x98] sm:$0xf]
    %v3453 = vld [vmem:[%s3426 + $0x9c] sm:$0xff]
    %v3454 = vld [vmem:[%s3426 + $0xa4] sm:$0xf]
    %v3455 = vld [vmem:[%s3426 + $0xa8] sm:$0xff]
    %v3456 = vld [vmem:[%s3426 + $0xb0] sm:$0xf]
    %v3457 = vld [vmem:[%s3426 + $0xb4] sm:$0xff]
    %v3458 = vld [vmem:[%s3426 + $0xbc] sm:$0xf]
    %v3459 = vld [vmem:[%s3426 + $0xc0] sm:$0xff]
    %v3460 = vld [vmem:[%s3426 + $0xc8] sm:$0xf]
    %v3461 = vld [vmem:[%s3426 + $0xcc] sm:$0xff]
    %v3462 = vld [vmem:[%s3426 + $0xd4] sm:$0xf]
    %v3463 = vld [vmem:[%s3426 + $0xd8] sm:$0xff]
    %v3464 = vld [vmem:[%s3426 + $0xe0] sm:$0xf]
    %v3465 = vld [vmem:[%s3426 + $0xe4] sm:$0xff]
    %v3466 = vld [vmem:[%s3426 + $0xec] sm:$0xf]
    %v3467 = vld [vmem:[%s3426 + $0xf0] sm:$0xff]
    %v3468 = vld [vmem:[%s3426 + $0xf8] sm:$0xf]
    %v3469 = vld [vmem:[%s3426 + $0xfc] sm:$0xff]
    %v3470 = vld [vmem:[%s3426 + $0x104] sm:$0xf]
    %v3471 = vld [vmem:[%s3426 + $0x108] sm:$0xff]
    %v3472 = vld [vmem:[%s3426 + $0x110] sm:$0xf]
    %v3473 = vld [vmem:[%s3426 + $0x114] sm:$0xff]
    %v3474 = vld [vmem:[%s3426 + $0x11c] sm:$0xf]
    %v3475 = vld [vmem:[%s3426 + $0x120] sm:$0xff]
    %v3476 = vld [vmem:[%s3426 + $0x128] sm:$0xf]
    %v3477 = vld [vmem:[%s3426 + $0x12c] sm:$0xff]
    %v3478 = vld [vmem:[%s3426 + $0x134] sm:$0xf]
    %v3479 = vld [vmem:[%s3426 + $0x138] sm:$0xff]
    %v3480 = vld [vmem:[%s3426 + $0x140] sm:$0xf]
    %v3481 = vld [vmem:[%s3426 + $0x144] sm:$0xff]
    %v3482 = vld [vmem:[%s3426 + $0x14c] sm:$0xf]
    %v3483 = vld [vmem:[%s3426 + $0x150] sm:$0xff]
    %v3484 = vld [vmem:[%s3426 + $0x158] sm:$0xf]
    %v3485 = vld [vmem:[%s3426 + $0x15c] sm:$0xff]
    %v3486 = vld [vmem:[%s3426 + $0x164] sm:$0xf]
    %v3487 = vld [vmem:[%s3426 + $0x168] sm:$0xff]
    %v3488 = vld [vmem:[%s3426 + $0x170] sm:$0xf]
    %v3489 = vld [vmem:[%s3426 + $0x174] sm:$0xff]
    %v3490 = vld [vmem:[%s3426 + $0x17c] sm:$0xf]
    %v3491 = vld [vmem:[%s3426 + $0x180] sm:$0xff]
    %v3492 = vld [vmem:[%s3426 + $0x188] sm:$0xf]
    %v3493 = vld [vmem:[%s3426 + $0x18c] sm:$0xff]
    %v3494 = vld [vmem:[%s3426 + $0x194] sm:$0xf]
    %v3495 = vld [vmem:[%s3426 + $0x198] sm:$0xff]
    %v3496 = vld [vmem:[%s3426 + $0x1a0] sm:$0xf]
    %v3497 = vld [vmem:[%s3426 + $0x1a4] sm:$0xff]
    %v3498 = vld [vmem:[%s3426 + $0x1ac] sm:$0xf]
    %v3499 = vld [vmem:[%s3426 + $0x1b0] sm:$0xff]
    %v3500 = vld [vmem:[%s3426 + $0x1b8] sm:$0xf]
    %v3501 = vld [vmem:[%s3426 + $0x1bc] sm:$0xff]
    %v3502 = vld [vmem:[%s3426 + $0x1c4] sm:$0xf]
    %v3503 = vld [vmem:[%s3426 + $0x1c8] sm:$0xff]
    %v3504 = vld [vmem:[%s3426 + $0x1d0] sm:$0xf]
    %v3505 = vld [vmem:[%s3426 + $0x1d4] sm:$0xff]
    %v3506 = vld [vmem:[%s3426 + $0x1dc] sm:$0xf]
    %v3507 = vld [vmem:[%s3426 + $0x1e0] sm:$0xff]
    %v3508 = vld [vmem:[%s3426 + $0x1e8] sm:$0xf]
    %v3509 = vld [vmem:[%s3426 + $0x1ec] sm:$0xff]
    %v3510 = vld [vmem:[%s3426 + $0x1f4] sm:$0xf]
    %v3511 = vld [vmem:[%s3426 + $0x1f8] sm:$0xff]
    %v3512 = vld [vmem:[%s3426 + $0x200] sm:$0xf]
    %v3513 = vld [vmem:[%s3426 + $0x204] sm:$0xff]
    %v3514 = vld [vmem:[%s3426 + $0x20c] sm:$0xf]
    %v3515 = vld [vmem:[%s3426 + $0x210] sm:$0xff]
    %v3516 = vld [vmem:[%s3426 + $0x218] sm:$0xf]
    %v3517 = vld [vmem:[%s3426 + $0x21c] sm:$0xff]
    %v3518 = vld [vmem:[%s3426 + $0x224] sm:$0xf]
    %v3519 = vld [vmem:[%s3426 + $0x228] sm:$0xff]
    %v3520 = vld [vmem:[%s3426 + $0x230] sm:$0xf]
    %v3521 = vld [vmem:[%s3426 + $0x234] sm:$0xff]
    %v3522 = vld [vmem:[%s3426 + $0x23c] sm:$0xf]
    %v3523 = vld [vmem:[%s3426 + $0x240] sm:$0xff]
    %v3524 = vld [vmem:[%s3426 + $0x248] sm:$0xf]
    %v3525 = vld [vmem:[%s3426 + $0x24c] sm:$0xff]
    %v3526 = vld [vmem:[%s3426 + $0x254] sm:$0xf]
    %v3527 = vld [vmem:[%s3426 + $0x258] sm:$0xff]
    %v3528 = vld [vmem:[%s3426 + $0x260] sm:$0xf]
    %v3529 = vld [vmem:[%s3426 + $0x264] sm:$0xff]
    %v3530 = vld [vmem:[%s3426 + $0x26c] sm:$0xf]
    %v3531 = vld [vmem:[%s3426 + $0x270] sm:$0xff]
    %v3532 = vld [vmem:[%s3426 + $0x278] sm:$0xf]
    %v3533 = vld [vmem:[%s3426 + $0x27c] sm:$0xff]
    %v3534 = vld [vmem:[%s3426 + $0x284] sm:$0xf]
    %v3535 = vld [vmem:[%s3426 + $0x288] sm:$0xff]
    %v3536 = vld [vmem:[%s3426 + $0x290] sm:$0xf]
    %v3537 = vld [vmem:[%s3426 + $0x294] sm:$0xff]
    %v3538 = vld [vmem:[%s3426 + $0x29c] sm:$0xf]
    %v3539 = vld [vmem:[%s3426 + $0x2a0] sm:$0xff]
    %v3540 = vld [vmem:[%s3426 + $0x2a8] sm:$0xf]
    %v3541 = vld [vmem:[%s3426 + $0x2ac] sm:$0xff]
    %v3542 = vld [vmem:[%s3426 + $0x2b4] sm:$0xf]
    %v3543 = vld [vmem:[%s3426 + $0x2b8] sm:$0xff]
    %v3544 = vld [vmem:[%s3426 + $0x2c0] sm:$0xf]
    %v3545 = vld [vmem:[%s3426 + $0x2c4] sm:$0xff]
    %v3546 = vld [vmem:[%s3426 + $0x2cc] sm:$0xf]
    %v3547 = vld [vmem:[%s3426 + $0x2d0] sm:$0xff]
    %v3548 = vld [vmem:[%s3426 + $0x2d8] sm:$0xf]
    %v3549 = vld [vmem:[%s3426 + $0x2dc] sm:$0xff]
    %v3550 = vld [vmem:[%s3426 + $0x2e4] sm:$0xf]
    %v3551 = vld [vmem:[%s3426 + $0x2e8] sm:$0xff]
    %v3552 = vld [vmem:[%s3426 + $0x2f0] sm:$0xf]
    %v3553 = vld [vmem:[%s3426 + $0x2f4] sm:$0xff]
    %v3554 = vld [vmem:[%s3426 + $0x2fc] sm:$0xf]
    %v3556 = vlaneseq
    %v3557 = vshrl.u32 %v3556, 7
    %v3558 = vsub.s32 0, %v3557
    %v3559 = vrot.slane %v3423, %v3558
    %v3560 = vlaneseq
    %v3561 = vshrl.u32 %v3560, 7
    %v3562 = vsub.s32 1, %v3561
    %v3563 = vrot.slane %v3423, %v3562
    %v3564 = vlaneseq
    %v3565 = vshrl.u32 %v3564, 7
    %v3566 = vsub.s32 2, %v3565
    %v3567 = vrot.slane %v3423, %v3566
    %v3568 = vlaneseq
    %v3569 = vshrl.u32 %v3568, 7
    %v3570 = vsub.s32 3, %v3569
    %v3571 = vrot.slane %v3423, %v3570
    %v3672 = vunpack.c.l.b16 %v3326
    %v3673 = vunpack.c.h.b16 %v3326
    %v3674 = vunpack.c.l.b16 %v3327
    %v3675 = vunpack.c.h.b16 %v3327
    %v3676 = vunpack.c.l.b16 %v3328
    %v3677 = vunpack.c.h.b16 %v3328
    %v3678 = vunpack.c.l.b16 %v3329
    %v3679 = vunpack.c.h.b16 %v3329
    %v3680 = vunpack.c.l.b16 %v3330
    %v3681 = vunpack.c.h.b16 %v3330
    %v3682 = vunpack.c.l.b16 %v3331
    %v3683 = vunpack.c.h.b16 %v3331
    %v3684 = vunpack.c.l.b16 %v3332
    %v3685 = vunpack.c.h.b16 %v3332
    %v3686 = vunpack.c.l.b16 %v3333
    %v3687 = vunpack.c.h.b16 %v3333
    %v3688 = vunpack.c.l.b16 %v3334
    %v3689 = vunpack.c.h.b16 %v3334
    %v3690 = vunpack.c.l.b16 %v3335
    %v3691 = vunpack.c.h.b16 %v3335
    %v3692 = vunpack.c.l.b16 %v3336
    %v3693 = vunpack.c.h.b16 %v3336
    %v3694 = vunpack.c.l.b16 %v3337
    %v3695 = vunpack.c.h.b16 %v3337
    %v3696 = vunpack.c.l.b16 %v3338
    %v3697 = vunpack.c.h.b16 %v3338
    %v3698 = vunpack.c.l.b16 %v3339
    %v3699 = vunpack.c.h.b16 %v3339
    %v3700 = vunpack.c.l.b16 %v3340
    %v3701 = vunpack.c.h.b16 %v3340
    %v3702 = vunpack.c.l.b16 %v3341
    %v3703 = vunpack.c.h.b16 %v3341
    %v3704 = vunpack.c.l.b16 %v3342
    %v3705 = vunpack.c.h.b16 %v3342
    %v3706 = vunpack.c.l.b16 %v3343
    %v3707 = vunpack.c.h.b16 %v3343
    %v3708 = vunpack.c.l.b16 %v3344
    %v3709 = vunpack.c.h.b16 %v3344
    %v3710 = vunpack.c.l.b16 %v3345
    %v3711 = vunpack.c.h.b16 %v3345
    %v3712 = vunpack.c.l.b16 %v3346
    %v3713 = vunpack.c.h.b16 %v3346
    %v3714 = vunpack.c.l.b16 %v3347
    %v3715 = vunpack.c.h.b16 %v3347
    %v3716 = vunpack.c.l.b16 %v3348
    %v3717 = vunpack.c.h.b16 %v3348
    %v3718 = vunpack.c.l.b16 %v3349
    %v3719 = vunpack.c.h.b16 %v3349
    %v3720 = vunpack.c.l.b16 %v3350
    %v3721 = vunpack.c.h.b16 %v3350
    %v3722 = vunpack.c.l.b16 %v3351
    %v3723 = vunpack.c.h.b16 %v3351
    %v3724 = vunpack.c.l.b16 %v3352
    %v3725 = vunpack.c.h.b16 %v3352
    %v3726 = vunpack.c.l.b16 %v3353
    %v3727 = vunpack.c.h.b16 %v3353
    %v3728 = vunpack.c.l.b16 %v3354
    %v3729 = vunpack.c.h.b16 %v3354
    %v3730 = vunpack.c.l.b16 %v3355
    %v3731 = vunpack.c.h.b16 %v3355
    %v3732 = vunpack.c.l.b16 %v3356
    %v3733 = vunpack.c.h.b16 %v3356
    %v3734 = vunpack.c.l.b16 %v3357
    %v3735 = vunpack.c.h.b16 %v3357
    %v3736 = vunpack.c.l.b16 %v3358
    %v3737 = vunpack.c.h.b16 %v3358
    %v3738 = vunpack.c.l.b16 %v3359
    %v3739 = vunpack.c.h.b16 %v3359
    %v3740 = vunpack.c.l.b16 %v3360
    %v3741 = vunpack.c.h.b16 %v3360
    %v3742 = vunpack.c.l.b16 %v3361
    %v3743 = vunpack.c.h.b16 %v3361
    %v3744 = vunpack.c.l.b16 %v3362
    %v3745 = vunpack.c.h.b16 %v3362
    %v3746 = vunpack.c.l.b16 %v3363
    %v3747 = vunpack.c.h.b16 %v3363
    %v3748 = vunpack.c.l.b16 %v3364
    %v3749 = vunpack.c.h.b16 %v3364
    %v3750 = vunpack.c.l.b16 %v3365
    %v3751 = vunpack.c.h.b16 %v3365
    %v3752 = vunpack.c.l.b16 %v3366
    %v3753 = vunpack.c.h.b16 %v3366
    %v3754 = vunpack.c.l.b16 %v3367
    %v3755 = vunpack.c.h.b16 %v3367
    %v3756 = vunpack.c.l.b16 %v3368
    %v3757 = vunpack.c.h.b16 %v3368
    %v3758 = vunpack.c.l.b16 %v3369
    %v3759 = vunpack.c.h.b16 %v3369
    %v3760 = vunpack.c.l.b16 %v3370
    %v3761 = vunpack.c.h.b16 %v3370
    %v3762 = vunpack.c.l.b16 %v3371
    %v3763 = vunpack.c.h.b16 %v3371
    %v3764 = vunpack.c.l.b16 %v3372
    %v3765 = vunpack.c.h.b16 %v3372
    %v3766 = vunpack.c.l.b16 %v3373
    %v3767 = vunpack.c.h.b16 %v3373
    %v3768 = vunpack.c.l.b16 %v3374
    %v3769 = vunpack.c.h.b16 %v3374
    %v3770 = vunpack.c.l.b16 %v3375
    %v3771 = vunpack.c.h.b16 %v3375
    %v3772 = vunpack.c.l.b16 %v3376
    %v3773 = vunpack.c.h.b16 %v3376
    %v3774 = vunpack.c.l.b16 %v3377
    %v3775 = vunpack.c.h.b16 %v3377
    %v3776 = vunpack.c.l.b16 %v3378
    %v3777 = vunpack.c.h.b16 %v3378
    %v3778 = vunpack.c.l.b16 %v3379
    %v3779 = vunpack.c.h.b16 %v3379
    %v3780 = vunpack.c.l.b16 %v3380
    %v3781 = vunpack.c.h.b16 %v3380
    %v3782 = vunpack.c.l.b16 %v3381
    %v3783 = vunpack.c.h.b16 %v3381
    %v3784 = vunpack.c.l.b16 %v3382
    %v3785 = vunpack.c.h.b16 %v3382
    %v3786 = vunpack.c.l.b16 %v3383
    %v3787 = vunpack.c.h.b16 %v3383
    %v3788 = vunpack.c.l.b16 %v3384
    %v3789 = vunpack.c.h.b16 %v3384
    %v3790 = vunpack.c.l.b16 %v3385
    %v3791 = vunpack.c.h.b16 %v3385
    %v3792 = vunpack.c.l.b16 %v3386
    %v3793 = vunpack.c.h.b16 %v3386
    %v3794 = vunpack.c.l.b16 %v3387
    %v3795 = vunpack.c.h.b16 %v3387
    %v3796 = vunpack.c.l.b16 %v3388
    %v3797 = vunpack.c.h.b16 %v3388
    %v3798 = vunpack.c.l.b16 %v3389
    %v3799 = vunpack.c.h.b16 %v3389
    %v3800 = vunpack.c.l.b16 %v3390
    %v3801 = vunpack.c.h.b16 %v3390
    %v3802 = vunpack.c.l.b16 %v3391
    %v3803 = vunpack.c.h.b16 %v3391
    %v3804 = vunpack.c.l.b16 %v3392
    %v3805 = vunpack.c.h.b16 %v3392
    %v3806 = vunpack.c.l.b16 %v3393
    %v3807 = vunpack.c.h.b16 %v3393
    %v3808 = vunpack.c.l.b16 %v3394
    %v3809 = vunpack.c.h.b16 %v3394
    %v3810 = vunpack.c.l.b16 %v3395
    %v3811 = vunpack.c.h.b16 %v3395
    %v3812 = vunpack.c.l.b16 %v3396
    %v3813 = vunpack.c.h.b16 %v3396
    %v3814 = vunpack.c.l.b16 %v3397
    %v3815 = vunpack.c.h.b16 %v3397
    %v3816 = vunpack.c.l.b16 %v3398
    %v3817 = vunpack.c.h.b16 %v3398
    %v3818 = vunpack.c.l.b16 %v3399
    %v3819 = vunpack.c.h.b16 %v3399
    %v3820 = vunpack.c.l.b16 %v3400
    %v3821 = vunpack.c.h.b16 %v3400
    %v3822 = vunpack.c.l.b16 %v3401
    %v3823 = vunpack.c.h.b16 %v3401
    %v3824 = vunpack.c.l.b16 %v3402
    %v3825 = vunpack.c.h.b16 %v3402
    %v3826 = vunpack.c.l.b16 %v3403
    %v3827 = vunpack.c.h.b16 %v3403
    %v3828 = vunpack.c.l.b16 %v3404
    %v3829 = vunpack.c.h.b16 %v3404
    %v3830 = vunpack.c.l.b16 %v3405
    %v3831 = vunpack.c.h.b16 %v3405
    %v3832 = vunpack.c.l.b16 %v3406
    %v3833 = vunpack.c.h.b16 %v3406
    %v3834 = vunpack.c.l.b16 %v3407
    %v3835 = vunpack.c.h.b16 %v3407
    %v3836 = vunpack.c.l.b16 %v3408
    %v3837 = vunpack.c.h.b16 %v3408
    %v3838 = vunpack.c.l.b16 %v3409
    %v3839 = vunpack.c.h.b16 %v3409
    %v3840 = vunpack.c.l.b16 %v3410
    %v3841 = vunpack.c.h.b16 %v3410
    %v3842 = vunpack.c.l.b16 %v3411
    %v3843 = vunpack.c.h.b16 %v3411
    %v3844 = vunpack.c.l.b16 %v3412
    %v3845 = vunpack.c.h.b16 %v3412
    %v3846 = vunpack.c.l.b16 %v3413
    %v3847 = vunpack.c.h.b16 %v3413
    %v3848 = vunpack.c.l.b16 %v3414
    %v3849 = vunpack.c.h.b16 %v3414
    %v3850 = vunpack.c.l.b16 %v3415
    %v3851 = vunpack.c.h.b16 %v3415
    %v3852 = vunpack.c.l.b16 %v3416
    %v3853 = vunpack.c.h.b16 %v3416
    %v3854 = vunpack.c.l.b16 %v3417
    %v3855 = vunpack.c.h.b16 %v3417
    %v3856 = vunpack.c.l.b16 %v3418
    %v3857 = vunpack.c.h.b16 %v3418
    %v3858 = vunpack.c.l.b16 %v3419
    %v3859 = vunpack.c.h.b16 %v3419
    %v3860 = vunpack.c.l.b16 %v3420
    %v3861 = vunpack.c.h.b16 %v3420
    %v3862 = vunpack.c.l.b16 %v3421
    %v3863 = vunpack.c.h.b16 %v3421
    %v3864 = vpack.c.b16 %v3676, %v3672
    %v3865 = vpack.c.b16 %v3677, %v3673
    %v3866 = vpack.c.b16 %v3678, %v3674
    %v3867 = vpack.c.b16 %v3679, %v3675
    %v3868 = vpack.c.b16 %v3684, %v3680
    %v3869 = vpack.c.b16 %v3685, %v3681
    %v3870 = vpack.c.b16 %v3686, %v3682
    %v3871 = vpack.c.b16 %v3687, %v3683
    %v3872 = vpack.c.b16 %v3692, %v3688
    %v3873 = vpack.c.b16 %v3693, %v3689
    %v3874 = vpack.c.b16 %v3694, %v3690
    %v3875 = vpack.c.b16 %v3695, %v3691
    %v3876 = vpack.c.b16 %v3700, %v3696
    %v3877 = vpack.c.b16 %v3701, %v3697
    %v3878 = vpack.c.b16 %v3702, %v3698
    %v3879 = vpack.c.b16 %v3703, %v3699
    %v3880 = vpack.c.b16 %v3708, %v3704
    %v3881 = vpack.c.b16 %v3709, %v3705
    %v3882 = vpack.c.b16 %v3710, %v3706
    %v3883 = vpack.c.b16 %v3711, %v3707
    %v3884 = vpack.c.b16 %v3716, %v3712
    %v3885 = vpack.c.b16 %v3717, %v3713
    %v3886 = vpack.c.b16 %v3718, %v3714
    %v3887 = vpack.c.b16 %v3719, %v3715
    %v3888 = vpack.c.b16 %v3724, %v3720
    %v3889 = vpack.c.b16 %v3725, %v3721
    %v3890 = vpack.c.b16 %v3726, %v3722
    %v3891 = vpack.c.b16 %v3727, %v3723
    %v3892 = vpack.c.b16 %v3732, %v3728
    %v3893 = vpack.c.b16 %v3733, %v3729
    %v3894 = vpack.c.b16 %v3734, %v3730
    %v3895 = vpack.c.b16 %v3735, %v3731
    %v3896 = vpack.c.b16 %v3740, %v3736
    %v3897 = vpack.c.b16 %v3741, %v3737
    %v3898 = vpack.c.b16 %v3742, %v3738
    %v3899 = vpack.c.b16 %v3743, %v3739
    %v3900 = vpack.c.b16 %v3748, %v3744
    %v3901 = vpack.c.b16 %v3749, %v3745
    %v3902 = vpack.c.b16 %v3750, %v3746
    %v3903 = vpack.c.b16 %v3751, %v3747
    %v3904 = vpack.c.b16 %v3756, %v3752
    %v3905 = vpack.c.b16 %v3757, %v3753
    %v3906 = vpack.c.b16 %v3758, %v3754
    %v3907 = vpack.c.b16 %v3759, %v3755
    %v3908 = vpack.c.b16 %v3764, %v3760
    %v3909 = vpack.c.b16 %v3765, %v3761
    %v3910 = vpack.c.b16 %v3766, %v3762
    %v3911 = vpack.c.b16 %v3767, %v3763
    %v3912 = vpack.c.b16 %v3772, %v3768
    %v3913 = vpack.c.b16 %v3773, %v3769
    %v3914 = vpack.c.b16 %v3774, %v3770
    %v3915 = vpack.c.b16 %v3775, %v3771
    %v3916 = vpack.c.b16 %v3780, %v3776
    %v3917 = vpack.c.b16 %v3781, %v3777
    %v3918 = vpack.c.b16 %v3782, %v3778
    %v3919 = vpack.c.b16 %v3783, %v3779
    %v3920 = vpack.c.b16 %v3788, %v3784
    %v3921 = vpack.c.b16 %v3789, %v3785
    %v3922 = vpack.c.b16 %v3790, %v3786
    %v3923 = vpack.c.b16 %v3791, %v3787
    %v3924 = vpack.c.b16 %v3796, %v3792
    %v3925 = vpack.c.b16 %v3797, %v3793
    %v3926 = vpack.c.b16 %v3798, %v3794
    %v3927 = vpack.c.b16 %v3799, %v3795
    %v3928 = vpack.c.b16 %v3804, %v3800
    %v3929 = vpack.c.b16 %v3805, %v3801
    %v3930 = vpack.c.b16 %v3806, %v3802
    %v3931 = vpack.c.b16 %v3807, %v3803
    %v3932 = vpack.c.b16 %v3812, %v3808
    %v3933 = vpack.c.b16 %v3813, %v3809
    %v3934 = vpack.c.b16 %v3814, %v3810
    %v3935 = vpack.c.b16 %v3815, %v3811
    %v3936 = vpack.c.b16 %v3820, %v3816
    %v3937 = vpack.c.b16 %v3821, %v3817
    %v3938 = vpack.c.b16 %v3822, %v3818
    %v3939 = vpack.c.b16 %v3823, %v3819
    %v3940 = vpack.c.b16 %v3828, %v3824
    %v3941 = vpack.c.b16 %v3829, %v3825
    %v3942 = vpack.c.b16 %v3830, %v3826
    %v3943 = vpack.c.b16 %v3831, %v3827
    %v3944 = vpack.c.b16 %v3836, %v3832
    %v3945 = vpack.c.b16 %v3837, %v3833
    %v3946 = vpack.c.b16 %v3838, %v3834
    %v3947 = vpack.c.b16 %v3839, %v3835
    %v3948 = vpack.c.b16 %v3844, %v3840
    %v3949 = vpack.c.b16 %v3845, %v3841
    %v3950 = vpack.c.b16 %v3846, %v3842
    %v3951 = vpack.c.b16 %v3847, %v3843
    %v3952 = vpack.c.b16 %v3852, %v3848
    %v3953 = vpack.c.b16 %v3853, %v3849
    %v3954 = vpack.c.b16 %v3854, %v3850
    %v3955 = vpack.c.b16 %v3855, %v3851
    %v3956 = vpack.c.b16 %v3860, %v3856
    %v3957 = vpack.c.b16 %v3861, %v3857
    %v3958 = vpack.c.b16 %v3862, %v3858
    %v3959 = vpack.c.b16 %v3863, %v3859
    %4056 = vmatprep.subr.bf16.mxu0 %v3865
    %4057 = vmatpush1.bf16.msra.mxu0 %v3864
    %4058 = vmatprep.subr.bf16.mxu0 %v3869
    %4059 = vmatpush1.bf16.msra.mxu0 %v3868
    %4060 = vmatprep.subr.bf16.mxu0 %v3873
    %4061 = vmatpush1.bf16.msra.mxu0 %v3872
    %4062 = vmatprep.subr.bf16.mxu0 %v3877
    %4063 = vmatpush1.bf16.msra.mxu0 %v3876
    %4064 = vmatprep.subr.bf16.mxu0 %v3881
    %4065 = vmatpush1.bf16.msra.mxu0 %v3880
    %4066 = vmatprep.subr.bf16.mxu0 %v3885
    %4067 = vmatpush1.bf16.msra.mxu0 %v3884
    %4068 = vmatprep.subr.bf16.mxu0 %v3889
    %4069 = vmatpush1.bf16.msra.mxu0 %v3888
    %4070 = vmatprep.subr.bf16.mxu0 %v3893
    %4071 = vmatpush1.bf16.msra.mxu0 %v3892
    %4072 = vmatprep.subr.bf16.mxu0 %v3897
    %4073 = vmatpush1.bf16.msra.mxu0 %v3896
    %4074 = vmatprep.subr.bf16.mxu0 %v3901
    %4075 = vmatpush1.bf16.msra.mxu0 %v3900
    %4076 = vmatprep.subr.bf16.mxu0 %v3905
    %4077 = vmatpush1.bf16.msra.mxu0 %v3904
    %4078 = vmatprep.subr.bf16.mxu0 %v3909
    %4079 = vmatpush1.bf16.msra.mxu0 %v3908
    %4080 = vmatprep.subr.bf16.mxu0 %v3913
    %4081 = vmatpush1.bf16.msra.mxu0 %v3912
    %4082 = vmatprep.subr.bf16.mxu0 %v3917
    %4083 = vmatpush1.bf16.msra.mxu0 %v3916
    %4084 = vmatprep.subr.bf16.mxu0 %v3921
    %4085 = vmatpush1.bf16.msra.mxu0 %v3920
    %4086 = vmatprep.subr.bf16.mxu0 %v3925
    %4087 = vmatpush1.bf16.msra.mxu0 %v3924
    %4088 = vmatprep.mubr.bf16.mxu0 %v93
    %4089 = vmatmul.mubr.bf16.gmra.mrb[0].mxu0 %v92
    %v4090 = vpop.f32.mrb[0].mxu0
    %v4091 = vadd.f32 %v3559, %v4090
    %v4092 = vpop.f32.mrb[0].mxu0
    %v4093 = vadd.f32 %v3563, %v4092
    %v4094 = vpop.f32.mrb[0].mxu0
    %v4095 = vadd.f32 %v3559, %v4094
    %v4096 = vpop.f32.mrb[0].mxu0
    %v4097 = vadd.f32 %v3563, %v4096
    %4098 = vdwg.mxu0
    %4099 = vmatprep.subr.bf16.mxu0 %v3929
    %4100 = vmatpush1.bf16.msra.mxu0 %v3928
    %4101 = vmatprep.subr.bf16.mxu0 %v3933
    %4102 = vmatpush1.bf16.msra.mxu0 %v3932
    %4103 = vmatprep.subr.bf16.mxu0 %v3937
    %4104 = vmatpush1.bf16.msra.mxu0 %v3936
    %4105 = vmatprep.subr.bf16.mxu0 %v3941
    %4106 = vmatpush1.bf16.msra.mxu0 %v3940
    %4107 = vmatprep.subr.bf16.mxu0 %v3945
    %4108 = vmatpush1.bf16.msra.mxu0 %v3944
    %4109 = vmatprep.subr.bf16.mxu0 %v3949
    %4110 = vmatpush1.bf16.msra.mxu0 %v3948
    %4111 = vmatprep.subr.bf16.mxu0 %v3953
    %4112 = vmatpush1.bf16.msra.mxu0 %v3952
    %4113 = vmatprep.subr.bf16.mxu0 %v3957
    %4114 = vmatpush1.bf16.msra.mxu0 %v3956
    %4115 = vmatprep.subr.bf16.mxu0 0
    %4116 = vmatpush1.bf16.msra.mxu0 0
    %4117 = vmatprep.subr.bf16.mxu0 0
    %4118 = vmatpush1.bf16.msra.mxu0 0
    %4119 = vmatprep.subr.bf16.mxu0 0
    %4120 = vmatpush1.bf16.msra.mxu0 0
    %4121 = vmatprep.subr.bf16.mxu0 0
    %4122 = vmatpush1.bf16.msra.mxu0 0
    %4123 = vmatprep.subr.bf16.mxu0 0
    %4124 = vmatpush1.bf16.msra.mxu0 0
    %4125 = vmatprep.subr.bf16.mxu0 0
    %4126 = vmatpush1.bf16.msra.mxu0 0
    %4127 = vmatprep.subr.bf16.mxu0 0
    %4128 = vmatpush1.bf16.msra.mxu0 0
    %4129 = vmatprep.subr.bf16.mxu0 0
    %4130 = vmatpush1.bf16.msra.mxu0 0
    %4131 = vmatprep.mubr.bf16.mxu0 0
    %4132 = vmatmul.mubr.bf16.gmra.mrb[0].mxu0 %v94
    %v4133 = vpop.f32.mrb[0].mxu0
    %v4134 = vadd.f32 %v4091, %v4133
    %v4135 = vpop.f32.mrb[0].mxu0
    %v4136 = vadd.f32 %v4093, %v4135
    %v4137 = vpop.f32.mrb[0].mxu0
    %v4138 = vadd.f32 %v4095, %v4137
    %v4139 = vpop.f32.mrb[0].mxu0
    %v4140 = vadd.f32 %v4097, %v4139
    %4141 = vdwg.mxu0
    %4142 = vmatprep.subr.bf16.mxu0 %v3867
    %4143 = vmatpush1.bf16.msra.mxu0 %v3866
    %4144 = vmatprep.subr.bf16.mxu0 %v3871
    %4145 = vmatpush1.bf16.msra.mxu0 %v3870
    %4146 = vmatprep.subr.bf16.mxu0 %v3875
    %4147 = vmatpush1.bf16.msra.mxu0 %v3874
    %4148 = vmatprep.subr.bf16.mxu0 %v3879
    %4149 = vmatpush1.bf16.msra.mxu0 %v3878
    %4150 = vmatprep.subr.bf16.mxu0 %v3883
    %4151 = vmatpush1.bf16.msra.mxu0 %v3882
    %4152 = vmatprep.subr.bf16.mxu0 %v3887
    %4153 = vmatpush1.bf16.msra.mxu0 %v3886
    %4154 = vmatprep.subr.bf16.mxu0 %v3891
    %4155 = vmatpush1.bf16.msra.mxu0 %v3890
    %4156 = vmatprep.subr.bf16.mxu0 %v3895
    %4157 = vmatpush1.bf16.msra.mxu0 %v3894
    %4158 = vmatprep.subr.bf16.mxu0 %v3899
    %4159 = vmatpush1.bf16.msra.mxu0 %v3898
    %4160 = vmatprep.subr.bf16.mxu0 %v3903
    %4161 = vmatpush1.bf16.msra.mxu0 %v3902
    %4162 = vmatprep.subr.bf16.mxu0 %v3907
    %4163 = vmatpush1.bf16.msra.mxu0 %v3906
    %4164 = vmatprep.subr.bf16.mxu0 %v3911
    %4165 = vmatpush1.bf16.msra.mxu0 %v3910
    %4166 = vmatprep.subr.bf16.mxu0 %v3915
    %4167 = vmatpush1.bf16.msra.mxu0 %v3914
    %4168 = vmatprep.subr.bf16.mxu0 %v3919
    %4169 = vmatpush1.bf16.msra.mxu0 %v3918
    %4170 = vmatprep.subr.bf16.mxu0 %v3923
    %4171 = vmatpush1.bf16.msra.mxu0 %v3922
    %4172 = vmatprep.subr.bf16.mxu0 %v3927
    %4173 = vmatpush1.bf16.msra.mxu0 %v3926
    %4174 = vmatprep.mubr.bf16.mxu0 %v93
    %4175 = vmatmul.mubr.bf16.gmra.mrb[0].mxu0 %v92
    %v4176 = vpop.f32.mrb[0].mxu0
    %v4177 = vadd.f32 %v3567, %v4176
    %v4178 = vpop.f32.mrb[0].mxu0
    %v4179 = vadd.f32 %v3571, %v4178
    %v4180 = vpop.f32.mrb[0].mxu0
    %v4181 = vadd.f32 %v3567, %v4180
    %v4182 = vpop.f32.mrb[0].mxu0
    %v4183 = vadd.f32 %v3571, %v4182
    %4184 = vdwg.mxu0
    %4185 = vmatprep.subr.bf16.mxu0 %v3931
    %4186 = vmatpush1.bf16.msra.mxu0 %v3930
    %4187 = vmatprep.subr.bf16.mxu0 %v3935
    %4188 = vmatpush1.bf16.msra.mxu0 %v3934
    %4189 = vmatprep.subr.bf16.mxu0 %v3939
    %4190 = vmatpush1.bf16.msra.mxu0 %v3938
    %4191 = vmatprep.subr.bf16.mxu0 %v3943
    %4192 = vmatpush1.bf16.msra.mxu0 %v3942
    %4193 = vmatprep.subr.bf16.mxu0 %v3947
    %4194 = vmatpush1.bf16.msra.mxu0 %v3946
    %4195 = vmatprep.subr.bf16.mxu0 %v3951
    %4196 = vmatpush1.bf16.msra.mxu0 %v3950
    %4197 = vmatprep.subr.bf16.mxu0 %v3955
    %4198 = vmatpush1.bf16.msra.mxu0 %v3954
    %4199 = vmatprep.subr.bf16.mxu0 %v3959
    %4200 = vmatpush1.bf16.msra.mxu0 %v3958
    %4201 = vmatprep.subr.bf16.mxu0 0
    %4202 = vmatpush1.bf16.msra.mxu0 0
    %4203 = vmatprep.subr.bf16.mxu0 0
    %4204 = vmatpush1.bf16.msra.mxu0 0
    %4205 = vmatprep.subr.bf16.mxu0 0
    %4206 = vmatpush1.bf16.msra.mxu0 0
    %4207 = vmatprep.subr.bf16.mxu0 0
    %4208 = vmatpush1.bf16.msra.mxu0 0
    %4209 = vmatprep.subr.bf16.mxu0 0
    %4210 = vmatpush1.bf16.msra.mxu0 0
    %4211 = vmatprep.subr.bf16.mxu0 0
    %4212 = vmatpush1.bf16.msra.mxu0 0
    %4213 = vmatprep.subr.bf16.mxu0 0
    %4214 = vmatpush1.bf16.msra.mxu0 0
    %4215 = vmatprep.subr.bf16.mxu0 0
    %4216 = vmatpush1.bf16.msra.mxu0 0
    %4217 = vmatprep.mubr.bf16.mxu0 0
    %4218 = vmatmul.mubr.bf16.gmra.mrb[0].mxu0 %v94
    %v4219 = vpop.f32.mrb[0].mxu0
    %v4220 = vadd.f32 %v4177, %v4219
    %v4221 = vpop.f32.mrb[0].mxu0
    %v4222 = vadd.f32 %v4179, %v4221
    %v4223 = vpop.f32.mrb[0].mxu0
    %v4224 = vadd.f32 %v4181, %v4223
    %v4225 = vpop.f32.mrb[0].mxu0
    %v4226 = vadd.f32 %v4183, %v4225
    %4227 = vdwg.mxu0
    %v4228 = vmax.f32 %v4134, 0.0
    %v4229 = vmax.f32 %v4136, 0.0
    %v4230 = vmax.f32 %v4220, 0.0
    %v4231 = vmax.f32 %v4222, 0.0
    %v4232 = vmax.f32 %v4138, 0.0
    %v4233 = vmax.f32 %v4140, 0.0
    %v4234 = vmax.f32 %v4224, 0.0
    %v4235 = vmax.f32 %v4226, 0.0
    %v4236 = vld [vmem:[#allocation2] sm:$0xff]
    %v4237 = vld [vmem:[#allocation2 + $0x8] sm:$0xff]
    %v4238 = vld [vmem:[#allocation2 + $0x10] sm:$0xff]
    %v4239 = vld [vmem:[#allocation2 + $0x18] sm:$0xff]
    %v4240 = vld [vmem:[#allocation2 + $0x20] sm:$0xff]
    %v4241 = vld [vmem:[#allocation2 + $0x28] sm:$0xff]
    %v4242 = vpack.c.bf16 %v4232, %v4228
    %v4243 = vpack.c.bf16 %v4233, %v4229
    %v4244 = vpack.c.bf16 %v4234, %v4230
    %v4245 = vpack.c.bf16 %v4235, %v4231
    %v4374 = vunpack.c.l.b16 %v3427
    %v4375 = vunpack.c.h.b16 %v3427
    %v4376 = vunpack.c.l.b16 %v3428
    %v4377 = vunpack.c.l.b16 %v3429
    %v4378 = vunpack.c.h.b16 %v3429
    %v4379 = vunpack.c.l.b16 %v3430
    %v4380 = vunpack.c.l.b16 %v3431
    %v4381 = vunpack.c.h.b16 %v3431
    %v4382 = vunpack.c.l.b16 %v3432
    %v4383 = vunpack.c.l.b16 %v3433
    %v4384 = vunpack.c.h.b16 %v3433
    %v4385 = vunpack.c.l.b16 %v3434
    %v4386 = vunpack.c.l.b16 %v3435
    %v4387 = vunpack.c.h.b16 %v3435
    %v4388 = vunpack.c.l.b16 %v3436
    %v4389 = vunpack.c.l.b16 %v3437
    %v4390 = vunpack.c.h.b16 %v3437
    %v4391 = vunpack.c.l.b16 %v3438
    %v4392 = vunpack.c.l.b16 %v3439
    %v4393 = vunpack.c.h.b16 %v3439
    %v4394 = vunpack.c.l.b16 %v3440
    %v4395 = vunpack.c.l.b16 %v3441
    %v4396 = vunpack.c.h.b16 %v3441
    %v4397 = vunpack.c.l.b16 %v3442
    %v4398 = vunpack.c.l.b16 %v3443
    %v4399 = vunpack.c.h.b16 %v3443
    %v4400 = vunpack.c.l.b16 %v3444
    %v4401 = vunpack.c.l.b16 %v3445
    %v4402 = vunpack.c.h.b16 %v3445
    %v4403 = vunpack.c.l.b16 %v3446
    %v4404 = vunpack.c.l.b16 %v3447
    %v4405 = vunpack.c.h.b16 %v3447
    %v4406 = vunpack.c.l.b16 %v3448
    %v4407 = vunpack.c.l.b16 %v3449
    %v4408 = vunpack.c.h.b16 %v3449
    %v4409 = vunpack.c.l.b16 %v3450
    %v4410 = vunpack.c.l.b16 %v3451
    %v4411 = vunpack.c.h.b16 %v3451
    %v4412 = vunpack.c.l.b16 %v3452
    %v4413 = vunpack.c.l.b16 %v3453
    %v4414 = vunpack.c.h.b16 %v3453
    %v4415 = vunpack.c.l.b16 %v3454
    %v4416 = vunpack.c.l.b16 %v3455
    %v4417 = vunpack.c.h.b16 %v3455
    %v4418 = vunpack.c.l.b16 %v3456
    %v4419 = vunpack.c.l.b16 %v3457
    %v4420 = vunpack.c.h.b16 %v3457
    %v4421 = vunpack.c.l.b16 %v3458
    %v4422 = vunpack.c.l.b16 %v3459
    %v4423 = vunpack.c.h.b16 %v3459
    %v4424 = vunpack.c.l.b16 %v3460
    %v4425 = vunpack.c.l.b16 %v3461
    %v4426 = vunpack.c.h.b16 %v3461
    %v4427 = vunpack.c.l.b16 %v3462
    %v4428 = vunpack.c.l.b16 %v3463
    %v4429 = vunpack.c.h.b16 %v3463
    %v4430 = vunpack.c.l.b16 %v3464
    %v4431 = vunpack.c.l.b16 %v3465
    %v4432 = vunpack.c.h.b16 %v3465
    %v4433 = vunpack.c.l.b16 %v3466
    %v4434 = vunpack.c.l.b16 %v3467
    %v4435 = vunpack.c.h.b16 %v3467
    %v4436 = vunpack.c.l.b16 %v3468
    %v4437 = vunpack.c.l.b16 %v3469
    %v4438 = vunpack.c.h.b16 %v3469
    %v4439 = vunpack.c.l.b16 %v3470
    %v4440 = vunpack.c.l.b16 %v3471
    %v4441 = vunpack.c.h.b16 %v3471
    %v4442 = vunpack.c.l.b16 %v3472
    %v4443 = vunpack.c.l.b16 %v3473
    %v4444 = vunpack.c.h.b16 %v3473
    %v4445 = vunpack.c.l.b16 %v3474
    %v4446 = vunpack.c.l.b16 %v3475
    %v4447 = vunpack.c.h.b16 %v3475
    %v4448 = vunpack.c.l.b16 %v3476
    %v4449 = vunpack.c.l.b16 %v3477
    %v4450 = vunpack.c.h.b16 %v3477
    %v4451 = vunpack.c.l.b16 %v3478
    %v4452 = vunpack.c.l.b16 %v3479
    %v4453 = vunpack.c.h.b16 %v3479
    %v4454 = vunpack.c.l.b16 %v3480
    %v4455 = vunpack.c.l.b16 %v3481
    %v4456 = vunpack.c.h.b16 %v3481
    %v4457 = vunpack.c.l.b16 %v3482
    %v4458 = vunpack.c.l.b16 %v3483
    %v4459 = vunpack.c.h.b16 %v3483
    %v4460 = vunpack.c.l.b16 %v3484
    %v4461 = vunpack.c.l.b16 %v3485
    %v4462 = vunpack.c.h.b16 %v3485
    %v4463 = vunpack.c.l.b16 %v3486
    %v4464 = vunpack.c.l.b16 %v3487
    %v4465 = vunpack.c.h.b16 %v3487
    %v4466 = vunpack.c.l.b16 %v3488
    %v4467 = vunpack.c.l.b16 %v3489
    %v4468 = vunpack.c.h.b16 %v3489
    %v4469 = vunpack.c.l.b16 %v3490
    %v4470 = vunpack.c.l.b16 %v3491
    %v4471 = vunpack.c.h.b16 %v3491
    %v4472 = vunpack.c.l.b16 %v3492
    %v4473 = vunpack.c.l.b16 %v3493
    %v4474 = vunpack.c.h.b16 %v3493
    %v4475 = vunpack.c.l.b16 %v3494
    %v4476 = vunpack.c.l.b16 %v3495
    %v4477 = vunpack.c.h.b16 %v3495
    %v4478 = vunpack.c.l.b16 %v3496
    %v4479 = vunpack.c.l.b16 %v3497
    %v4480 = vunpack.c.h.b16 %v3497
    %v4481 = vunpack.c.l.b16 %v3498
    %v4482 = vunpack.c.l.b16 %v3499
    %v4483 = vunpack.c.h.b16 %v3499
    %v4484 = vunpack.c.l.b16 %v3500
    %v4485 = vunpack.c.l.b16 %v3501
    %v4486 = vunpack.c.h.b16 %v3501
    %v4487 = vunpack.c.l.b16 %v3502
    %v4488 = vunpack.c.l.b16 %v3503
    %v4489 = vunpack.c.h.b16 %v3503
    %v4490 = vunpack.c.l.b16 %v3504
    %v4491 = vunpack.c.l.b16 %v3505
    %v4492 = vunpack.c.h.b16 %v3505
    %v4493 = vunpack.c.l.b16 %v3506
    %v4494 = vunpack.c.l.b16 %v3507
    %v4495 = vunpack.c.h.b16 %v3507
    %v4496 = vunpack.c.l.b16 %v3508
    %v4497 = vunpack.c.l.b16 %v3509
    %v4498 = vunpack.c.h.b16 %v3509
    %v4499 = vunpack.c.l.b16 %v3510
    %v4500 = vunpack.c.l.b16 %v3511
    %v4501 = vunpack.c.h.b16 %v3511
    %v4502 = vunpack.c.l.b16 %v3512
    %v4503 = vunpack.c.l.b16 %v3513
    %v4504 = vunpack.c.h.b16 %v3513
    %v4505 = vunpack.c.l.b16 %v3514
    %v4506 = vunpack.c.l.b16 %v3515
    %v4507 = vunpack.c.h.b16 %v3515
    %v4508 = vunpack.c.l.b16 %v3516
    %v4509 = vunpack.c.l.b16 %v3517
    %v4510 = vunpack.c.h.b16 %v3517
    %v4511 = vunpack.c.l.b16 %v3518
    %v4512 = vunpack.c.l.b16 %v3519
    %v4513 = vunpack.c.h.b16 %v3519
    %v4514 = vunpack.c.l.b16 %v3520
    %v4515 = vunpack.c.l.b16 %v3521
    %v4516 = vunpack.c.h.b16 %v3521
    %v4517 = vunpack.c.l.b16 %v3522
    %v4518 = vunpack.c.l.b16 %v3523
    %v4519 = vunpack.c.h.b16 %v3523
    %v4520 = vunpack.c.l.b16 %v3524
    %v4521 = vunpack.c.l.b16 %v3525
    %v4522 = vunpack.c.h.b16 %v3525
    %v4523 = vunpack.c.l.b16 %v3526
    %v4524 = vunpack.c.l.b16 %v3527
    %v4525 = vunpack.c.h.b16 %v3527
    %v4526 = vunpack.c.l.b16 %v3528
    %v4527 = vunpack.c.l.b16 %v3529
    %v4528 = vunpack.c.h.b16 %v3529
    %v4529 = vunpack.c.l.b16 %v3530
    %v4530 = vunpack.c.l.b16 %v3531
    %v4531 = vunpack.c.h.b16 %v3531
    %v4532 = vunpack.c.l.b16 %v3532
    %v4533 = vunpack.c.l.b16 %v3533
    %v4534 = vunpack.c.h.b16 %v3533
    %v4535 = vunpack.c.l.b16 %v3534
    %v4536 = vunpack.c.l.b16 %v3535
    %v4537 = vunpack.c.h.b16 %v3535
    %v4538 = vunpack.c.l.b16 %v3536
    %v4539 = vunpack.c.l.b16 %v3537
    %v4540 = vunpack.c.h.b16 %v3537
    %v4541 = vunpack.c.l.b16 %v3538
    %v4542 = vunpack.c.l.b16 %v3539
    %v4543 = vunpack.c.h.b16 %v3539
    %v4544 = vunpack.c.l.b16 %v3540
    %v4545 = vunpack.c.l.b16 %v3541
    %v4546 = vunpack.c.h.b16 %v3541
    %v4547 = vunpack.c.l.b16 %v3542
    %v4548 = vunpack.c.l.b16 %v3543
    %v4549 = vunpack.c.h.b16 %v3543
    %v4550 = vunpack.c.l.b16 %v3544
    %v4551 = vunpack.c.l.b16 %v3545
    %v4552 = vunpack.c.h.b16 %v3545
    %v4553 = vunpack.c.l.b16 %v3546
    %v4554 = vunpack.c.l.b16 %v3547
    %v4555 = vunpack.c.h.b16 %v3547
    %v4556 = vunpack.c.l.b16 %v3548
    %v4557 = vunpack.c.l.b16 %v3549
    %v4558 = vunpack.c.h.b16 %v3549
    %v4559 = vunpack.c.l.b16 %v3550
    %v4560 = vunpack.c.l.b16 %v3551
    %v4561 = vunpack.c.h.b16 %v3551
    %v4562 = vunpack.c.l.b16 %v3552
    %v4563 = vunpack.c.l.b16 %v3553
    %v4564 = vunpack.c.h.b16 %v3553
    %v4565 = vunpack.c.l.b16 %v3554
    %v4566 = vpack.c.b16 %v4377, %v4374
    %v4567 = vpack.c.b16 %v4378, %v4375
    %v4568 = vpack.c.b16 %v4379, %v4376
    %v4569 = vpack.c.b16 %v4383, %v4380
    %v4570 = vpack.c.b16 %v4384, %v4381
    %v4571 = vpack.c.b16 %v4385, %v4382
    %v4572 = vpack.c.b16 %v4389, %v4386
    %v4573 = vpack.c.b16 %v4390, %v4387
    %v4574 = vpack.c.b16 %v4391, %v4388
    %v4575 = vpack.c.b16 %v4395, %v4392
    %v4576 = vpack.c.b16 %v4396, %v4393
    %v4577 = vpack.c.b16 %v4397, %v4394
    %v4578 = vpack.c.b16 %v4401, %v4398
    %v4579 = vpack.c.b16 %v4402, %v4399
    %v4580 = vpack.c.b16 %v4403, %v4400
    %v4581 = vpack.c.b16 %v4407, %v4404
    %v4582 = vpack.c.b16 %v4408, %v4405
    %v4583 = vpack.c.b16 %v4409, %v4406
    %v4584 = vpack.c.b16 %v4413, %v4410
    %v4585 = vpack.c.b16 %v4414, %v4411
    %v4586 = vpack.c.b16 %v4415, %v4412
    %v4587 = vpack.c.b16 %v4419, %v4416
    %v4588 = vpack.c.b16 %v4420, %v4417
    %v4589 = vpack.c.b16 %v4421, %v4418
    %v4590 = vpack.c.b16 %v4425, %v4422
    %v4591 = vpack.c.b16 %v4426, %v4423
    %v4592 = vpack.c.b16 %v4427, %v4424
    %v4593 = vpack.c.b16 %v4431, %v4428
    %v4594 = vpack.c.b16 %v4432, %v4429
    %v4595 = vpack.c.b16 %v4433, %v4430
    %v4596 = vpack.c.b16 %v4437, %v4434
    %v4597 = vpack.c.b16 %v4438, %v4435
    %v4598 = vpack.c.b16 %v4439, %v4436
    %v4599 = vpack.c.b16 %v4443, %v4440
    %v4600 = vpack.c.b16 %v4444, %v4441
    %v4601 = vpack.c.b16 %v4445, %v4442
    %v4602 = vpack.c.b16 %v4449, %v4446
    %v4603 = vpack.c.b16 %v4450, %v4447
    %v4604 = vpack.c.b16 %v4451, %v4448
    %v4605 = vpack.c.b16 %v4455, %v4452
    %v4606 = vpack.c.b16 %v4456, %v4453
    %v4607 = vpack.c.b16 %v4457, %v4454
    %v4608 = vpack.c.b16 %v4461, %v4458
    %v4609 = vpack.c.b16 %v4462, %v4459
    %v4610 = vpack.c.b16 %v4463, %v4460
    %v4611 = vpack.c.b16 %v4467, %v4464
    %v4612 = vpack.c.b16 %v4468, %v4465
    %v4613 = vpack.c.b16 %v4469, %v4466
    %v4614 = vpack.c.b16 %v4473, %v4470
    %v4615 = vpack.c.b16 %v4474, %v4471
    %v4616 = vpack.c.b16 %v4475, %v4472
    %v4617 = vpack.c.b16 %v4479, %v4476
    %v4618 = vpack.c.b16 %v4480, %v4477
    %v4619 = vpack.c.b16 %v4481, %v4478
    %v4620 = vpack.c.b16 %v4485, %v4482
    %v4621 = vpack.c.b16 %v4486, %v4483
    %v4622 = vpack.c.b16 %v4487, %v4484
    %v4623 = vpack.c.b16 %v4491, %v4488
    %v4624 = vpack.c.b16 %v4492, %v4489
    %v4625 = vpack.c.b16 %v4493, %v4490
    %v4626 = vpack.c.b16 %v4497, %v4494
    %v4627 = vpack.c.b16 %v4498, %v4495
    %v4628 = vpack.c.b16 %v4499, %v4496
    %v4629 = vpack.c.b16 %v4503, %v4500
    %v4630 = vpack.c.b16 %v4504, %v4501
    %v4631 = vpack.c.b16 %v4505, %v4502
    %v4632 = vpack.c.b16 %v4509, %v4506
    %v4633 = vpack.c.b16 %v4510, %v4507
    %v4634 = vpack.c.b16 %v4511, %v4508
    %v4635 = vpack.c.b16 %v4515, %v4512
    %v4636 = vpack.c.b16 %v4516, %v4513
    %v4637 = vpack.c.b16 %v4517, %v4514
    %v4638 = vpack.c.b16 %v4521, %v4518
    %v4639 = vpack.c.b16 %v4522, %v4519
    %v4640 = vpack.c.b16 %v4523, %v4520
    %v4641 = vpack.c.b16 %v4527, %v4524
    %v4642 = vpack.c.b16 %v4528, %v4525
    %v4643 = vpack.c.b16 %v4529, %v4526
    %v4644 = vpack.c.b16 %v4533, %v4530
    %v4645 = vpack.c.b16 %v4534, %v4531
    %v4646 = vpack.c.b16 %v4535, %v4532
    %v4647 = vpack.c.b16 %v4539, %v4536
    %v4648 = vpack.c.b16 %v4540, %v4537
    %v4649 = vpack.c.b16 %v4541, %v4538
    %v4650 = vpack.c.b16 %v4545, %v4542
    %v4651 = vpack.c.b16 %v4546, %v4543
    %v4652 = vpack.c.b16 %v4547, %v4544
    %v4653 = vpack.c.b16 %v4551, %v4548
    %v4654 = vpack.c.b16 %v4552, %v4549
    %v4655 = vpack.c.b16 %v4553, %v4550
    %v4656 = vpack.c.b16 %v4557, %v4554
    %v4657 = vpack.c.b16 %v4558, %v4555
    %v4658 = vpack.c.b16 %v4559, %v4556
    %v4659 = vpack.c.b16 %v4563, %v4560
    %v4660 = vpack.c.b16 %v4564, %v4561
    %v4661 = vpack.c.b16 %v4565, %v4562
    %4758 = vmatprep.subr.bf16.mxu0 %v4567
    %4759 = vmatpush1.bf16.msra.mxu0 %v4566
    %4760 = vmatprep.subr.bf16.mxu0 %v4570
    %4761 = vmatpush1.bf16.msra.mxu0 %v4569
    %4762 = vmatprep.subr.bf16.mxu0 %v4573
    %4763 = vmatpush1.bf16.msra.mxu0 %v4572
    %4764 = vmatprep.subr.bf16.mxu0 %v4576
    %4765 = vmatpush1.bf16.msra.mxu0 %v4575
    %4766 = vmatprep.subr.bf16.mxu0 %v4579
    %4767 = vmatpush1.bf16.msra.mxu0 %v4578
    %4768 = vmatprep.subr.bf16.mxu0 %v4582
    %4769 = vmatpush1.bf16.msra.mxu0 %v4581
    %4770 = vmatprep.subr.bf16.mxu0 %v4585
    %4771 = vmatpush1.bf16.msra.mxu0 %v4584
    %4772 = vmatprep.subr.bf16.mxu0 %v4588
    %4773 = vmatpush1.bf16.msra.mxu0 %v4587
    %4774 = vmatprep.subr.bf16.mxu0 %v4591
    %4775 = vmatpush1.bf16.msra.mxu0 %v4590
    %4776 = vmatprep.subr.bf16.mxu0 %v4594
    %4777 = vmatpush1.bf16.msra.mxu0 %v4593
    %4778 = vmatprep.subr.bf16.mxu0 %v4597
    %4779 = vmatpush1.bf16.msra.mxu0 %v4596
    %4780 = vmatprep.subr.bf16.mxu0 %v4600
    %4781 = vmatpush1.bf16.msra.mxu0 %v4599
    %4782 = vmatprep.subr.bf16.mxu0 %v4603
    %4783 = vmatpush1.bf16.msra.mxu0 %v4602
    %4784 = vmatprep.subr.bf16.mxu0 %v4606
    %4785 = vmatpush1.bf16.msra.mxu0 %v4605
    %4786 = vmatprep.subr.bf16.mxu0 %v4609
    %4787 = vmatpush1.bf16.msra.mxu0 %v4608
    %4788 = vmatprep.subr.bf16.mxu0 %v4612
    %4789 = vmatpush1.bf16.msra.mxu0 %v4611
    %4790 = vmatprep.mubr.bf16.mxu0 %v4243
    %4791 = vmatmul.mubr.bf16.gmra.mrb[0].mxu0 %v4242
    %v4792 = vpop.f32.mrb[0].mxu0
    %v4793 = vadd.f32 0.0, %v4792
    %v4794 = vpop.f32.mrb[0].mxu0
    %v4795 = vadd.f32 0.0, %v4794
    %v4796 = vpop.f32.mrb[0].mxu0
    %v4797 = vadd.f32 0.0, %v4796
    %v4798 = vpop.f32.mrb[0].mxu0
    %v4799 = vadd.f32 0.0, %v4798
    %4800 = vdwg.mxu0
    %4801 = vmatprep.subr.bf16.mxu0 %v4615
    %4802 = vmatpush1.bf16.msra.mxu0 %v4614
    %4803 = vmatprep.subr.bf16.mxu0 %v4618
    %4804 = vmatpush1.bf16.msra.mxu0 %v4617
    %4805 = vmatprep.subr.bf16.mxu0 %v4621
    %4806 = vmatpush1.bf16.msra.mxu0 %v4620
    %4807 = vmatprep.subr.bf16.mxu0 %v4624
    %4808 = vmatpush1.bf16.msra.mxu0 %v4623
    %4809 = vmatprep.subr.bf16.mxu0 %v4627
    %4810 = vmatpush1.bf16.msra.mxu0 %v4626
    %4811 = vmatprep.subr.bf16.mxu0 %v4630
    %4812 = vmatpush1.bf16.msra.mxu0 %v4629
    %4813 = vmatprep.subr.bf16.mxu0 %v4633
    %4814 = vmatpush1.bf16.msra.mxu0 %v4632
    %4815 = vmatprep.subr.bf16.mxu0 %v4636
    %4816 = vmatpush1.bf16.msra.mxu0 %v4635
    %4817 = vmatprep.subr.bf16.mxu0 %v4639
    %4818 = vmatpush1.bf16.msra.mxu0 %v4638
    %4819 = vmatprep.subr.bf16.mxu0 %v4642
    %4820 = vmatpush1.bf16.msra.mxu0 %v4641
    %4821 = vmatprep.subr.bf16.mxu0 %v4645
    %4822 = vmatpush1.bf16.msra.mxu0 %v4644
    %4823 = vmatprep.subr.bf16.mxu0 %v4648
    %4824 = vmatpush1.bf16.msra.mxu0 %v4647
    %4825 = vmatprep.subr.bf16.mxu0 %v4651
    %4826 = vmatpush1.bf16.msra.mxu0 %v4650
    %4827 = vmatprep.subr.bf16.mxu0 %v4654
    %4828 = vmatpush1.bf16.msra.mxu0 %v4653
    %4829 = vmatprep.subr.bf16.mxu0 %v4657
    %4830 = vmatpush1.bf16.msra.mxu0 %v4656
    %4831 = vmatprep.subr.bf16.mxu0 %v4660
    %4832 = vmatpush1.bf16.msra.mxu0 %v4659
    %4833 = vmatprep.mubr.bf16.mxu0 %v4245
    %4834 = vmatmul.mubr.bf16.gmra.mrb[0].mxu0 %v4244
    %v4835 = vpop.f32.mrb[0].mxu0
    %v4836 = vadd.f32 %v4793, %v4835
    %v4837 = vpop.f32.mrb[0].mxu0
    %v4838 = vadd.f32 %v4795, %v4837
    %v4839 = vpop.f32.mrb[0].mxu0
    %v4840 = vadd.f32 %v4797, %v4839
    %v4841 = vpop.f32.mrb[0].mxu0
    %v4842 = vadd.f32 %v4799, %v4841
    %4843 = vdwg.mxu0
    %4844 = vmatprep.subr.bf16.mxu0 0
    %4845 = vmatpush1.bf16.msra.mxu0 %v4568
    %4846 = vmatprep.subr.bf16.mxu0 0
    %4847 = vmatpush1.bf16.msra.mxu0 %v4571
    %4848 = vmatprep.subr.bf16.mxu0 0
    %4849 = vmatpush1.bf16.msra.mxu0 %v4574
    %4850 = vmatprep.subr.bf16.mxu0 0
    %4851 = vmatpush1.bf16.msra.mxu0 %v4577
    %4852 = vmatprep.subr.bf16.mxu0 0
    %4853 = vmatpush1.bf16.msra.mxu0 %v4580
    %4854 = vmatprep.subr.bf16.mxu0 0
    %4855 = vmatpush1.bf16.msra.mxu0 %v4583
    %4856 = vmatprep.subr.bf16.mxu0 0
    %4857 = vmatpush1.bf16.msra.mxu0 %v4586
    %4858 = vmatprep.subr.bf16.mxu0 0
    %4859 = vmatpush1.bf16.msra.mxu0 %v4589
    %4860 = vmatprep.subr.bf16.mxu0 0
    %4861 = vmatpush1.bf16.msra.mxu0 %v4592
    %4862 = vmatprep.subr.bf16.mxu0 0
    %4863 = vmatpush1.bf16.msra.mxu0 %v4595
    %4864 = vmatprep.subr.bf16.mxu0 0
    %4865 = vmatpush1.bf16.msra.mxu0 %v4598
    %4866 = vmatprep.subr.bf16.mxu0 0
    %4867 = vmatpush1.bf16.msra.mxu0 %v4601
    %4868 = vmatprep.subr.bf16.mxu0 0
    %4869 = vmatpush1.bf16.msra.mxu0 %v4604
    %4870 = vmatprep.subr.bf16.mxu0 0
    %4871 = vmatpush1.bf16.msra.mxu0 %v4607
    %4872 = vmatprep.subr.bf16.mxu0 0
    %4873 = vmatpush1.bf16.msra.mxu0 %v4610
    %4874 = vmatprep.subr.bf16.mxu0 0
    %4875 = vmatpush1.bf16.msra.mxu0 %v4613
    %4876 = vmatprep.mubr.bf16.mxu0 %v4243
    %4877 = vmatmul.mubr.bf16.gmra.mrb[0].mxu0 %v4242
    %v4878 = vpop.f32.mrb[0].mxu0
    %v4879 = vadd.f32 0.0, %v4878
    %v4880 = vpop.f32.mrb[0].mxu0
    %v4881 = vpop.f32.mrb[0].mxu0
    %v4882 = vadd.f32 0.0, %v4881
    %v4883 = vpop.f32.mrb[0].mxu0
    %4884 = vdwg.mxu0
    %4885 = vmatprep.subr.bf16.mxu0 0
    %4886 = vmatpush1.bf16.msra.mxu0 %v4616
    %4887 = vmatprep.subr.bf16.mxu0 0
    %4888 = vmatpush1.bf16.msra.mxu0 %v4619
    %4889 = vmatprep.subr.bf16.mxu0 0
    %4890 = vmatpush1.bf16.msra.mxu0 %v4622
    %4891 = vmatprep.subr.bf16.mxu0 0
    %4892 = vmatpush1.bf16.msra.mxu0 %v4625
    %4893 = vmatprep.subr.bf16.mxu0 0
    %4894 = vmatpush1.bf16.msra.mxu0 %v4628
    %4895 = vmatprep.subr.bf16.mxu0 0
    %4896 = vmatpush1.bf16.msra.mxu0 %v4631
    %4897 = vmatprep.subr.bf16.mxu0 0
    %4898 = vmatpush1.bf16.msra.mxu0 %v4634
    %4899 = vmatprep.subr.bf16.mxu0 0
    %4900 = vmatpush1.bf16.msra.mxu0 %v4637
    %4901 = vmatprep.subr.bf16.mxu0 0
    %4902 = vmatpush1.bf16.msra.mxu0 %v4640
    %4903 = vmatprep.subr.bf16.mxu0 0
    %4904 = vmatpush1.bf16.msra.mxu0 %v4643
    %4905 = vmatprep.subr.bf16.mxu0 0
    %4906 = vmatpush1.bf16.msra.mxu0 %v4646
    %4907 = vmatprep.subr.bf16.mxu0 0
    %4908 = vmatpush1.bf16.msra.mxu0 %v4649
    %4909 = vmatprep.subr.bf16.mxu0 0
    %4910 = vmatpush1.bf16.msra.mxu0 %v4652
    %4911 = vmatprep.subr.bf16.mxu0 0
    %4912 = vmatpush1.bf16.msra.mxu0 %v4655
    %4913 = vmatprep.subr.bf16.mxu0 0
    %4914 = vmatpush1.bf16.msra.mxu0 %v4658
    %4915 = vmatprep.subr.bf16.mxu0 0
    %4916 = vmatpush1.bf16.msra.mxu0 %v4661
    %4917 = vmatprep.mubr.bf16.mxu0 %v4245
    %4918 = vmatmul.mubr.bf16.gmra.mrb[0].mxu0 %v4244
    %v4919 = vpop.f32.mrb[0].mxu0
    %v4920 = vadd.f32 %v4879, %v4919
    %v4921 = vpop.f32.mrb[0].mxu0
    %v4922 = vpop.f32.mrb[0].mxu0
    %v4923 = vadd.f32 %v4882, %v4922
    %v4924 = vpop.f32.mrb[0].mxu0
    %4925 = vdwg.mxu0
    %v4926 = vadd.f32 %v4236, %v4836
    %v4927 = vadd.f32 %v4237, %v4838
    %v4928 = vadd.f32 %v4238, %v4920
    %v4929 = vadd.f32 %v4239, %v4840
    %v4930 = vadd.f32 %v4240, %v4842
    %v4931 = vadd.f32 %v4241, %v4923
    %4932 = vst [vmem:[#allocation2] sm:$0xff] %v4926
    %4933 = vst [vmem:[#allocation2 + $0x8] sm:$0xff] %v4927
    %4934 = vst [vmem:[#allocation2 + $0x10] sm:$0xff] %v4928
    %4935 = vst [vmem:[#allocation2 + $0x18] sm:$0xff] %v4929
    %4936 = vst [vmem:[#allocation2 + $0x20] sm:$0xff] %v4930
    %4937 = vst [vmem:[#allocation2 + $0x28] sm:$0xff] %v4931
    %v4938 = vld [vmem:[#allocation2] sm:$0xff]
    %v4939 = vld [vmem:[#allocation2 + $0x8] sm:$0xff]
    %v4940 = vld [vmem:[#allocation2 + $0x10] sm:$0xff]
    %v4941 = vld [vmem:[#allocation2 + $0x18] sm:$0xff]
    %v4942 = vld [vmem:[#allocation2 + $0x20] sm:$0xff]
    %v4943 = vld [vmem:[#allocation2 + $0x28] sm:$0xff]
    %v4944 = vld [vmem:[#allocation11] sm:$0x7]
    %v4946 = vlaneseq
    %v4947 = vshrl.u32 %v4946, 7
    %v4948 = vsub.s32 0, %v4947
    %v4949 = vrot.slane %v4944, %v4948
    %v4950 = vlaneseq
    %v4951 = vshrl.u32 %v4950, 7
    %v4952 = vsub.s32 1, %v4951
    %v4953 = vrot.slane %v4944, %v4952
    %v4954 = vlaneseq
    %v4955 = vshrl.u32 %v4954, 7
    %v4956 = vsub.s32 2, %v4955
    %v4957 = vrot.slane %v4944, %v4956
    %v4961 = vadd.f32 %v4938, %v4949
    %v4962 = vadd.f32 %v4939, %v4953
    %v4963 = vadd.f32 %v4940, %v4957
    %v4964 = vadd.f32 %v4941, %v4949
    %v4965 = vadd.f32 %v4942, %v4953
    %v4966 = vadd.f32 %v4943, %v4957
    %4967 = vst [vmem:[#allocation12] sm:$0xff] %v4961
    %4968 = vst [vmem:[#allocation12 + $0x8] sm:$0xff] %v4962
    %4969 = vst [vmem:[#allocation12 + $0x10] sm:$0xff] %v4963
    %4970 = vst [vmem:[#allocation12 + $0x18] sm:$0xff] %v4964
    %4971 = vst [vmem:[#allocation12 + $0x20] sm:$0xff] %v4965
    %4972 = vst [vmem:[#allocation12 + $0x28] sm:$0xff] %v4966
    // Predicated region
    $region42: #{tpu_custom_call.1} parent=1 // pred_check
      _
    $region43: #{tpu_custom_call.1} parent=1 // pred_check_branch
      %4974 = sbr.rel (0) target = $region45
    $region44: #{tpu_custom_call.1} parent=1 // pred_region
      %s4976 = ssub.s32 768, 768
      %4977 = vsyncadd [#allocation5], %s4976
      %s4978 = sshll.u32 [#allocation12], 4
      %s4979 = int_to_ptr.vmem [resolvable:$true] %s4978
      %4984 = dma.vmem_to_hbm [thread:$0]  %s4979, 768, %s5, [#allocation5], 384, 384, 24
    $region45: #{tpu_custom_call.1} parent=1 // pred_fallthru
      _
    // Predicated region
    $region46: #{tpu_custom_call.1} parent=1 // pred_check
      _
    $region47: #{tpu_custom_call.1} parent=1 // pred_check_branch
      %4986 = sbr.rel (0) target = $region49
    $region48: #{tpu_custom_call.1} parent=1 // pred_region
      %4987 = dma.done [#allocation5], 768
    $region49: #{tpu_custom_call.1} parent=1 // pred_fallthru
      _
    %4988 = vsyncpa [#allocation4], 1
    %4989 = vsyncpa [#allocation7], 1
    %4990 = vsyncpa [#allocation10], 1
    %4991 = vsyncpa [#allocation5], 1

</llo_original>
